<compile_context>
chip_gen: v7x
topology: tpu7x:2x2x1
jax: 0.10.0
libtpu: 0.0.40
codegen_flags: <defaults>
</compile_context>

<pallas_src>
import functools

import jax
import jax.numpy as jnp
from jax.experimental import pallas as pl
from jax.experimental.pallas import tpu as pltpu


def _attention_kernel(x_ref, y_ref, wq_ref, wk_ref, wv_ref, wp_ref, bp_ref, o_ref,
                      *, seq_len, num_heads):
    """Fused attention for one batch block.

    x_ref, y_ref, o_ref : (Bb*N, C)  float32
    wq_ref (scale folded), wk_ref, wv_ref, wp_ref : (C, C)  (bf16 MXU operands)
    bp_ref : (1, C) float32
    """
    BbN, C = x_ref.shape
    N = seq_len
    H = num_heads
    hd = C // H
    Bb = BbN // N

    f32 = jnp.float32
    mm_dtype = wq_ref.dtype  # bf16 by default; f32 accumulation everywhere below.

    xb = x_ref[...].astype(mm_dtype)                       # (BbN, C)
    yb = y_ref[...].astype(mm_dtype)                       # (BbN, C)

    # ---- fused projections: one well-shaped MXU matmul each (no head broadcast) ----
    q2 = jnp.dot(xb, wq_ref[...], preferred_element_type=f32)   # (BbN, C), scale folded in
    k2 = jnp.dot(yb, wk_ref[...], preferred_element_type=f32)   # (BbN, C)
    v2 = jnp.dot(yb, wv_ref[...], preferred_element_type=f32)   # (BbN, C)

    # ---- enter head-batched layout once: (BbN, C) -> (Z, N, hd), z = h*Bb + b ----
    def to_heads(t2):
        t3 = t2.reshape(Bb, N, C)                               # leading-dim split (cheap)
        return jnp.concatenate(
            [t3[:, :, h * hd:(h + 1) * hd] for h in range(H)], axis=0)  # (H*Bb, N, hd)

    qz = to_heads(q2)
    kz = to_heads(k2)
    vz = to_heads(v2)

    # ---- scaled dot-product attention, batched over all (head, batch) at once ----
    s = jnp.einsum('znd,zmd->znm', qz.astype(mm_dtype), kz.astype(mm_dtype),
                   preferred_element_type=f32)                  # (Z, N, N)
    s = s - jnp.max(s, axis=-1, keepdims=True)
    p = jnp.exp(s)
    p = p * pl.reciprocal(jnp.sum(p, axis=-1, keepdims=True), approx=True)

    o = jnp.einsum('znm,zmd->znd', p.astype(mm_dtype), vz.astype(mm_dtype),
                   preferred_element_type=f32)                  # (Z, N, hd)

    # ---- exit head-batched layout: concat heads along channels -> (BbN, C) ----
    o4 = o.reshape(H, Bb, N, hd)                                # leading-dim split (cheap)
    ocat = jnp.concatenate([o4[h] for h in range(H)], axis=-1)  # (Bb, N, C), channel = h*hd+d
    o2 = ocat.reshape(BbN, C)

    # ---- single output projection + bias ----
    out = jnp.dot(o2.astype(mm_dtype), wp_ref[...], preferred_element_type=f32) + bp_ref[...]
    o_ref[...] = out


def attention_pallas(x, y, wq_t, wkv_t, wp_t, bp, *, num_heads, batch_blocks=1,
                     mxu_dtype=jnp.bfloat16):
    """x, y: (B, N, C). wq_t: (C, C), wkv_t: (C, 2C), wp_t: (C, C), bp: (C,).

    Weights are the PyTorch Linear weights already transposed to (in, out) so that
    `x @ wq_t == self.q(x)` etc. batch_blocks=1 -> single grid step (best at small shapes);
    increase it for large B / to give both v7x TensorCores work (axis is "parallel").
    """
    B, N, C = x.shape
    assert x.shape == y.shape
    assert C % num_heads == 0 and B % batch_blocks == 0
    H = num_heads
    hd = C // H
    scale = hd ** (-0.5)
    Bb = B // batch_blocks

    # Trace-time weight preparation (free): fold scale into Wq, split kv, cast MXU operands.
    wq_s = (wq_t * scale).astype(mxu_dtype)       # (C, C)
    wk = wkv_t[:, :C].astype(mxu_dtype)           # (C, C)
    wv = wkv_t[:, C:].astype(mxu_dtype)           # (C, C)
    wp = wp_t.astype(mxu_dtype)                   # (C, C)
    bp2 = bp.reshape(1, C).astype(jnp.float32)    # hoisted bias broadcast

    x2 = x.reshape(B * N, C).astype(jnp.float32)
    y2 = y.reshape(B * N, C).astype(jnp.float32)

    kernel = functools.partial(_attention_kernel, seq_len=N, num_heads=H)

    out2 = pl.pallas_call(
        kernel,
        out_shape=jax.ShapeDtypeStruct((B * N, C), jnp.float32),
        grid_spec=pltpu.PrefetchScalarGridSpec(
            num_scalar_prefetch=0,
            grid=(batch_blocks,),
            in_specs=[
                pl.BlockSpec((Bb * N, C), lambda i: (i, 0)),   # x (rows are b-major, n-minor)
                pl.BlockSpec((Bb * N, C), lambda i: (i, 0)),   # y
                pl.BlockSpec((C, C), lambda i: (0, 0)),        # Wq (scaled, bf16)
                pl.BlockSpec((C, C), lambda i: (0, 0)),        # Wk
                pl.BlockSpec((C, C), lambda i: (0, 0)),        # Wv
                pl.BlockSpec((C, C), lambda i: (0, 0)),        # Wproj
                pl.BlockSpec((1, C), lambda i: (0, 0)),        # proj bias
            ],
            out_specs=pl.BlockSpec((Bb * N, C), lambda i: (i, 0)),
        ),
        compiler_params=pltpu.CompilerParams(
            dimension_semantics=("parallel",)),
    )(x2, y2, wq_s, wk, wv, wp, bp2)

    return out2.reshape(B, N, C)


def attention_reference(x, y, wq_t, wkv_t, wp_t, bp, *, num_heads):
    """Pure-JAX f32 reference mirroring the PyTorch forward (sr_ratio=1, dropout p=0)."""
    B, N, C = x.shape
    hd = C // num_heads
    scale = hd ** (-0.5)
    q = (x @ wq_t).reshape(B, N, num_heads, hd).transpose(0, 2, 1, 3)          # (B,H,N,hd)
    kv = (y @ wkv_t).reshape(B, N, 2, num_heads, hd).transpose(2, 0, 3, 1, 4)  # (2,B,H,N,hd)
    k, v = kv[0], kv[1]
    attn = jnp.einsum("bhqd,bhkd->bhqk", q, k) * scale
    attn = jax.nn.softmax(attn, axis=-1)
    o = jnp.einsum("bhqk,bhkd->bhqd", attn, v)
    o = o.transpose(0, 2, 1, 3).reshape(B, N, C)
    return o @ wp_t + bp


if __name__ == "__main__":
    # module config: dim=32, num_heads=8, qkv_bias=False, sr_ratio=1
    B, N, C = 2, 64, 32
    num_heads = 8

    key = jax.random.PRNGKey(0)
    kx, ky, kq, kkv, kp, kb = jax.random.split(key, 6)

    x = jax.random.normal(kx, (B, N, C), dtype=jnp.float32)
    y = jax.random.normal(ky, (B, N, C), dtype=jnp.float32)

    # Deterministic synthetic parameters (PyTorch Linear weight is (out, in); stored transposed).
    wq_t = jax.random.normal(kq, (C, C), dtype=jnp.float32) * 0.08
    wkv_t = jax.random.normal(kkv, (C, 2 * C), dtype=jnp.float32) * 0.08
    wp_t = jax.random.normal(kp, (C, C), dtype=jnp.float32) * 0.08
    bp = jax.random.normal(kb, (C,), dtype=jnp.float32) * 0.05

    out = attention_pallas(x, y, wq_t, wkv_t, wp_t, bp, num_heads=num_heads)
    out = jax.block_until_ready(out)

    ref = attention_reference(x, y, wq_t, wkv_t, wp_t, bp, num_heads=num_heads)
    # bf16 MXU operands (f32 accumulation) => compare with a bf16-appropriate tolerance.
    if not jnp.allclose(out, ref, atol=2e-2, rtol=2e-2):
        raise AssertionError(
            f"mismatch: max abs err = {float(jnp.max(jnp.abs(out - ref)))}")

    print("KERNEL_OK")
</pallas_src>

<mosaic_0001>
module attributes {stable_mosaic.version = 11 : i64} {
  func.func @_attention_kernel(%arg0: i32, %arg1: memref<128x32xf32, #tpu.memory_space<vmem>>, %arg2: memref<128x32xf32, #tpu.memory_space<vmem>>, %arg3: memref<32x32xbf16, #tpu.memory_space<vmem>>, %arg4: memref<32x32xbf16, #tpu.memory_space<vmem>>, %arg5: memref<32x32xbf16, #tpu.memory_space<vmem>>, %arg6: memref<32x32xbf16, #tpu.memory_space<vmem>>, %arg7: memref<1x32xf32, #tpu.memory_space<vmem>>, %arg8: memref<128x32xf32, #tpu.memory_space<vmem>>) attributes {dimension_semantics = [#tpu.dimension_semantics<parallel>], iteration_bounds = array<i64: 1>, scalar_prefetch = 0 : i64, scratch_operands = 0 : i64, tpu.core_type = #tpu.core_type<tc>, window_params = [{transform_indices = @transform_0, window_bounds = array<i64: 128, 32>}, {transform_indices = @transform_1, window_bounds = array<i64: 128, 32>}, {pipeline_mode = #tpu.pipeline_mode<synchronous>, transform_indices = @transform_2, window_bounds = array<i64: 32, 32>}, {pipeline_mode = #tpu.pipeline_mode<synchronous>, transform_indices = @transform_3, window_bounds = array<i64: 32, 32>}, {pipeline_mode = #tpu.pipeline_mode<synchronous>, transform_indices = @transform_4, window_bounds = array<i64: 32, 32>}, {pipeline_mode = #tpu.pipeline_mode<synchronous>, transform_indices = @transform_5, window_bounds = array<i64: 32, 32>}, {pipeline_mode = #tpu.pipeline_mode<synchronous>, transform_indices = @transform_6, window_bounds = array<i64: 1, 32>}, {transform_indices = @transform_7, window_bounds = array<i64: 128, 32>}]} {
    %c0 = arith.constant 0 : index
    %c0_0 = arith.constant 0 : index
    %0 = vector.load %arg1[%c0, %c0_0] : memref<128x32xf32, #tpu.memory_space<vmem>>, vector<128x32xf32>
    %1 = arith.truncf %0 : vector<128x32xf32> to vector<128x32xbf16>
    %c0_1 = arith.constant 0 : index
    %c0_2 = arith.constant 0 : index
    %2 = vector.load %arg2[%c0_1, %c0_2] : memref<128x32xf32, #tpu.memory_space<vmem>>, vector<128x32xf32>
    %3 = arith.truncf %2 : vector<128x32xf32> to vector<128x32xbf16>
    %c0_3 = arith.constant 0 : index
    %c0_4 = arith.constant 0 : index
    %4 = vector.load %arg3[%c0_3, %c0_4] : memref<32x32xbf16, #tpu.memory_space<vmem>>, vector<32x32xbf16>
    %cst = arith.constant dense<0.000000e+00> : vector<128x32xf32>
    %5 = tpu.matmul %1, %4, %cst {dimension_numbers = #tpu.dot_dimension_numbers<[1], [0], [0], [1], [0, 0, 1, 1], [], []>} : vector<128x32xbf16>, vector<32x32xbf16>, vector<128x32xf32> -> vector<128x32xf32>
    %c0_5 = arith.constant 0 : index
    %c0_6 = arith.constant 0 : index
    %6 = vector.load %arg4[%c0_5, %c0_6] : memref<32x32xbf16, #tpu.memory_space<vmem>>, vector<32x32xbf16>
    %cst_7 = arith.constant dense<0.000000e+00> : vector<128x32xf32>
    %7 = tpu.matmul %3, %6, %cst_7 {dimension_numbers = #tpu.dot_dimension_numbers<[1], [0], [0], [1], [0, 0, 1, 1], [], []>} : vector<128x32xbf16>, vector<32x32xbf16>, vector<128x32xf32> -> vector<128x32xf32>
    %c0_8 = arith.constant 0 : index
    %c0_9 = arith.constant 0 : index
    %8 = vector.load %arg5[%c0_8, %c0_9] : memref<32x32xbf16, #tpu.memory_space<vmem>>, vector<32x32xbf16>
    %cst_10 = arith.constant dense<0.000000e+00> : vector<128x32xf32>
    %9 = tpu.matmul %3, %8, %cst_10 {dimension_numbers = #tpu.dot_dimension_numbers<[1], [0], [0], [1], [0, 0, 1, 1], [], []>} : vector<128x32xbf16>, vector<32x32xbf16>, vector<128x32xf32> -> vector<128x32xf32>
    %10 = vector.shape_cast %5 : vector<128x32xf32> to vector<2x64x32xf32>
    %11 = vector.extract_strided_slice %10 {offsets = [0, 0, 0], sizes = [2, 64, 4], strides = [1, 1, 1]} : vector<2x64x32xf32> to vector<2x64x4xf32>
    %12 = vector.extract_strided_slice %10 {offsets = [0, 0, 4], sizes = [2, 64, 4], strides = [1, 1, 1]} : vector<2x64x32xf32> to vector<2x64x4xf32>
    %13 = vector.extract_strided_slice %10 {offsets = [0, 0, 8], sizes = [2, 64, 4], strides = [1, 1, 1]} : vector<2x64x32xf32> to vector<2x64x4xf32>
    %14 = vector.extract_strided_slice %10 {offsets = [0, 0, 12], sizes = [2, 64, 4], strides = [1, 1, 1]} : vector<2x64x32xf32> to vector<2x64x4xf32>
    %15 = vector.extract_strided_slice %10 {offsets = [0, 0, 16], sizes = [2, 64, 4], strides = [1, 1, 1]} : vector<2x64x32xf32> to vector<2x64x4xf32>
    %16 = vector.extract_strided_slice %10 {offsets = [0, 0, 20], sizes = [2, 64, 4], strides = [1, 1, 1]} : vector<2x64x32xf32> to vector<2x64x4xf32>
    %17 = vector.extract_strided_slice %10 {offsets = [0, 0, 24], sizes = [2, 64, 4], strides = [1, 1, 1]} : vector<2x64x32xf32> to vector<2x64x4xf32>
    %18 = vector.extract_strided_slice %10 {offsets = [0, 0, 28], sizes = [2, 64, 4], strides = [1, 1, 1]} : vector<2x64x32xf32> to vector<2x64x4xf32>
    %19 = tpu.concatenate %11, %12, %13, %14, %15, %16, %17, %18 in 0 : vector<2x64x4xf32>, vector<2x64x4xf32>, vector<2x64x4xf32>, vector<2x64x4xf32>, vector<2x64x4xf32>, vector<2x64x4xf32>, vector<2x64x4xf32>, vector<2x64x4xf32> -> vector<16x64x4xf32>
    %20 = vector.shape_cast %7 : vector<128x32xf32> to vector<2x64x32xf32>
    %21 = vector.extract_strided_slice %20 {offsets = [0, 0, 0], sizes = [2, 64, 4], strides = [1, 1, 1]} : vector<2x64x32xf32> to vector<2x64x4xf32>
    %22 = vector.extract_strided_slice %20 {offsets = [0, 0, 4], sizes = [2, 64, 4], strides = [1, 1, 1]} : vector<2x64x32xf32> to vector<2x64x4xf32>
    %23 = vector.extract_strided_slice %20 {offsets = [0, 0, 8], sizes = [2, 64, 4], strides = [1, 1, 1]} : vector<2x64x32xf32> to vector<2x64x4xf32>
    %24 = vector.extract_strided_slice %20 {offsets = [0, 0, 12], sizes = [2, 64, 4], strides = [1, 1, 1]} : vector<2x64x32xf32> to vector<2x64x4xf32>
    %25 = vector.extract_strided_slice %20 {offsets = [0, 0, 16], sizes = [2, 64, 4], strides = [1, 1, 1]} : vector<2x64x32xf32> to vector<2x64x4xf32>
    %26 = vector.extract_strided_slice %20 {offsets = [0, 0, 20], sizes = [2, 64, 4], strides = [1, 1, 1]} : vector<2x64x32xf32> to vector<2x64x4xf32>
    %27 = vector.extract_strided_slice %20 {offsets = [0, 0, 24], sizes = [2, 64, 4], strides = [1, 1, 1]} : vector<2x64x32xf32> to vector<2x64x4xf32>
    %28 = vector.extract_strided_slice %20 {offsets = [0, 0, 28], sizes = [2, 64, 4], strides = [1, 1, 1]} : vector<2x64x32xf32> to vector<2x64x4xf32>
    %29 = tpu.concatenate %21, %22, %23, %24, %25, %26, %27, %28 in 0 : vector<2x64x4xf32>, vector<2x64x4xf32>, vector<2x64x4xf32>, vector<2x64x4xf32>, vector<2x64x4xf32>, vector<2x64x4xf32>, vector<2x64x4xf32>, vector<2x64x4xf32> -> vector<16x64x4xf32>
    %30 = vector.shape_cast %9 : vector<128x32xf32> to vector<2x64x32xf32>
    %31 = vector.extract_strided_slice %30 {offsets = [0, 0, 0], sizes = [2, 64, 4], strides = [1, 1, 1]} : vector<2x64x32xf32> to vector<2x64x4xf32>
    %32 = vector.extract_strided_slice %30 {offsets = [0, 0, 4], sizes = [2, 64, 4], strides = [1, 1, 1]} : vector<2x64x32xf32> to vector<2x64x4xf32>
    %33 = vector.extract_strided_slice %30 {offsets = [0, 0, 8], sizes = [2, 64, 4], strides = [1, 1, 1]} : vector<2x64x32xf32> to vector<2x64x4xf32>
    %34 = vector.extract_strided_slice %30 {offsets = [0, 0, 12], sizes = [2, 64, 4], strides = [1, 1, 1]} : vector<2x64x32xf32> to vector<2x64x4xf32>
    %35 = vector.extract_strided_slice %30 {offsets = [0, 0, 16], sizes = [2, 64, 4], strides = [1, 1, 1]} : vector<2x64x32xf32> to vector<2x64x4xf32>
    %36 = vector.extract_strided_slice %30 {offsets = [0, 0, 20], sizes = [2, 64, 4], strides = [1, 1, 1]} : vector<2x64x32xf32> to vector<2x64x4xf32>
    %37 = vector.extract_strided_slice %30 {offsets = [0, 0, 24], sizes = [2, 64, 4], strides = [1, 1, 1]} : vector<2x64x32xf32> to vector<2x64x4xf32>
    %38 = vector.extract_strided_slice %30 {offsets = [0, 0, 28], sizes = [2, 64, 4], strides = [1, 1, 1]} : vector<2x64x32xf32> to vector<2x64x4xf32>
    %39 = tpu.concatenate %31, %32, %33, %34, %35, %36, %37, %38 in 0 : vector<2x64x4xf32>, vector<2x64x4xf32>, vector<2x64x4xf32>, vector<2x64x4xf32>, vector<2x64x4xf32>, vector<2x64x4xf32>, vector<2x64x4xf32>, vector<2x64x4xf32> -> vector<16x64x4xf32>
    %40 = arith.truncf %19 : vector<16x64x4xf32> to vector<16x64x4xbf16>
    %41 = arith.truncf %29 : vector<16x64x4xf32> to vector<16x64x4xbf16>
    "tpu.trace_start"() <{level = 10 : i32, message = "znd,zmd->znm"}> : () -> ()
    %cst_11 = arith.constant dense<0.000000e+00> : vector<16x64x64xf32>
    %42 = tpu.matmul %40, %41, %cst_11 {dimension_numbers = #tpu.dot_dimension_numbers<[2], [2], [1], [1], [0, 0, 0, 1, 1, 1], [0], [0]>} : vector<16x64x4xbf16>, vector<16x64x4xbf16>, vector<16x64x64xf32> -> vector<16x64x64xf32>
    "tpu.trace_stop"() : () -> ()
    %cst_12 = arith.constant dense<0xFF800000> : vector<16x64xf32>
    %43 = vector.multi_reduction <maximumf>, %42, %cst_12 [2] : vector<16x64x64xf32> to vector<16x64xf32>
    %44 = vector.shape_cast %43 : vector<16x64xf32> to vector<16x64x1xf32>
    %45 = vector.broadcast %44 : vector<16x64x1xf32> to vector<16x64x64xf32>
    %46 = arith.subf %42, %45 : vector<16x64x64xf32>
    %47 = math.exp %46 : vector<16x64x64xf32>
    %cst_13 = arith.constant dense<0.000000e+00> : vector<16x64xf32>
    %48 = vector.multi_reduction <add>, %47, %cst_13 [2] : vector<16x64x64xf32> to vector<16x64xf32>
    %49 = vector.shape_cast %48 : vector<16x64xf32> to vector<16x64x1xf32>
    %50 = tpu.reciprocal %49 {approx = true} : vector<16x64x1xf32> -> vector<16x64x1xf32>
    %51 = vector.broadcast %50 : vector<16x64x1xf32> to vector<16x64x64xf32>
    %52 = arith.mulf %47, %51 : vector<16x64x64xf32>
    %53 = arith.truncf %52 : vector<16x64x64xf32> to vector<16x64x64xbf16>
    %54 = arith.truncf %39 : vector<16x64x4xf32> to vector<16x64x4xbf16>
    "tpu.trace_start"() <{level = 10 : i32, message = "znm,zmd->znd"}> : () -> ()
    %cst_14 = arith.constant dense<0.000000e+00> : vector<16x64x4xf32>
    %55 = tpu.matmul %53, %54, %cst_14 {dimension_numbers = #tpu.dot_dimension_numbers<[2], [1], [1], [2], [0, 0, 0, 1, 1, 2], [0], [0]>} : vector<16x64x64xbf16>, vector<16x64x4xbf16>, vector<16x64x4xf32> -> vector<16x64x4xf32>
    "tpu.trace_stop"() : () -> ()
    %56 = vector.shape_cast %55 : vector<16x64x4xf32> to vector<8x2x64x4xf32>
    %57 = vector.extract_strided_slice %56 {offsets = [0, 0, 0, 0], sizes = [1, 2, 64, 4], strides = [1, 1, 1, 1]} : vector<8x2x64x4xf32> to vector<1x2x64x4xf32>
    %58 = vector.shape_cast %57 : vector<1x2x64x4xf32> to vector<2x64x4xf32>
    %59 = vector.extract_strided_slice %56 {offsets = [1, 0, 0, 0], sizes = [1, 2, 64, 4], strides = [1, 1, 1, 1]} : vector<8x2x64x4xf32> to vector<1x2x64x4xf32>
    %60 = vector.shape_cast %59 : vector<1x2x64x4xf32> to vector<2x64x4xf32>
    %61 = vector.extract_strided_slice %56 {offsets = [2, 0, 0, 0], sizes = [1, 2, 64, 4], strides = [1, 1, 1, 1]} : vector<8x2x64x4xf32> to vector<1x2x64x4xf32>
    %62 = vector.shape_cast %61 : vector<1x2x64x4xf32> to vector<2x64x4xf32>
    %63 = vector.extract_strided_slice %56 {offsets = [3, 0, 0, 0], sizes = [1, 2, 64, 4], strides = [1, 1, 1, 1]} : vector<8x2x64x4xf32> to vector<1x2x64x4xf32>
    %64 = vector.shape_cast %63 : vector<1x2x64x4xf32> to vector<2x64x4xf32>
    %65 = vector.extract_strided_slice %56 {offsets = [4, 0, 0, 0], sizes = [1, 2, 64, 4], strides = [1, 1, 1, 1]} : vector<8x2x64x4xf32> to vector<1x2x64x4xf32>
    %66 = vector.shape_cast %65 : vector<1x2x64x4xf32> to vector<2x64x4xf32>
    %67 = vector.extract_strided_slice %56 {offsets = [5, 0, 0, 0], sizes = [1, 2, 64, 4], strides = [1, 1, 1, 1]} : vector<8x2x64x4xf32> to vector<1x2x64x4xf32>
    %68 = vector.shape_cast %67 : vector<1x2x64x4xf32> to vector<2x64x4xf32>
    %69 = vector.extract_strided_slice %56 {offsets = [6, 0, 0, 0], sizes = [1, 2, 64, 4], strides = [1, 1, 1, 1]} : vector<8x2x64x4xf32> to vector<1x2x64x4xf32>
    %70 = vector.shape_cast %69 : vector<1x2x64x4xf32> to vector<2x64x4xf32>
    %71 = vector.extract_strided_slice %56 {offsets = [7, 0, 0, 0], sizes = [1, 2, 64, 4], strides = [1, 1, 1, 1]} : vector<8x2x64x4xf32> to vector<1x2x64x4xf32>
    %72 = vector.shape_cast %71 : vector<1x2x64x4xf32> to vector<2x64x4xf32>
    %73 = tpu.concatenate %58, %60, %62, %64, %66, %68, %70, %72 in 2 : vector<2x64x4xf32>, vector<2x64x4xf32>, vector<2x64x4xf32>, vector<2x64x4xf32>, vector<2x64x4xf32>, vector<2x64x4xf32>, vector<2x64x4xf32>, vector<2x64x4xf32> -> vector<2x64x32xf32>
    %74 = vector.shape_cast %73 : vector<2x64x32xf32> to vector<128x32xf32>
    %75 = arith.truncf %74 : vector<128x32xf32> to vector<128x32xbf16>
    %c0_15 = arith.constant 0 : index
    %c0_16 = arith.constant 0 : index
    %76 = vector.load %arg6[%c0_15, %c0_16] : memref<32x32xbf16, #tpu.memory_space<vmem>>, vector<32x32xbf16>
    %cst_17 = arith.constant dense<0.000000e+00> : vector<128x32xf32>
    %77 = tpu.matmul %75, %76, %cst_17 {dimension_numbers = #tpu.dot_dimension_numbers<[1], [0], [0], [1], [0, 0, 1, 1], [], []>} : vector<128x32xbf16>, vector<32x32xbf16>, vector<128x32xf32> -> vector<128x32xf32>
    %c0_18 = arith.constant 0 : index
    %c0_19 = arith.constant 0 : index
    %78 = vector.load %arg7[%c0_18, %c0_19] : memref<1x32xf32, #tpu.memory_space<vmem>>, vector<1x32xf32>
    %79 = vector.broadcast %78 : vector<1x32xf32> to vector<128x32xf32>
    %80 = arith.addf %77, %79 : vector<128x32xf32>
    %c0_20 = arith.constant 0 : index
    %c0_21 = arith.constant 0 : index
    %81 = vector.load %arg8[%c0_20, %c0_21] : memref<128x32xf32, #tpu.memory_space<vmem>>, vector<128x32xf32>
    tpu.vector_store %arg8[%c0_20, %c0_21], %80 {strides = array<i32>} : memref<128x32xf32, #tpu.memory_space<vmem>>, vector<128x32xf32>,
    return
  }
  func.func @transform_0(%arg0: i32) -> (i32, i32) {
    %c0_i32 = arith.constant 0 : i32
    %c0_i32_0 = arith.constant 0 : i32
    return %arg0, %c0_i32 : i32, i32
  }
  func.func @transform_1(%arg0: i32) -> (i32, i32) {
    %c0_i32 = arith.constant 0 : i32
    %c0_i32_0 = arith.constant 0 : i32
    return %arg0, %c0_i32 : i32, i32
  }
  func.func @transform_2(%arg0: i32) -> (i32, i32) {
    %c0_i32 = arith.constant 0 : i32
    %c0_i32_0 = arith.constant 0 : i32
    %c0_i32_1 = arith.constant 0 : i32
    return %c0_i32, %c0_i32_0 : i32, i32
  }
  func.func @transform_3(%arg0: i32) -> (i32, i32) {
    %c0_i32 = arith.constant 0 : i32
    %c0_i32_0 = arith.constant 0 : i32
    %c0_i32_1 = arith.constant 0 : i32
    return %c0_i32, %c0_i32_0 : i32, i32
  }
  func.func @transform_4(%arg0: i32) -> (i32, i32) {
    %c0_i32 = arith.constant 0 : i32
    %c0_i32_0 = arith.constant 0 : i32
    %c0_i32_1 = arith.constant 0 : i32
    return %c0_i32, %c0_i32_0 : i32, i32
  }
  func.func @transform_5(%arg0: i32) -> (i32, i32) {
    %c0_i32 = arith.constant 0 : i32
    %c0_i32_0 = arith.constant 0 : i32
    %c0_i32_1 = arith.constant 0 : i32
    return %c0_i32, %c0_i32_0 : i32, i32
  }
  func.func @transform_6(%arg0: i32) -> (i32, i32) {
    %c0_i32 = arith.constant 0 : i32
    %c0_i32_0 = arith.constant 0 : i32
    %c0_i32_1 = arith.constant 0 : i32
    return %c0_i32, %c0_i32_0 : i32, i32
  }
  func.func @transform_7(%arg0: i32) -> (i32, i32) {
    %c0_i32 = arith.constant 0 : i32
    %c0_i32_0 = arith.constant 0 : i32
    return %arg0, %c0_i32 : i32, i32
  }
}

</mosaic_0001>

<llo_original>
// kernel: tpu_custom_call.1
$region0: #{tpu_custom_call.1}
  #allocation0 [shape = 'u32[]', space=smem, size = 0x4, offset = 0x4, fixed_abs, tag = 'smem constant byte address 0x4 - core index']
  #allocation1 [shape = 'u32[144,128]{1,0:T(1,128)}', space=vmem, size = 0x12000, scoped, tag = 'internal scratch']
  %s0 = inlined_call_operand.vmem [shape: f32[128,32], index: 0, kind: input, shape index: {}]
  %s1 = inlined_call_operand.vmem [shape: f32[128,32], index: 1, kind: input, shape index: {}]
  %s2 = inlined_call_operand.vmem [shape: bf16[32,32], index: 2, kind: input, shape index: {}]
  %s3 = inlined_call_operand.vmem [shape: bf16[32,32], index: 3, kind: input, shape index: {}]
  %s4 = inlined_call_operand.vmem [shape: bf16[32,32], index: 4, kind: input, shape index: {}]
  %s5 = inlined_call_operand.vmem [shape: bf16[32,32], index: 5, kind: input, shape index: {}]
  %s6 = inlined_call_operand.vmem [shape: f32[1,32], index: 6, kind: input, shape index: {}]
  %s7 = inlined_call_operand.vmem [shape: f32[128,32], index: 7, kind: output, shape index: {}]
  %s8 = sld [smem:[#allocation0]]
  $region38: #{tpu_custom_call.1} parent=0
    _
  %s10 = ssub.s32 1, %s8
  %s11 = scalar_select 0, %s10, %s8
  // Predicated region
  $region2: #{tpu_custom_call.1} parent=0 // pred_check
    _
  $region3: #{tpu_custom_call.1} parent=0 // pred_check_branch
    %13 = sbr.rel (0) target = $region5
  $region4: #{tpu_custom_call.1} parent=0 // pred_region
    _
  $region5: #{tpu_custom_call.1} parent=0 // pred_fallthru
    _
  // Predicated region
  $region6: #{tpu_custom_call.1} parent=0 // pred_check
    _
  $region7: #{tpu_custom_call.1} parent=0 // pred_check_branch
    %15 = sbr.rel (0) target = $region9
  $region8: #{tpu_custom_call.1} parent=0 // pred_region
    _
  $region9: #{tpu_custom_call.1} parent=0 // pred_fallthru
    _
  // Predicated region
  $region10: #{tpu_custom_call.1} parent=0 // pred_check
    _
  $region11: #{tpu_custom_call.1} parent=0 // pred_check_branch
    %17 = sbr.rel (0) target = $region13
  $region12: #{tpu_custom_call.1} parent=0 // pred_region
    _
  $region13: #{tpu_custom_call.1} parent=0 // pred_fallthru
    _
  // Predicated region
  $region14: #{tpu_custom_call.1} parent=0 // pred_check
    _
  $region15: #{tpu_custom_call.1} parent=0 // pred_check_branch
    %19 = sbr.rel (0) target = $region17
  $region16: #{tpu_custom_call.1} parent=0 // pred_region
    _
  $region17: #{tpu_custom_call.1} parent=0 // pred_fallthru
    _
  // Predicated region
  $region18: #{tpu_custom_call.1} parent=0 // pred_check
    _
  $region19: #{tpu_custom_call.1} parent=0 // pred_check_branch
    %21 = sbr.rel (0) target = $region21
  $region20: #{tpu_custom_call.1} parent=0 // pred_region
    _
  $region21: #{tpu_custom_call.1} parent=0 // pred_fallthru
    _
  // Predicated region
  $region22: #{tpu_custom_call.1} parent=0 // pred_check
    _
  $region23: #{tpu_custom_call.1} parent=0 // pred_check_branch
    %23 = sbr.rel (0) target = $region25
  $region24: #{tpu_custom_call.1} parent=0 // pred_region
    _
  $region25: #{tpu_custom_call.1} parent=0 // pred_fallthru
    _
  // Predicated region
  $region26: #{tpu_custom_call.1} parent=0 // pred_check
    _
  $region27: #{tpu_custom_call.1} parent=0 // pred_check_branch
    %25 = sbr.rel (0) target = $region29
  $region28: #{tpu_custom_call.1} parent=0 // pred_region
    _
  $region29: #{tpu_custom_call.1} parent=0 // pred_fallthru
    _
  %v27 = vld [vmem:[%s0] sm:$0xff]
  %v28 = vld [vmem:[%s0 + $0x8] sm:$0xff]
  %v29 = vld [vmem:[%s0 + $0x10] sm:$0xff]
  %v30 = vld [vmem:[%s0 + $0x18] sm:$0xff]
  %v31 = vld [vmem:[%s0 + $0x20] sm:$0xff]
  %v32 = vld [vmem:[%s0 + $0x28] sm:$0xff]
  %v33 = vld [vmem:[%s0 + $0x30] sm:$0xff]
  %v34 = vld [vmem:[%s0 + $0x38] sm:$0xff]
  %v35 = vld [vmem:[%s0 + $0x40] sm:$0xff]
  %v36 = vld [vmem:[%s0 + $0x48] sm:$0xff]
  %v37 = vld [vmem:[%s0 + $0x50] sm:$0xff]
  %v38 = vld [vmem:[%s0 + $0x58] sm:$0xff]
  %v39 = vld [vmem:[%s0 + $0x60] sm:$0xff]
  %v40 = vld [vmem:[%s0 + $0x68] sm:$0xff]
  %v41 = vld [vmem:[%s0 + $0x70] sm:$0xff]
  %v42 = vld [vmem:[%s0 + $0x78] sm:$0xff]
  %v43 = vpack.c.bf16 %v28, %v27
  %v44 = vpack.c.bf16 %v30, %v29
  %v45 = vpack.c.bf16 %v32, %v31
  %v46 = vpack.c.bf16 %v34, %v33
  %v47 = vpack.c.bf16 %v36, %v35
  %v48 = vpack.c.bf16 %v38, %v37
  %v49 = vpack.c.bf16 %v40, %v39
  %v50 = vpack.c.bf16 %v42, %v41
  %v51 = vld [vmem:[%s1] sm:$0xff]
  %v52 = vld [vmem:[%s1 + $0x8] sm:$0xff]
  %v53 = vld [vmem:[%s1 + $0x10] sm:$0xff]
  %v54 = vld [vmem:[%s1 + $0x18] sm:$0xff]
  %v55 = vld [vmem:[%s1 + $0x20] sm:$0xff]
  %v56 = vld [vmem:[%s1 + $0x28] sm:$0xff]
  %v57 = vld [vmem:[%s1 + $0x30] sm:$0xff]
  %v58 = vld [vmem:[%s1 + $0x38] sm:$0xff]
  %v59 = vld [vmem:[%s1 + $0x40] sm:$0xff]
  %v60 = vld [vmem:[%s1 + $0x48] sm:$0xff]
  %v61 = vld [vmem:[%s1 + $0x50] sm:$0xff]
  %v62 = vld [vmem:[%s1 + $0x58] sm:$0xff]
  %v63 = vld [vmem:[%s1 + $0x60] sm:$0xff]
  %v64 = vld [vmem:[%s1 + $0x68] sm:$0xff]
  %v65 = vld [vmem:[%s1 + $0x70] sm:$0xff]
  %v66 = vld [vmem:[%s1 + $0x78] sm:$0xff]
  %v67 = vpack.c.bf16 %v52, %v51
  %v68 = vpack.c.bf16 %v54, %v53
  %v69 = vpack.c.bf16 %v56, %v55
  %v70 = vpack.c.bf16 %v58, %v57
  %v71 = vpack.c.bf16 %v60, %v59
  %v72 = vpack.c.bf16 %v62, %v61
  %v73 = vpack.c.bf16 %v64, %v63
  %v74 = vpack.c.bf16 %v66, %v65
  %v75 = vld [vmem:[%s2] sm:$0xf]
  %v76 = vld [vmem:[%s2 + $0x4] sm:$0xf]
  %v77 = vld [vmem:[%s2 + $0x8] sm:$0xf]
  %v78 = vld [vmem:[%s2 + $0xc] sm:$0xf]
  %v83 = vunpack.c.l.b16 %v75
  %v84 = vunpack.c.l.b16 %v76
  %v85 = vunpack.c.l.b16 %v77
  %v86 = vunpack.c.l.b16 %v78
  %v87 = vpack.c.b16 %v84, %v83
  %v88 = vpack.c.b16 %v86, %v85
  %vm91 = vcmask 261120
  %v93 = vsel %vm91, %v43, 0
  %v96 = vsel %vm91, %v44, 0
  %v99 = vsel %vm91, %v45, 0
  %v102 = vsel %vm91, %v46, 0
  %v105 = vsel %vm91, %v47, 0
  %v108 = vsel %vm91, %v48, 0
  %v111 = vsel %vm91, %v49, 0
  %v114 = vsel %vm91, %v50, 0
  %116 = vmatprep.subr.bf16.mxu0 0
  %117 = vmatpush1.bf16.msra.mxu0 %v87
  %118 = vmatprep.subr.bf16.mxu0 0
  %119 = vmatpush1.bf16.msra.mxu0 %v88
  %120 = vmatprep.subr.bf16.mxu0 0
  %121 = vmatpush1.bf16.msra.mxu0 0
  %122 = vmatprep.subr.bf16.mxu0 0
  %123 = vmatpush1.bf16.msra.mxu0 0
  %124 = vmatprep.subr.bf16.mxu0 0
  %125 = vmatpush1.bf16.msra.mxu0 0
  %126 = vmatprep.subr.bf16.mxu0 0
  %127 = vmatpush1.bf16.msra.mxu0 0
  %128 = vmatprep.subr.bf16.mxu0 0
  %129 = vmatpush1.bf16.msra.mxu0 0
  %130 = vmatprep.subr.bf16.mxu0 0
  %131 = vmatpush1.bf16.msra.mxu0 0
  %132 = vmatprep.subr.bf16.mxu0 0
  %133 = vmatpush1.bf16.msra.mxu0 0
  %134 = vmatprep.subr.bf16.mxu0 0
  %135 = vmatpush1.bf16.msra.mxu0 0
  %136 = vmatprep.subr.bf16.mxu0 0
  %137 = vmatpush1.bf16.msra.mxu0 0
  %138 = vmatprep.subr.bf16.mxu0 0
  %139 = vmatpush1.bf16.msra.mxu0 0
  %140 = vmatprep.subr.bf16.mxu0 0
  %141 = vmatpush1.bf16.msra.mxu0 0
  %142 = vmatprep.subr.bf16.mxu0 0
  %143 = vmatpush1.bf16.msra.mxu0 0
  %144 = vmatprep.subr.bf16.mxu0 0
  %145 = vmatpush1.bf16.msra.mxu0 0
  %146 = vmatprep.subr.bf16.mxu0 0
  %147 = vmatpush1.bf16.msra.mxu0 0
  %148 = vmatprep.mubr.bf16.mxu0 0
  %149 = vmatmul.mubr.bf16.gmra.mrb[0].mxu0 %v93
  %v150 = vpop.f32.mrb[0].mxu0
  %v151 = vadd.f32 0.0, %v150
  %v152 = vpop.f32.mrb[0].mxu0
  %v153 = vpop.f32.mrb[0].mxu0
  %v154 = vadd.f32 0.0, %v153
  %v155 = vpop.f32.mrb[0].mxu0
  %156 = vmatprep.mubr.bf16.mxu0 0
  %157 = vmatmul.mubr.bf16.gmra.mrb[0].mxu0 %v96
  %v158 = vpop.f32.mrb[0].mxu0
  %v159 = vadd.f32 0.0, %v158
  %v160 = vpop.f32.mrb[0].mxu0
  %v161 = vpop.f32.mrb[0].mxu0
  %v162 = vadd.f32 0.0, %v161
  %v163 = vpop.f32.mrb[0].mxu0
  %164 = vmatprep.mubr.bf16.mxu0 0
  %165 = vmatmul.mubr.bf16.gmra.mrb[0].mxu0 %v99
  %v166 = vpop.f32.mrb[0].mxu0
  %v167 = vadd.f32 0.0, %v166
  %v168 = vpop.f32.mrb[0].mxu0
  %v169 = vpop.f32.mrb[0].mxu0
  %v170 = vadd.f32 0.0, %v169
  %v171 = vpop.f32.mrb[0].mxu0
  %172 = vmatprep.mubr.bf16.mxu0 0
  %173 = vmatmul.mubr.bf16.gmra.mrb[0].mxu0 %v102
  %v174 = vpop.f32.mrb[0].mxu0
  %v175 = vadd.f32 0.0, %v174
  %v176 = vpop.f32.mrb[0].mxu0
  %v177 = vpop.f32.mrb[0].mxu0
  %v178 = vadd.f32 0.0, %v177
  %v179 = vpop.f32.mrb[0].mxu0
  %180 = vmatprep.mubr.bf16.mxu0 0
  %181 = vmatmul.mubr.bf16.gmra.mrb[0].mxu0 %v105
  %v182 = vpop.f32.mrb[0].mxu0
  %v183 = vadd.f32 0.0, %v182
  %v184 = vpop.f32.mrb[0].mxu0
  %v185 = vpop.f32.mrb[0].mxu0
  %v186 = vadd.f32 0.0, %v185
  %v187 = vpop.f32.mrb[0].mxu0
  %188 = vmatprep.mubr.bf16.mxu0 0
  %189 = vmatmul.mubr.bf16.gmra.mrb[0].mxu0 %v108
  %v190 = vpop.f32.mrb[0].mxu0
  %v191 = vadd.f32 0.0, %v190
  %v192 = vpop.f32.mrb[0].mxu0
  %v193 = vpop.f32.mrb[0].mxu0
  %v194 = vadd.f32 0.0, %v193
  %v195 = vpop.f32.mrb[0].mxu0
  %196 = vmatprep.mubr.bf16.mxu0 0
  %197 = vmatmul.mubr.bf16.gmra.mrb[0].mxu0 %v111
  %v198 = vpop.f32.mrb[0].mxu0
  %v199 = vadd.f32 0.0, %v198
  %v200 = vpop.f32.mrb[0].mxu0
  %v201 = vpop.f32.mrb[0].mxu0
  %v202 = vadd.f32 0.0, %v201
  %v203 = vpop.f32.mrb[0].mxu0
  %204 = vmatprep.mubr.bf16.mxu0 0
  %205 = vmatmul.mubr.bf16.gmra.mrb[0].mxu0 %v114
  %v206 = vpop.f32.mrb[0].mxu0
  %v207 = vadd.f32 0.0, %v206
  %v208 = vpop.f32.mrb[0].mxu0
  %v209 = vpop.f32.mrb[0].mxu0
  %v210 = vadd.f32 0.0, %v209
  %v211 = vpop.f32.mrb[0].mxu0
  %212 = vdwg.mxu0
  %v213 = vld [vmem:[%s3] sm:$0xf]
  %v214 = vld [vmem:[%s3 + $0x4] sm:$0xf]
  %v215 = vld [vmem:[%s3 + $0x8] sm:$0xf]
  %v216 = vld [vmem:[%s3 + $0xc] sm:$0xf]
  %v221 = vunpack.c.l.b16 %v213
  %v222 = vunpack.c.l.b16 %v214
  %v223 = vunpack.c.l.b16 %v215
  %v224 = vunpack.c.l.b16 %v216
  %v225 = vpack.c.b16 %v222, %v221
  %v226 = vpack.c.b16 %v224, %v223
  %v230 = vsel %vm91, %v67, 0
  %v233 = vsel %vm91, %v68, 0
  %v236 = vsel %vm91, %v69, 0
  %v239 = vsel %vm91, %v70, 0
  %v242 = vsel %vm91, %v71, 0
  %v245 = vsel %vm91, %v72, 0
  %v248 = vsel %vm91, %v73, 0
  %v251 = vsel %vm91, %v74, 0
  %253 = vmatprep.subr.bf16.mxu0 0
  %254 = vmatpush1.bf16.msra.mxu0 %v225
  %255 = vmatprep.subr.bf16.mxu0 0
  %256 = vmatpush1.bf16.msra.mxu0 %v226
  %257 = vmatprep.subr.bf16.mxu0 0
  %258 = vmatpush1.bf16.msra.mxu0 0
  %259 = vmatprep.subr.bf16.mxu0 0
  %260 = vmatpush1.bf16.msra.mxu0 0
  %261 = vmatprep.subr.bf16.mxu0 0
  %262 = vmatpush1.bf16.msra.mxu0 0
  %263 = vmatprep.subr.bf16.mxu0 0
  %264 = vmatpush1.bf16.msra.mxu0 0
  %265 = vmatprep.subr.bf16.mxu0 0
  %266 = vmatpush1.bf16.msra.mxu0 0
  %267 = vmatprep.subr.bf16.mxu0 0
  %268 = vmatpush1.bf16.msra.mxu0 0
  %269 = vmatprep.subr.bf16.mxu0 0
  %270 = vmatpush1.bf16.msra.mxu0 0
  %271 = vmatprep.subr.bf16.mxu0 0
  %272 = vmatpush1.bf16.msra.mxu0 0
  %273 = vmatprep.subr.bf16.mxu0 0
  %274 = vmatpush1.bf16.msra.mxu0 0
  %275 = vmatprep.subr.bf16.mxu0 0
  %276 = vmatpush1.bf16.msra.mxu0 0
  %277 = vmatprep.subr.bf16.mxu0 0
  %278 = vmatpush1.bf16.msra.mxu0 0
  %279 = vmatprep.subr.bf16.mxu0 0
  %280 = vmatpush1.bf16.msra.mxu0 0
  %281 = vmatprep.subr.bf16.mxu0 0
  %282 = vmatpush1.bf16.msra.mxu0 0
  %283 = vmatprep.subr.bf16.mxu0 0
  %284 = vmatpush1.bf16.msra.mxu0 0
  %285 = vmatprep.mubr.bf16.mxu0 0
  %286 = vmatmul.mubr.bf16.gmra.mrb[0].mxu0 %v230
  %v287 = vpop.f32.mrb[0].mxu0
  %v288 = vadd.f32 0.0, %v287
  %v289 = vpop.f32.mrb[0].mxu0
  %v290 = vpop.f32.mrb[0].mxu0
  %v291 = vadd.f32 0.0, %v290
  %v292 = vpop.f32.mrb[0].mxu0
  %293 = vmatprep.mubr.bf16.mxu0 0
  %294 = vmatmul.mubr.bf16.gmra.mrb[0].mxu0 %v233
  %v295 = vpop.f32.mrb[0].mxu0
  %v296 = vadd.f32 0.0, %v295
  %v297 = vpop.f32.mrb[0].mxu0
  %v298 = vpop.f32.mrb[0].mxu0
  %v299 = vadd.f32 0.0, %v298
  %v300 = vpop.f32.mrb[0].mxu0
  %301 = vmatprep.mubr.bf16.mxu0 0
  %302 = vmatmul.mubr.bf16.gmra.mrb[0].mxu0 %v236
  %v303 = vpop.f32.mrb[0].mxu0
  %v304 = vadd.f32 0.0, %v303
  %v305 = vpop.f32.mrb[0].mxu0
  %v306 = vpop.f32.mrb[0].mxu0
  %v307 = vadd.f32 0.0, %v306
  %v308 = vpop.f32.mrb[0].mxu0
  %309 = vmatprep.mubr.bf16.mxu0 0
  %310 = vmatmul.mubr.bf16.gmra.mrb[0].mxu0 %v239
  %v311 = vpop.f32.mrb[0].mxu0
  %v312 = vadd.f32 0.0, %v311
  %v313 = vpop.f32.mrb[0].mxu0
  %v314 = vpop.f32.mrb[0].mxu0
  %v315 = vadd.f32 0.0, %v314
  %v316 = vpop.f32.mrb[0].mxu0
  %317 = vmatprep.mubr.bf16.mxu0 0
  %318 = vmatmul.mubr.bf16.gmra.mrb[0].mxu0 %v242
  %v319 = vpop.f32.mrb[0].mxu0
  %v320 = vadd.f32 0.0, %v319
  %v321 = vpop.f32.mrb[0].mxu0
  %v322 = vpop.f32.mrb[0].mxu0
  %v323 = vadd.f32 0.0, %v322
  %v324 = vpop.f32.mrb[0].mxu0
  %325 = vmatprep.mubr.bf16.mxu0 0
  %326 = vmatmul.mubr.bf16.gmra.mrb[0].mxu0 %v245
  %v327 = vpop.f32.mrb[0].mxu0
  %v328 = vadd.f32 0.0, %v327
  %v329 = vpop.f32.mrb[0].mxu0
  %v330 = vpop.f32.mrb[0].mxu0
  %v331 = vadd.f32 0.0, %v330
  %v332 = vpop.f32.mrb[0].mxu0
  %333 = vmatprep.mubr.bf16.mxu0 0
  %334 = vmatmul.mubr.bf16.gmra.mrb[0].mxu0 %v248
  %v335 = vpop.f32.mrb[0].mxu0
  %v336 = vadd.f32 0.0, %v335
  %v337 = vpop.f32.mrb[0].mxu0
  %v338 = vpop.f32.mrb[0].mxu0
  %v339 = vadd.f32 0.0, %v338
  %v340 = vpop.f32.mrb[0].mxu0
  %341 = vmatprep.mubr.bf16.mxu0 0
  %342 = vmatmul.mubr.bf16.gmra.mrb[0].mxu0 %v251
  %v343 = vpop.f32.mrb[0].mxu0
  %v344 = vadd.f32 0.0, %v343
  %v345 = vpop.f32.mrb[0].mxu0
  %v346 = vpop.f32.mrb[0].mxu0
  %v347 = vadd.f32 0.0, %v346
  %v348 = vpop.f32.mrb[0].mxu0
  %349 = vdwg.mxu0
  %v350 = vld [vmem:[%s4] sm:$0xf]
  %v351 = vld [vmem:[%s4 + $0x4] sm:$0xf]
  %v352 = vld [vmem:[%s4 + $0x8] sm:$0xf]
  %v353 = vld [vmem:[%s4 + $0xc] sm:$0xf]
  %v358 = vunpack.c.l.b16 %v350
  %v359 = vunpack.c.l.b16 %v351
  %v360 = vunpack.c.l.b16 %v352
  %v361 = vunpack.c.l.b16 %v353
  %v362 = vpack.c.b16 %v359, %v358
  %v363 = vpack.c.b16 %v361, %v360
  %366 = vmatprep.subr.bf16.mxu0 0
  %367 = vmatpush1.bf16.msra.mxu0 %v362
  %368 = vmatprep.subr.bf16.mxu0 0
  %369 = vmatpush1.bf16.msra.mxu0 %v363
  %370 = vmatprep.subr.bf16.mxu0 0
  %371 = vmatpush1.bf16.msra.mxu0 0
  %372 = vmatprep.subr.bf16.mxu0 0
  %373 = vmatpush1.bf16.msra.mxu0 0
  %374 = vmatprep.subr.bf16.mxu0 0
  %375 = vmatpush1.bf16.msra.mxu0 0
  %376 = vmatprep.subr.bf16.mxu0 0
  %377 = vmatpush1.bf16.msra.mxu0 0
  %378 = vmatprep.subr.bf16.mxu0 0
  %379 = vmatpush1.bf16.msra.mxu0 0
  %380 = vmatprep.subr.bf16.mxu0 0
  %381 = vmatpush1.bf16.msra.mxu0 0
  %382 = vmatprep.subr.bf16.mxu0 0
  %383 = vmatpush1.bf16.msra.mxu0 0
  %384 = vmatprep.subr.bf16.mxu0 0
  %385 = vmatpush1.bf16.msra.mxu0 0
  %386 = vmatprep.subr.bf16.mxu0 0
  %387 = vmatpush1.bf16.msra.mxu0 0
  %388 = vmatprep.subr.bf16.mxu0 0
  %389 = vmatpush1.bf16.msra.mxu0 0
  %390 = vmatprep.subr.bf16.mxu0 0
  %391 = vmatpush1.bf16.msra.mxu0 0
  %392 = vmatprep.subr.bf16.mxu0 0
  %393 = vmatpush1.bf16.msra.mxu0 0
  %394 = vmatprep.subr.bf16.mxu0 0
  %395 = vmatpush1.bf16.msra.mxu0 0
  %396 = vmatprep.subr.bf16.mxu0 0
  %397 = vmatpush1.bf16.msra.mxu0 0
  %398 = vmatprep.mubr.bf16.mxu0 0
  %399 = vmatmul.mubr.bf16.gmra.mrb[0].mxu0 %v230
  %v400 = vpop.f32.mrb[0].mxu0
  %v401 = vadd.f32 0.0, %v400
  %v402 = vpop.f32.mrb[0].mxu0
  %v403 = vpop.f32.mrb[0].mxu0
  %v404 = vadd.f32 0.0, %v403
  %v405 = vpop.f32.mrb[0].mxu0
  %406 = vmatprep.mubr.bf16.mxu0 0
  %407 = vmatmul.mubr.bf16.gmra.mrb[0].mxu0 %v233
  %v408 = vpop.f32.mrb[0].mxu0
  %v409 = vadd.f32 0.0, %v408
  %v410 = vpop.f32.mrb[0].mxu0
  %v411 = vpop.f32.mrb[0].mxu0
  %v412 = vadd.f32 0.0, %v411
  %v413 = vpop.f32.mrb[0].mxu0
  %414 = vmatprep.mubr.bf16.mxu0 0
  %415 = vmatmul.mubr.bf16.gmra.mrb[0].mxu0 %v236
  %v416 = vpop.f32.mrb[0].mxu0
  %v417 = vadd.f32 0.0, %v416
  %v418 = vpop.f32.mrb[0].mxu0
  %v419 = vpop.f32.mrb[0].mxu0
  %v420 = vadd.f32 0.0, %v419
  %v421 = vpop.f32.mrb[0].mxu0
  %422 = vmatprep.mubr.bf16.mxu0 0
  %423 = vmatmul.mubr.bf16.gmra.mrb[0].mxu0 %v239
  %v424 = vpop.f32.mrb[0].mxu0
  %v425 = vadd.f32 0.0, %v424
  %v426 = vpop.f32.mrb[0].mxu0
  %v427 = vpop.f32.mrb[0].mxu0
  %v428 = vadd.f32 0.0, %v427
  %v429 = vpop.f32.mrb[0].mxu0
  %430 = vmatprep.mubr.bf16.mxu0 0
  %431 = vmatmul.mubr.bf16.gmra.mrb[0].mxu0 %v242
  %v432 = vpop.f32.mrb[0].mxu0
  %v433 = vadd.f32 0.0, %v432
  %v434 = vpop.f32.mrb[0].mxu0
  %v435 = vpop.f32.mrb[0].mxu0
  %v436 = vadd.f32 0.0, %v435
  %v437 = vpop.f32.mrb[0].mxu0
  %438 = vmatprep.mubr.bf16.mxu0 0
  %439 = vmatmul.mubr.bf16.gmra.mrb[0].mxu0 %v245
  %v440 = vpop.f32.mrb[0].mxu0
  %v441 = vadd.f32 0.0, %v440
  %v442 = vpop.f32.mrb[0].mxu0
  %v443 = vpop.f32.mrb[0].mxu0
  %v444 = vadd.f32 0.0, %v443
  %v445 = vpop.f32.mrb[0].mxu0
  %446 = vmatprep.mubr.bf16.mxu0 0
  %447 = vmatmul.mubr.bf16.gmra.mrb[0].mxu0 %v248
  %v448 = vpop.f32.mrb[0].mxu0
  %v449 = vadd.f32 0.0, %v448
  %v450 = vpop.f32.mrb[0].mxu0
  %v451 = vpop.f32.mrb[0].mxu0
  %v452 = vadd.f32 0.0, %v451
  %v453 = vpop.f32.mrb[0].mxu0
  %454 = vmatprep.mubr.bf16.mxu0 0
  %455 = vmatmul.mubr.bf16.gmra.mrb[0].mxu0 %v251
  %v456 = vpop.f32.mrb[0].mxu0
  %v457 = vadd.f32 0.0, %v456
  %v458 = vpop.f32.mrb[0].mxu0
  %v459 = vpop.f32.mrb[0].mxu0
  %v460 = vadd.f32 0.0, %v459
  %v461 = vpop.f32.mrb[0].mxu0
  %462 = vdwg.mxu0
  %479 = vrot.lane.b32.xlu0 %v151, 124
  %v480 = vpop.permute.xlu0 %479
  %481 = vrot.lane.b32.xlu0 %v154, 124
  %v482 = vpop.permute.xlu0 %481
  %483 = vrot.lane.b32.xlu0 %v159, 124
  %v484 = vpop.permute.xlu0 %483
  %485 = vrot.lane.b32.xlu0 %v162, 124
  %v486 = vpop.permute.xlu0 %485
  %487 = vrot.lane.b32.xlu0 %v167, 124
  %v488 = vpop.permute.xlu0 %487
  %489 = vrot.lane.b32.xlu0 %v170, 124
  %v490 = vpop.permute.xlu0 %489
  %491 = vrot.lane.b32.xlu0 %v175, 124
  %v492 = vpop.permute.xlu0 %491
  %493 = vrot.lane.b32.xlu0 %v178, 124
  %v494 = vpop.permute.xlu0 %493
  %495 = vrot.lane.b32.xlu0 %v183, 124
  %v496 = vpop.permute.xlu0 %495
  %497 = vrot.lane.b32.xlu0 %v186, 124
  %v498 = vpop.permute.xlu0 %497
  %499 = vrot.lane.b32.xlu0 %v191, 124
  %v500 = vpop.permute.xlu0 %499
  %501 = vrot.lane.b32.xlu0 %v194, 124
  %v502 = vpop.permute.xlu0 %501
  %503 = vrot.lane.b32.xlu0 %v199, 124
  %v504 = vpop.permute.xlu0 %503
  %505 = vrot.lane.b32.xlu0 %v202, 124
  %v506 = vpop.permute.xlu0 %505
  %507 = vrot.lane.b32.xlu0 %v207, 124
  %v508 = vpop.permute.xlu0 %507
  %509 = vrot.lane.b32.xlu0 %v210, 124
  %v510 = vpop.permute.xlu0 %509
  %527 = vrot.lane.b32.xlu0 %v151, 120
  %v528 = vpop.permute.xlu0 %527
  %529 = vrot.lane.b32.xlu0 %v154, 120
  %v530 = vpop.permute.xlu0 %529
  %531 = vrot.lane.b32.xlu0 %v159, 120
  %v532 = vpop.permute.xlu0 %531
  %533 = vrot.lane.b32.xlu0 %v162, 120
  %v534 = vpop.permute.xlu0 %533
  %535 = vrot.lane.b32.xlu0 %v167, 120
  %v536 = vpop.permute.xlu0 %535
  %537 = vrot.lane.b32.xlu0 %v170, 120
  %v538 = vpop.permute.xlu0 %537
  %539 = vrot.lane.b32.xlu0 %v175, 120
  %v540 = vpop.permute.xlu0 %539
  %541 = vrot.lane.b32.xlu0 %v178, 120
  %v542 = vpop.permute.xlu0 %541
  %543 = vrot.lane.b32.xlu0 %v183, 120
  %v544 = vpop.permute.xlu0 %543
  %545 = vrot.lane.b32.xlu0 %v186, 120
  %v546 = vpop.permute.xlu0 %545
  %547 = vrot.lane.b32.xlu0 %v191, 120
  %v548 = vpop.permute.xlu0 %547
  %549 = vrot.lane.b32.xlu0 %v194, 120
  %v550 = vpop.permute.xlu0 %549
  %551 = vrot.lane.b32.xlu0 %v199, 120
  %v552 = vpop.permute.xlu0 %551
  %553 = vrot.lane.b32.xlu0 %v202, 120
  %v554 = vpop.permute.xlu0 %553
  %555 = vrot.lane.b32.xlu0 %v207, 120
  %v556 = vpop.permute.xlu0 %555
  %557 = vrot.lane.b32.xlu0 %v210, 120
  %v558 = vpop.permute.xlu0 %557
  %575 = vrot.lane.b32.xlu0 %v151, 116
  %v576 = vpop.permute.xlu0 %575
  %577 = vrot.lane.b32.xlu0 %v154, 116
  %v578 = vpop.permute.xlu0 %577
  %579 = vrot.lane.b32.xlu0 %v159, 116
  %v580 = vpop.permute.xlu0 %579
  %581 = vrot.lane.b32.xlu0 %v162, 116
  %v582 = vpop.permute.xlu0 %581
  %583 = vrot.lane.b32.xlu0 %v167, 116
  %v584 = vpop.permute.xlu0 %583
  %585 = vrot.lane.b32.xlu0 %v170, 116
  %v586 = vpop.permute.xlu0 %585
  %587 = vrot.lane.b32.xlu0 %v175, 116
  %v588 = vpop.permute.xlu0 %587
  %589 = vrot.lane.b32.xlu0 %v178, 116
  %v590 = vpop.permute.xlu0 %589
  %591 = vrot.lane.b32.xlu0 %v183, 116
  %v592 = vpop.permute.xlu0 %591
  %593 = vrot.lane.b32.xlu0 %v186, 116
  %v594 = vpop.permute.xlu0 %593
  %595 = vrot.lane.b32.xlu0 %v191, 116
  %v596 = vpop.permute.xlu0 %595
  %597 = vrot.lane.b32.xlu0 %v194, 116
  %v598 = vpop.permute.xlu0 %597
  %599 = vrot.lane.b32.xlu0 %v199, 116
  %v600 = vpop.permute.xlu0 %599
  %601 = vrot.lane.b32.xlu0 %v202, 116
  %v602 = vpop.permute.xlu0 %601
  %603 = vrot.lane.b32.xlu0 %v207, 116
  %v604 = vpop.permute.xlu0 %603
  %605 = vrot.lane.b32.xlu0 %v210, 116
  %v606 = vpop.permute.xlu0 %605
  %623 = vrot.lane.b32.xlu0 %v151, 112
  %v624 = vpop.permute.xlu0 %623
  %625 = vrot.lane.b32.xlu0 %v154, 112
  %v626 = vpop.permute.xlu0 %625
  %627 = vrot.lane.b32.xlu0 %v159, 112
  %v628 = vpop.permute.xlu0 %627
  %629 = vrot.lane.b32.xlu0 %v162, 112
  %v630 = vpop.permute.xlu0 %629
  %631 = vrot.lane.b32.xlu0 %v167, 112
  %v632 = vpop.permute.xlu0 %631
  %633 = vrot.lane.b32.xlu0 %v170, 112
  %v634 = vpop.permute.xlu0 %633
  %635 = vrot.lane.b32.xlu0 %v175, 112
  %v636 = vpop.permute.xlu0 %635
  %637 = vrot.lane.b32.xlu0 %v178, 112
  %v638 = vpop.permute.xlu0 %637
  %639 = vrot.lane.b32.xlu0 %v183, 112
  %v640 = vpop.permute.xlu0 %639
  %641 = vrot.lane.b32.xlu0 %v186, 112
  %v642 = vpop.permute.xlu0 %641
  %643 = vrot.lane.b32.xlu0 %v191, 112
  %v644 = vpop.permute.xlu0 %643
  %645 = vrot.lane.b32.xlu0 %v194, 112
  %v646 = vpop.permute.xlu0 %645
  %647 = vrot.lane.b32.xlu0 %v199, 112
  %v648 = vpop.permute.xlu0 %647
  %649 = vrot.lane.b32.xlu0 %v202, 112
  %v650 = vpop.permute.xlu0 %649
  %651 = vrot.lane.b32.xlu0 %v207, 112
  %v652 = vpop.permute.xlu0 %651
  %653 = vrot.lane.b32.xlu0 %v210, 112
  %v654 = vpop.permute.xlu0 %653
  %671 = vrot.lane.b32.xlu0 %v151, 108
  %v672 = vpop.permute.xlu0 %671
  %673 = vrot.lane.b32.xlu0 %v154, 108
  %v674 = vpop.permute.xlu0 %673
  %675 = vrot.lane.b32.xlu0 %v159, 108
  %v676 = vpop.permute.xlu0 %675
  %677 = vrot.lane.b32.xlu0 %v162, 108
  %v678 = vpop.permute.xlu0 %677
  %679 = vrot.lane.b32.xlu0 %v167, 108
  %v680 = vpop.permute.xlu0 %679
  %681 = vrot.lane.b32.xlu0 %v170, 108
  %v682 = vpop.permute.xlu0 %681
  %683 = vrot.lane.b32.xlu0 %v175, 108
  %v684 = vpop.permute.xlu0 %683
  %685 = vrot.lane.b32.xlu0 %v178, 108
  %v686 = vpop.permute.xlu0 %685
  %687 = vrot.lane.b32.xlu0 %v183, 108
  %v688 = vpop.permute.xlu0 %687
  %689 = vrot.lane.b32.xlu0 %v186, 108
  %v690 = vpop.permute.xlu0 %689
  %691 = vrot.lane.b32.xlu0 %v191, 108
  %v692 = vpop.permute.xlu0 %691
  %693 = vrot.lane.b32.xlu0 %v194, 108
  %v694 = vpop.permute.xlu0 %693
  %695 = vrot.lane.b32.xlu0 %v199, 108
  %v696 = vpop.permute.xlu0 %695
  %697 = vrot.lane.b32.xlu0 %v202, 108
  %v698 = vpop.permute.xlu0 %697
  %699 = vrot.lane.b32.xlu0 %v207, 108
  %v700 = vpop.permute.xlu0 %699
  %701 = vrot.lane.b32.xlu0 %v210, 108
  %v702 = vpop.permute.xlu0 %701
  %719 = vrot.lane.b32.xlu0 %v151, 104
  %v720 = vpop.permute.xlu0 %719
  %721 = vrot.lane.b32.xlu0 %v154, 104
  %v722 = vpop.permute.xlu0 %721
  %723 = vrot.lane.b32.xlu0 %v159, 104
  %v724 = vpop.permute.xlu0 %723
  %725 = vrot.lane.b32.xlu0 %v162, 104
  %v726 = vpop.permute.xlu0 %725
  %727 = vrot.lane.b32.xlu0 %v167, 104
  %v728 = vpop.permute.xlu0 %727
  %729 = vrot.lane.b32.xlu0 %v170, 104
  %v730 = vpop.permute.xlu0 %729
  %731 = vrot.lane.b32.xlu0 %v175, 104
  %v732 = vpop.permute.xlu0 %731
  %733 = vrot.lane.b32.xlu0 %v178, 104
  %v734 = vpop.permute.xlu0 %733
  %735 = vrot.lane.b32.xlu0 %v183, 104
  %v736 = vpop.permute.xlu0 %735
  %737 = vrot.lane.b32.xlu0 %v186, 104
  %v738 = vpop.permute.xlu0 %737
  %739 = vrot.lane.b32.xlu0 %v191, 104
  %v740 = vpop.permute.xlu0 %739
  %741 = vrot.lane.b32.xlu0 %v194, 104
  %v742 = vpop.permute.xlu0 %741
  %743 = vrot.lane.b32.xlu0 %v199, 104
  %v744 = vpop.permute.xlu0 %743
  %745 = vrot.lane.b32.xlu0 %v202, 104
  %v746 = vpop.permute.xlu0 %745
  %747 = vrot.lane.b32.xlu0 %v207, 104
  %v748 = vpop.permute.xlu0 %747
  %749 = vrot.lane.b32.xlu0 %v210, 104
  %v750 = vpop.permute.xlu0 %749
  %767 = vrot.lane.b32.xlu0 %v151, 100
  %v768 = vpop.permute.xlu0 %767
  %769 = vrot.lane.b32.xlu0 %v154, 100
  %v770 = vpop.permute.xlu0 %769
  %771 = vrot.lane.b32.xlu0 %v159, 100
  %v772 = vpop.permute.xlu0 %771
  %773 = vrot.lane.b32.xlu0 %v162, 100
  %v774 = vpop.permute.xlu0 %773
  %775 = vrot.lane.b32.xlu0 %v167, 100
  %v776 = vpop.permute.xlu0 %775
  %777 = vrot.lane.b32.xlu0 %v170, 100
  %v778 = vpop.permute.xlu0 %777
  %779 = vrot.lane.b32.xlu0 %v175, 100
  %v780 = vpop.permute.xlu0 %779
  %781 = vrot.lane.b32.xlu0 %v178, 100
  %v782 = vpop.permute.xlu0 %781
  %783 = vrot.lane.b32.xlu0 %v183, 100
  %v784 = vpop.permute.xlu0 %783
  %785 = vrot.lane.b32.xlu0 %v186, 100
  %v786 = vpop.permute.xlu0 %785
  %787 = vrot.lane.b32.xlu0 %v191, 100
  %v788 = vpop.permute.xlu0 %787
  %789 = vrot.lane.b32.xlu0 %v194, 100
  %v790 = vpop.permute.xlu0 %789
  %791 = vrot.lane.b32.xlu0 %v199, 100
  %v792 = vpop.permute.xlu0 %791
  %793 = vrot.lane.b32.xlu0 %v202, 100
  %v794 = vpop.permute.xlu0 %793
  %795 = vrot.lane.b32.xlu0 %v207, 100
  %v796 = vpop.permute.xlu0 %795
  %797 = vrot.lane.b32.xlu0 %v210, 100
  %v798 = vpop.permute.xlu0 %797
  %831 = vrot.lane.b32.xlu0 %v288, 124
  %v832 = vpop.permute.xlu0 %831
  %833 = vrot.lane.b32.xlu0 %v291, 124
  %v834 = vpop.permute.xlu0 %833
  %835 = vrot.lane.b32.xlu0 %v296, 124
  %v836 = vpop.permute.xlu0 %835
  %837 = vrot.lane.b32.xlu0 %v299, 124
  %v838 = vpop.permute.xlu0 %837
  %839 = vrot.lane.b32.xlu0 %v304, 124
  %v840 = vpop.permute.xlu0 %839
  %841 = vrot.lane.b32.xlu0 %v307, 124
  %v842 = vpop.permute.xlu0 %841
  %843 = vrot.lane.b32.xlu0 %v312, 124
  %v844 = vpop.permute.xlu0 %843
  %845 = vrot.lane.b32.xlu0 %v315, 124
  %v846 = vpop.permute.xlu0 %845
  %847 = vrot.lane.b32.xlu0 %v320, 124
  %v848 = vpop.permute.xlu0 %847
  %849 = vrot.lane.b32.xlu0 %v323, 124
  %v850 = vpop.permute.xlu0 %849
  %851 = vrot.lane.b32.xlu0 %v328, 124
  %v852 = vpop.permute.xlu0 %851
  %853 = vrot.lane.b32.xlu0 %v331, 124
  %v854 = vpop.permute.xlu0 %853
  %855 = vrot.lane.b32.xlu0 %v336, 124
  %v856 = vpop.permute.xlu0 %855
  %857 = vrot.lane.b32.xlu0 %v339, 124
  %v858 = vpop.permute.xlu0 %857
  %859 = vrot.lane.b32.xlu0 %v344, 124
  %v860 = vpop.permute.xlu0 %859
  %861 = vrot.lane.b32.xlu0 %v347, 124
  %v862 = vpop.permute.xlu0 %861
  %879 = vrot.lane.b32.xlu0 %v288, 120
  %v880 = vpop.permute.xlu0 %879
  %881 = vrot.lane.b32.xlu0 %v291, 120
  %v882 = vpop.permute.xlu0 %881
  %883 = vrot.lane.b32.xlu0 %v296, 120
  %v884 = vpop.permute.xlu0 %883
  %885 = vrot.lane.b32.xlu0 %v299, 120
  %v886 = vpop.permute.xlu0 %885
  %887 = vrot.lane.b32.xlu0 %v304, 120
  %v888 = vpop.permute.xlu0 %887
  %889 = vrot.lane.b32.xlu0 %v307, 120
  %v890 = vpop.permute.xlu0 %889
  %891 = vrot.lane.b32.xlu0 %v312, 120
  %v892 = vpop.permute.xlu0 %891
  %893 = vrot.lane.b32.xlu0 %v315, 120
  %v894 = vpop.permute.xlu0 %893
  %895 = vrot.lane.b32.xlu0 %v320, 120
  %v896 = vpop.permute.xlu0 %895
  %897 = vrot.lane.b32.xlu0 %v323, 120
  %v898 = vpop.permute.xlu0 %897
  %899 = vrot.lane.b32.xlu0 %v328, 120
  %v900 = vpop.permute.xlu0 %899
  %901 = vrot.lane.b32.xlu0 %v331, 120
  %v902 = vpop.permute.xlu0 %901
  %903 = vrot.lane.b32.xlu0 %v336, 120
  %v904 = vpop.permute.xlu0 %903
  %905 = vrot.lane.b32.xlu0 %v339, 120
  %v906 = vpop.permute.xlu0 %905
  %907 = vrot.lane.b32.xlu0 %v344, 120
  %v908 = vpop.permute.xlu0 %907
  %909 = vrot.lane.b32.xlu0 %v347, 120
  %v910 = vpop.permute.xlu0 %909
  %927 = vrot.lane.b32.xlu0 %v288, 116
  %v928 = vpop.permute.xlu0 %927
  %929 = vrot.lane.b32.xlu0 %v291, 116
  %v930 = vpop.permute.xlu0 %929
  %931 = vrot.lane.b32.xlu0 %v296, 116
  %v932 = vpop.permute.xlu0 %931
  %933 = vrot.lane.b32.xlu0 %v299, 116
  %v934 = vpop.permute.xlu0 %933
  %935 = vrot.lane.b32.xlu0 %v304, 116
  %v936 = vpop.permute.xlu0 %935
  %937 = vrot.lane.b32.xlu0 %v307, 116
  %v938 = vpop.permute.xlu0 %937
  %939 = vrot.lane.b32.xlu0 %v312, 116
  %v940 = vpop.permute.xlu0 %939
  %941 = vrot.lane.b32.xlu0 %v315, 116
  %v942 = vpop.permute.xlu0 %941
  %943 = vrot.lane.b32.xlu0 %v320, 116
  %v944 = vpop.permute.xlu0 %943
  %945 = vrot.lane.b32.xlu0 %v323, 116
  %v946 = vpop.permute.xlu0 %945
  %947 = vrot.lane.b32.xlu0 %v328, 116
  %v948 = vpop.permute.xlu0 %947
  %949 = vrot.lane.b32.xlu0 %v331, 116
  %v950 = vpop.permute.xlu0 %949
  %951 = vrot.lane.b32.xlu0 %v336, 116
  %v952 = vpop.permute.xlu0 %951
  %953 = vrot.lane.b32.xlu0 %v339, 116
  %v954 = vpop.permute.xlu0 %953
  %955 = vrot.lane.b32.xlu0 %v344, 116
  %v956 = vpop.permute.xlu0 %955
  %957 = vrot.lane.b32.xlu0 %v347, 116
  %v958 = vpop.permute.xlu0 %957
  %975 = vrot.lane.b32.xlu0 %v288, 112
  %v976 = vpop.permute.xlu0 %975
  %977 = vrot.lane.b32.xlu0 %v291, 112
  %v978 = vpop.permute.xlu0 %977
  %979 = vrot.lane.b32.xlu0 %v296, 112
  %v980 = vpop.permute.xlu0 %979
  %981 = vrot.lane.b32.xlu0 %v299, 112
  %v982 = vpop.permute.xlu0 %981
  %983 = vrot.lane.b32.xlu0 %v304, 112
  %v984 = vpop.permute.xlu0 %983
  %985 = vrot.lane.b32.xlu0 %v307, 112
  %v986 = vpop.permute.xlu0 %985
  %987 = vrot.lane.b32.xlu0 %v312, 112
  %v988 = vpop.permute.xlu0 %987
  %989 = vrot.lane.b32.xlu0 %v315, 112
  %v990 = vpop.permute.xlu0 %989
  %991 = vrot.lane.b32.xlu0 %v320, 112
  %v992 = vpop.permute.xlu0 %991
  %993 = vrot.lane.b32.xlu0 %v323, 112
  %v994 = vpop.permute.xlu0 %993
  %995 = vrot.lane.b32.xlu0 %v328, 112
  %v996 = vpop.permute.xlu0 %995
  %997 = vrot.lane.b32.xlu0 %v331, 112
  %v998 = vpop.permute.xlu0 %997
  %999 = vrot.lane.b32.xlu0 %v336, 112
  %v1000 = vpop.permute.xlu0 %999
  %1001 = vrot.lane.b32.xlu0 %v339, 112
  %v1002 = vpop.permute.xlu0 %1001
  %1003 = vrot.lane.b32.xlu0 %v344, 112
  %v1004 = vpop.permute.xlu0 %1003
  %1005 = vrot.lane.b32.xlu0 %v347, 112
  %v1006 = vpop.permute.xlu0 %1005
  %1023 = vrot.lane.b32.xlu0 %v288, 108
  %v1024 = vpop.permute.xlu0 %1023
  %1025 = vrot.lane.b32.xlu0 %v291, 108
  %v1026 = vpop.permute.xlu0 %1025
  %1027 = vrot.lane.b32.xlu0 %v296, 108
  %v1028 = vpop.permute.xlu0 %1027
  %1029 = vrot.lane.b32.xlu0 %v299, 108
  %v1030 = vpop.permute.xlu0 %1029
  %1031 = vrot.lane.b32.xlu0 %v304, 108
  %v1032 = vpop.permute.xlu0 %1031
  %1033 = vrot.lane.b32.xlu0 %v307, 108
  %v1034 = vpop.permute.xlu0 %1033
  %1035 = vrot.lane.b32.xlu0 %v312, 108
  %v1036 = vpop.permute.xlu0 %1035
  %1037 = vrot.lane.b32.xlu0 %v315, 108
  %v1038 = vpop.permute.xlu0 %1037
  %1039 = vrot.lane.b32.xlu0 %v320, 108
  %v1040 = vpop.permute.xlu0 %1039
  %1041 = vrot.lane.b32.xlu0 %v323, 108
  %v1042 = vpop.permute.xlu0 %1041
  %1043 = vrot.lane.b32.xlu0 %v328, 108
  %v1044 = vpop.permute.xlu0 %1043
  %1045 = vrot.lane.b32.xlu0 %v331, 108
  %v1046 = vpop.permute.xlu0 %1045
  %1047 = vrot.lane.b32.xlu0 %v336, 108
  %v1048 = vpop.permute.xlu0 %1047
  %1049 = vrot.lane.b32.xlu0 %v339, 108
  %v1050 = vpop.permute.xlu0 %1049
  %1051 = vrot.lane.b32.xlu0 %v344, 108
  %v1052 = vpop.permute.xlu0 %1051
  %1053 = vrot.lane.b32.xlu0 %v347, 108
  %v1054 = vpop.permute.xlu0 %1053
  %1071 = vrot.lane.b32.xlu0 %v288, 104
  %v1072 = vpop.permute.xlu0 %1071
  %1073 = vrot.lane.b32.xlu0 %v291, 104
  %v1074 = vpop.permute.xlu0 %1073
  %1075 = vrot.lane.b32.xlu0 %v296, 104
  %v1076 = vpop.permute.xlu0 %1075
  %1077 = vrot.lane.b32.xlu0 %v299, 104
  %v1078 = vpop.permute.xlu0 %1077
  %1079 = vrot.lane.b32.xlu0 %v304, 104
  %v1080 = vpop.permute.xlu0 %1079
  %1081 = vrot.lane.b32.xlu0 %v307, 104
  %v1082 = vpop.permute.xlu0 %1081
  %1083 = vrot.lane.b32.xlu0 %v312, 104
  %v1084 = vpop.permute.xlu0 %1083
  %1085 = vrot.lane.b32.xlu0 %v315, 104
  %v1086 = vpop.permute.xlu0 %1085
  %1087 = vrot.lane.b32.xlu0 %v320, 104
  %v1088 = vpop.permute.xlu0 %1087
  %1089 = vrot.lane.b32.xlu0 %v323, 104
  %v1090 = vpop.permute.xlu0 %1089
  %1091 = vrot.lane.b32.xlu0 %v328, 104
  %v1092 = vpop.permute.xlu0 %1091
  %1093 = vrot.lane.b32.xlu0 %v331, 104
  %v1094 = vpop.permute.xlu0 %1093
  %1095 = vrot.lane.b32.xlu0 %v336, 104
  %v1096 = vpop.permute.xlu0 %1095
  %1097 = vrot.lane.b32.xlu0 %v339, 104
  %v1098 = vpop.permute.xlu0 %1097
  %1099 = vrot.lane.b32.xlu0 %v344, 104
  %v1100 = vpop.permute.xlu0 %1099
  %1101 = vrot.lane.b32.xlu0 %v347, 104
  %v1102 = vpop.permute.xlu0 %1101
  %1119 = vrot.lane.b32.xlu0 %v288, 100
  %v1120 = vpop.permute.xlu0 %1119
  %1121 = vrot.lane.b32.xlu0 %v291, 100
  %v1122 = vpop.permute.xlu0 %1121
  %1123 = vrot.lane.b32.xlu0 %v296, 100
  %v1124 = vpop.permute.xlu0 %1123
  %1125 = vrot.lane.b32.xlu0 %v299, 100
  %v1126 = vpop.permute.xlu0 %1125
  %1127 = vrot.lane.b32.xlu0 %v304, 100
  %v1128 = vpop.permute.xlu0 %1127
  %1129 = vrot.lane.b32.xlu0 %v307, 100
  %v1130 = vpop.permute.xlu0 %1129
  %1131 = vrot.lane.b32.xlu0 %v312, 100
  %v1132 = vpop.permute.xlu0 %1131
  %1133 = vrot.lane.b32.xlu0 %v315, 100
  %v1134 = vpop.permute.xlu0 %1133
  %1135 = vrot.lane.b32.xlu0 %v320, 100
  %v1136 = vpop.permute.xlu0 %1135
  %1137 = vrot.lane.b32.xlu0 %v323, 100
  %v1138 = vpop.permute.xlu0 %1137
  %1139 = vrot.lane.b32.xlu0 %v328, 100
  %v1140 = vpop.permute.xlu0 %1139
  %1141 = vrot.lane.b32.xlu0 %v331, 100
  %v1142 = vpop.permute.xlu0 %1141
  %1143 = vrot.lane.b32.xlu0 %v336, 100
  %v1144 = vpop.permute.xlu0 %1143
  %1145 = vrot.lane.b32.xlu0 %v339, 100
  %v1146 = vpop.permute.xlu0 %1145
  %1147 = vrot.lane.b32.xlu0 %v344, 100
  %v1148 = vpop.permute.xlu0 %1147
  %1149 = vrot.lane.b32.xlu0 %v347, 100
  %v1150 = vpop.permute.xlu0 %1149
  %1183 = vrot.lane.b32.xlu0 %v401, 124
  %v1184 = vpop.permute.xlu0 %1183
  %1185 = vrot.lane.b32.xlu0 %v404, 124
  %v1186 = vpop.permute.xlu0 %1185
  %1187 = vrot.lane.b32.xlu0 %v409, 124
  %v1188 = vpop.permute.xlu0 %1187
  %1189 = vrot.lane.b32.xlu0 %v412, 124
  %v1190 = vpop.permute.xlu0 %1189
  %1191 = vrot.lane.b32.xlu0 %v417, 124
  %v1192 = vpop.permute.xlu0 %1191
  %1193 = vrot.lane.b32.xlu0 %v420, 124
  %v1194 = vpop.permute.xlu0 %1193
  %1195 = vrot.lane.b32.xlu0 %v425, 124
  %v1196 = vpop.permute.xlu0 %1195
  %1197 = vrot.lane.b32.xlu0 %v428, 124
  %v1198 = vpop.permute.xlu0 %1197
  %1199 = vrot.lane.b32.xlu0 %v433, 124
  %v1200 = vpop.permute.xlu0 %1199
  %1201 = vrot.lane.b32.xlu0 %v436, 124
  %v1202 = vpop.permute.xlu0 %1201
  %1203 = vrot.lane.b32.xlu0 %v441, 124
  %v1204 = vpop.permute.xlu0 %1203
  %1205 = vrot.lane.b32.xlu0 %v444, 124
  %v1206 = vpop.permute.xlu0 %1205
  %1207 = vrot.lane.b32.xlu0 %v449, 124
  %v1208 = vpop.permute.xlu0 %1207
  %1209 = vrot.lane.b32.xlu0 %v452, 124
  %v1210 = vpop.permute.xlu0 %1209
  %1211 = vrot.lane.b32.xlu0 %v457, 124
  %v1212 = vpop.permute.xlu0 %1211
  %1213 = vrot.lane.b32.xlu0 %v460, 124
  %v1214 = vpop.permute.xlu0 %1213
  %1231 = vrot.lane.b32.xlu0 %v401, 120
  %v1232 = vpop.permute.xlu0 %1231
  %1233 = vrot.lane.b32.xlu0 %v404, 120
  %v1234 = vpop.permute.xlu0 %1233
  %1235 = vrot.lane.b32.xlu0 %v409, 120
  %v1236 = vpop.permute.xlu0 %1235
  %1237 = vrot.lane.b32.xlu0 %v412, 120
  %v1238 = vpop.permute.xlu0 %1237
  %1239 = vrot.lane.b32.xlu0 %v417, 120
  %v1240 = vpop.permute.xlu0 %1239
  %1241 = vrot.lane.b32.xlu0 %v420, 120
  %v1242 = vpop.permute.xlu0 %1241
  %1243 = vrot.lane.b32.xlu0 %v425, 120
  %v1244 = vpop.permute.xlu0 %1243
  %1245 = vrot.lane.b32.xlu0 %v428, 120
  %v1246 = vpop.permute.xlu0 %1245
  %1247 = vrot.lane.b32.xlu0 %v433, 120
  %v1248 = vpop.permute.xlu0 %1247
  %1249 = vrot.lane.b32.xlu0 %v436, 120
  %v1250 = vpop.permute.xlu0 %1249
  %1251 = vrot.lane.b32.xlu0 %v441, 120
  %v1252 = vpop.permute.xlu0 %1251
  %1253 = vrot.lane.b32.xlu0 %v444, 120
  %v1254 = vpop.permute.xlu0 %1253
  %1255 = vrot.lane.b32.xlu0 %v449, 120
  %v1256 = vpop.permute.xlu0 %1255
  %1257 = vrot.lane.b32.xlu0 %v452, 120
  %v1258 = vpop.permute.xlu0 %1257
  %1259 = vrot.lane.b32.xlu0 %v457, 120
  %v1260 = vpop.permute.xlu0 %1259
  %1261 = vrot.lane.b32.xlu0 %v460, 120
  %v1262 = vpop.permute.xlu0 %1261
  %1279 = vrot.lane.b32.xlu0 %v401, 116
  %v1280 = vpop.permute.xlu0 %1279
  %1281 = vrot.lane.b32.xlu0 %v404, 116
  %v1282 = vpop.permute.xlu0 %1281
  %1283 = vrot.lane.b32.xlu0 %v409, 116
  %v1284 = vpop.permute.xlu0 %1283
  %1285 = vrot.lane.b32.xlu0 %v412, 116
  %v1286 = vpop.permute.xlu0 %1285
  %1287 = vrot.lane.b32.xlu0 %v417, 116
  %v1288 = vpop.permute.xlu0 %1287
  %1289 = vrot.lane.b32.xlu0 %v420, 116
  %v1290 = vpop.permute.xlu0 %1289
  %1291 = vrot.lane.b32.xlu0 %v425, 116
  %v1292 = vpop.permute.xlu0 %1291
  %1293 = vrot.lane.b32.xlu0 %v428, 116
  %v1294 = vpop.permute.xlu0 %1293
  %1295 = vrot.lane.b32.xlu0 %v433, 116
  %v1296 = vpop.permute.xlu0 %1295
  %1297 = vrot.lane.b32.xlu0 %v436, 116
  %v1298 = vpop.permute.xlu0 %1297
  %1299 = vrot.lane.b32.xlu0 %v441, 116
  %v1300 = vpop.permute.xlu0 %1299
  %1301 = vrot.lane.b32.xlu0 %v444, 116
  %v1302 = vpop.permute.xlu0 %1301
  %1303 = vrot.lane.b32.xlu0 %v449, 116
  %v1304 = vpop.permute.xlu0 %1303
  %1305 = vrot.lane.b32.xlu0 %v452, 116
  %v1306 = vpop.permute.xlu0 %1305
  %1307 = vrot.lane.b32.xlu0 %v457, 116
  %v1308 = vpop.permute.xlu0 %1307
  %1309 = vrot.lane.b32.xlu0 %v460, 116
  %v1310 = vpop.permute.xlu0 %1309
  %1327 = vrot.lane.b32.xlu0 %v401, 112
  %v1328 = vpop.permute.xlu0 %1327
  %1329 = vrot.lane.b32.xlu0 %v404, 112
  %v1330 = vpop.permute.xlu0 %1329
  %1331 = vrot.lane.b32.xlu0 %v409, 112
  %v1332 = vpop.permute.xlu0 %1331
  %1333 = vrot.lane.b32.xlu0 %v412, 112
  %v1334 = vpop.permute.xlu0 %1333
  %1335 = vrot.lane.b32.xlu0 %v417, 112
  %v1336 = vpop.permute.xlu0 %1335
  %1337 = vrot.lane.b32.xlu0 %v420, 112
  %v1338 = vpop.permute.xlu0 %1337
  %1339 = vrot.lane.b32.xlu0 %v425, 112
  %v1340 = vpop.permute.xlu0 %1339
  %1341 = vrot.lane.b32.xlu0 %v428, 112
  %v1342 = vpop.permute.xlu0 %1341
  %1343 = vrot.lane.b32.xlu0 %v433, 112
  %v1344 = vpop.permute.xlu0 %1343
  %1345 = vrot.lane.b32.xlu0 %v436, 112
  %v1346 = vpop.permute.xlu0 %1345
  %1347 = vrot.lane.b32.xlu0 %v441, 112
  %v1348 = vpop.permute.xlu0 %1347
  %1349 = vrot.lane.b32.xlu0 %v444, 112
  %v1350 = vpop.permute.xlu0 %1349
  %1351 = vrot.lane.b32.xlu0 %v449, 112
  %v1352 = vpop.permute.xlu0 %1351
  %1353 = vrot.lane.b32.xlu0 %v452, 112
  %v1354 = vpop.permute.xlu0 %1353
  %1355 = vrot.lane.b32.xlu0 %v457, 112
  %v1356 = vpop.permute.xlu0 %1355
  %1357 = vrot.lane.b32.xlu0 %v460, 112
  %v1358 = vpop.permute.xlu0 %1357
  %1375 = vrot.lane.b32.xlu0 %v401, 108
  %v1376 = vpop.permute.xlu0 %1375
  %1377 = vrot.lane.b32.xlu0 %v404, 108
  %v1378 = vpop.permute.xlu0 %1377
  %1379 = vrot.lane.b32.xlu0 %v409, 108
  %v1380 = vpop.permute.xlu0 %1379
  %1381 = vrot.lane.b32.xlu0 %v412, 108
  %v1382 = vpop.permute.xlu0 %1381
  %1383 = vrot.lane.b32.xlu0 %v417, 108
  %v1384 = vpop.permute.xlu0 %1383
  %1385 = vrot.lane.b32.xlu0 %v420, 108
  %v1386 = vpop.permute.xlu0 %1385
  %1387 = vrot.lane.b32.xlu0 %v425, 108
  %v1388 = vpop.permute.xlu0 %1387
  %1389 = vrot.lane.b32.xlu0 %v428, 108
  %v1390 = vpop.permute.xlu0 %1389
  %1391 = vrot.lane.b32.xlu0 %v433, 108
  %v1392 = vpop.permute.xlu0 %1391
  %1393 = vrot.lane.b32.xlu0 %v436, 108
  %v1394 = vpop.permute.xlu0 %1393
  %1395 = vrot.lane.b32.xlu0 %v441, 108
  %v1396 = vpop.permute.xlu0 %1395
  %1397 = vrot.lane.b32.xlu0 %v444, 108
  %v1398 = vpop.permute.xlu0 %1397
  %1399 = vrot.lane.b32.xlu0 %v449, 108
  %v1400 = vpop.permute.xlu0 %1399
  %1401 = vrot.lane.b32.xlu0 %v452, 108
  %v1402 = vpop.permute.xlu0 %1401
  %1403 = vrot.lane.b32.xlu0 %v457, 108
  %v1404 = vpop.permute.xlu0 %1403
  %1405 = vrot.lane.b32.xlu0 %v460, 108
  %v1406 = vpop.permute.xlu0 %1405
  %1423 = vrot.lane.b32.xlu0 %v401, 104
  %v1424 = vpop.permute.xlu0 %1423
  %1425 = vrot.lane.b32.xlu0 %v404, 104
  %v1426 = vpop.permute.xlu0 %1425
  %1427 = vrot.lane.b32.xlu0 %v409, 104
  %v1428 = vpop.permute.xlu0 %1427
  %1429 = vrot.lane.b32.xlu0 %v412, 104
  %v1430 = vpop.permute.xlu0 %1429
  %1431 = vrot.lane.b32.xlu0 %v417, 104
  %v1432 = vpop.permute.xlu0 %1431
  %1433 = vrot.lane.b32.xlu0 %v420, 104
  %v1434 = vpop.permute.xlu0 %1433
  %1435 = vrot.lane.b32.xlu0 %v425, 104
  %v1436 = vpop.permute.xlu0 %1435
  %1437 = vrot.lane.b32.xlu0 %v428, 104
  %v1438 = vpop.permute.xlu0 %1437
  %1439 = vrot.lane.b32.xlu0 %v433, 104
  %v1440 = vpop.permute.xlu0 %1439
  %1441 = vrot.lane.b32.xlu0 %v436, 104
  %v1442 = vpop.permute.xlu0 %1441
  %1443 = vrot.lane.b32.xlu0 %v441, 104
  %v1444 = vpop.permute.xlu0 %1443
  %1445 = vrot.lane.b32.xlu0 %v444, 104
  %v1446 = vpop.permute.xlu0 %1445
  %1447 = vrot.lane.b32.xlu0 %v449, 104
  %v1448 = vpop.permute.xlu0 %1447
  %1449 = vrot.lane.b32.xlu0 %v452, 104
  %v1450 = vpop.permute.xlu0 %1449
  %1451 = vrot.lane.b32.xlu0 %v457, 104
  %v1452 = vpop.permute.xlu0 %1451
  %1453 = vrot.lane.b32.xlu0 %v460, 104
  %v1454 = vpop.permute.xlu0 %1453
  %1471 = vrot.lane.b32.xlu0 %v401, 100
  %v1472 = vpop.permute.xlu0 %1471
  %1473 = vrot.lane.b32.xlu0 %v404, 100
  %v1474 = vpop.permute.xlu0 %1473
  %1475 = vrot.lane.b32.xlu0 %v409, 100
  %v1476 = vpop.permute.xlu0 %1475
  %1477 = vrot.lane.b32.xlu0 %v412, 100
  %v1478 = vpop.permute.xlu0 %1477
  %1479 = vrot.lane.b32.xlu0 %v417, 100
  %v1480 = vpop.permute.xlu0 %1479
  %1481 = vrot.lane.b32.xlu0 %v420, 100
  %v1482 = vpop.permute.xlu0 %1481
  %1483 = vrot.lane.b32.xlu0 %v425, 100
  %v1484 = vpop.permute.xlu0 %1483
  %1485 = vrot.lane.b32.xlu0 %v428, 100
  %v1486 = vpop.permute.xlu0 %1485
  %1487 = vrot.lane.b32.xlu0 %v433, 100
  %v1488 = vpop.permute.xlu0 %1487
  %1489 = vrot.lane.b32.xlu0 %v436, 100
  %v1490 = vpop.permute.xlu0 %1489
  %1491 = vrot.lane.b32.xlu0 %v441, 100
  %v1492 = vpop.permute.xlu0 %1491
  %1493 = vrot.lane.b32.xlu0 %v444, 100
  %v1494 = vpop.permute.xlu0 %1493
  %1495 = vrot.lane.b32.xlu0 %v449, 100
  %v1496 = vpop.permute.xlu0 %1495
  %1497 = vrot.lane.b32.xlu0 %v452, 100
  %v1498 = vpop.permute.xlu0 %1497
  %1499 = vrot.lane.b32.xlu0 %v457, 100
  %v1500 = vpop.permute.xlu0 %1499
  %1501 = vrot.lane.b32.xlu0 %v460, 100
  %v1502 = vpop.permute.xlu0 %1501
  %v1519 = vpack.c.bf16 %v154, %v151
  %v1520 = vpack.c.bf16 %v162, %v159
  %v1521 = vpack.c.bf16 %v170, %v167
  %v1522 = vpack.c.bf16 %v178, %v175
  %v1523 = vpack.c.bf16 %v186, %v183
  %v1524 = vpack.c.bf16 %v194, %v191
  %v1525 = vpack.c.bf16 %v202, %v199
  %v1526 = vpack.c.bf16 %v210, %v207
  %v1527 = vpack.c.bf16 %v482, %v480
  %v1528 = vpack.c.bf16 %v486, %v484
  %v1529 = vpack.c.bf16 %v490, %v488
  %v1530 = vpack.c.bf16 %v494, %v492
  %v1531 = vpack.c.bf16 %v498, %v496
  %v1532 = vpack.c.bf16 %v502, %v500
  %v1533 = vpack.c.bf16 %v506, %v504
  %v1534 = vpack.c.bf16 %v510, %v508
  %v1535 = vpack.c.bf16 %v530, %v528
  %v1536 = vpack.c.bf16 %v534, %v532
  %v1537 = vpack.c.bf16 %v538, %v536
  %v1538 = vpack.c.bf16 %v542, %v540
  %v1539 = vpack.c.bf16 %v546, %v544
  %v1540 = vpack.c.bf16 %v550, %v548
  %v1541 = vpack.c.bf16 %v554, %v552
  %v1542 = vpack.c.bf16 %v558, %v556
  %v1543 = vpack.c.bf16 %v578, %v576
  %v1544 = vpack.c.bf16 %v582, %v580
  %v1545 = vpack.c.bf16 %v586, %v584
  %v1546 = vpack.c.bf16 %v590, %v588
  %v1547 = vpack.c.bf16 %v594, %v592
  %v1548 = vpack.c.bf16 %v598, %v596
  %v1549 = vpack.c.bf16 %v602, %v600
  %v1550 = vpack.c.bf16 %v606, %v604
  %v1551 = vpack.c.bf16 %v626, %v624
  %v1552 = vpack.c.bf16 %v630, %v628
  %v1553 = vpack.c.bf16 %v634, %v632
  %v1554 = vpack.c.bf16 %v638, %v636
  %v1555 = vpack.c.bf16 %v642, %v640
  %v1556 = vpack.c.bf16 %v646, %v644
  %v1557 = vpack.c.bf16 %v650, %v648
  %v1558 = vpack.c.bf16 %v654, %v652
  %v1559 = vpack.c.bf16 %v674, %v672
  %v1560 = vpack.c.bf16 %v678, %v676
  %v1561 = vpack.c.bf16 %v682, %v680
  %v1562 = vpack.c.bf16 %v686, %v684
  %v1563 = vpack.c.bf16 %v690, %v688
  %v1564 = vpack.c.bf16 %v694, %v692
  %v1565 = vpack.c.bf16 %v698, %v696
  %v1566 = vpack.c.bf16 %v702, %v700
  %v1567 = vpack.c.bf16 %v722, %v720
  %v1568 = vpack.c.bf16 %v726, %v724
  %v1569 = vpack.c.bf16 %v730, %v728
  %v1570 = vpack.c.bf16 %v734, %v732
  %v1571 = vpack.c.bf16 %v738, %v736
  %v1572 = vpack.c.bf16 %v742, %v740
  %v1573 = vpack.c.bf16 %v746, %v744
  %v1574 = vpack.c.bf16 %v750, %v748
  %v1575 = vpack.c.bf16 %v770, %v768
  %v1576 = vpack.c.bf16 %v774, %v772
  %v1577 = vpack.c.bf16 %v778, %v776
  %v1578 = vpack.c.bf16 %v782, %v780
  %v1579 = vpack.c.bf16 %v786, %v784
  %v1580 = vpack.c.bf16 %v790, %v788
  %v1581 = vpack.c.bf16 %v794, %v792
  %v1582 = vpack.c.bf16 %v798, %v796
  %v1583 = vpack.c.bf16 %v291, %v288
  %v1584 = vpack.c.bf16 %v299, %v296
  %v1585 = vpack.c.bf16 %v307, %v304
  %v1586 = vpack.c.bf16 %v315, %v312
  %v1587 = vpack.c.bf16 %v323, %v320
  %v1588 = vpack.c.bf16 %v331, %v328
  %v1589 = vpack.c.bf16 %v339, %v336
  %v1590 = vpack.c.bf16 %v347, %v344
  %v1591 = vpack.c.bf16 %v834, %v832
  %v1592 = vpack.c.bf16 %v838, %v836
  %v1593 = vpack.c.bf16 %v842, %v840
  %v1594 = vpack.c.bf16 %v846, %v844
  %v1595 = vpack.c.bf16 %v850, %v848
  %v1596 = vpack.c.bf16 %v854, %v852
  %v1597 = vpack.c.bf16 %v858, %v856
  %v1598 = vpack.c.bf16 %v862, %v860
  %v1599 = vpack.c.bf16 %v882, %v880
  %v1600 = vpack.c.bf16 %v886, %v884
  %v1601 = vpack.c.bf16 %v890, %v888
  %v1602 = vpack.c.bf16 %v894, %v892
  %v1603 = vpack.c.bf16 %v898, %v896
  %v1604 = vpack.c.bf16 %v902, %v900
  %v1605 = vpack.c.bf16 %v906, %v904
  %v1606 = vpack.c.bf16 %v910, %v908
  %v1607 = vpack.c.bf16 %v930, %v928
  %v1608 = vpack.c.bf16 %v934, %v932
  %v1609 = vpack.c.bf16 %v938, %v936
  %v1610 = vpack.c.bf16 %v942, %v940
  %v1611 = vpack.c.bf16 %v946, %v944
  %v1612 = vpack.c.bf16 %v950, %v948
  %v1613 = vpack.c.bf16 %v954, %v952
  %v1614 = vpack.c.bf16 %v958, %v956
  %v1615 = vpack.c.bf16 %v978, %v976
  %v1616 = vpack.c.bf16 %v982, %v980
  %v1617 = vpack.c.bf16 %v986, %v984
  %v1618 = vpack.c.bf16 %v990, %v988
  %v1619 = vpack.c.bf16 %v994, %v992
  %v1620 = vpack.c.bf16 %v998, %v996
  %v1621 = vpack.c.bf16 %v1002, %v1000
  %v1622 = vpack.c.bf16 %v1006, %v1004
  %v1623 = vpack.c.bf16 %v1026, %v1024
  %v1624 = vpack.c.bf16 %v1030, %v1028
  %v1625 = vpack.c.bf16 %v1034, %v1032
  %v1626 = vpack.c.bf16 %v1038, %v1036
  %v1627 = vpack.c.bf16 %v1042, %v1040
  %v1628 = vpack.c.bf16 %v1046, %v1044
  %v1629 = vpack.c.bf16 %v1050, %v1048
  %v1630 = vpack.c.bf16 %v1054, %v1052
  %v1631 = vpack.c.bf16 %v1074, %v1072
  %v1632 = vpack.c.bf16 %v1078, %v1076
  %v1633 = vpack.c.bf16 %v1082, %v1080
  %v1634 = vpack.c.bf16 %v1086, %v1084
  %v1635 = vpack.c.bf16 %v1090, %v1088
  %v1636 = vpack.c.bf16 %v1094, %v1092
  %v1637 = vpack.c.bf16 %v1098, %v1096
  %v1638 = vpack.c.bf16 %v1102, %v1100
  %v1639 = vpack.c.bf16 %v1122, %v1120
  %v1640 = vpack.c.bf16 %v1126, %v1124
  %v1641 = vpack.c.bf16 %v1130, %v1128
  %v1642 = vpack.c.bf16 %v1134, %v1132
  %v1643 = vpack.c.bf16 %v1138, %v1136
  %v1644 = vpack.c.bf16 %v1142, %v1140
  %v1645 = vpack.c.bf16 %v1146, %v1144
  %v1646 = vpack.c.bf16 %v1150, %v1148
  %vm1647 = vcmask 31744
  %v1649 = vsel %vm1647, %v1519, 0
  %v1652 = vsel %vm1647, %v1520, 0
  %v1655 = vsel %vm1647, %v1521, 0
  %v1658 = vsel %vm1647, %v1522, 0
  %v1661 = vsel %vm1647, %v1583, 0
  %v1664 = vsel %vm1647, %v1584, 0
  %v1667 = vsel %vm1647, %v1585, 0
  %v1670 = vsel %vm1647, %v1586, 0
  %1672 = vmatprep.subr.bf16.mxu0 0
  %1673 = vmatpush1.bf16.xpose.msra.mxu0 %v1661
  %1674 = vmatprep.subr.bf16.mxu0 0
  %1675 = vmatpush1.bf16.xpose.msra.mxu0 %v1664
  %1676 = vmatprep.subr.bf16.mxu0 0
  %1677 = vmatpush1.bf16.xpose.msra.mxu0 %v1667
  %1678 = vmatprep.subr.bf16.mxu0 0
  %1679 = vmatpush1.bf16.xpose.msra.mxu0 %v1670
  %1680 = vmatprep.subr.bf16.mxu0 0
  %1681 = vmatpush1.bf16.xpose.msra.mxu0 0
  %1682 = vmatprep.subr.bf16.mxu0 0
  %1683 = vmatpush1.bf16.xpose.msra.mxu0 0
  %1684 = vmatprep.subr.bf16.mxu0 0
  %1685 = vmatpush1.bf16.xpose.msra.mxu0 0
  %1686 = vmatprep.subr.bf16.mxu0 0
  %1687 = vmatpush1.bf16.xpose.msra.mxu0 0
  %1688 = vmatprep.subr.bf16.mxu0 0
  %1689 = vmatpush1.bf16.xpose.msra.mxu0 0
  %1690 = vmatprep.subr.bf16.mxu0 0
  %1691 = vmatpush1.bf16.xpose.msra.mxu0 0
  %1692 = vmatprep.subr.bf16.mxu0 0
  %1693 = vmatpush1.bf16.xpose.msra.mxu0 0
  %1694 = vmatprep.subr.bf16.mxu0 0
  %1695 = vmatpush1.bf16.xpose.msra.mxu0 0
  %1696 = vmatprep.subr.bf16.mxu0 0
  %1697 = vmatpush1.bf16.xpose.msra.mxu0 0
  %1698 = vmatprep.subr.bf16.mxu0 0
  %1699 = vmatpush1.bf16.xpose.msra.mxu0 0
  %1700 = vmatprep.subr.bf16.mxu0 0
  %1701 = vmatpush1.bf16.xpose.msra.mxu0 0
  %1702 = vmatprep.subr.bf16.mxu0 0
  %1703 = vmatpush1.bf16.xpose.msra.mxu0 0
  %1704 = vmatprep.mubr.bf16.mxu0 0
  %1705 = vmatmul.mubr.bf16.gmra.mrb[0].mxu0 %v1649
  %v1706 = vpop.f32.mrb[0].mxu0
  %v1707 = vadd.f32 0.0, %v1706
  %v1708 = vpop.f32.mrb[0].mxu0
  %v1709 = vpop.f32.mrb[0].mxu0
  %v1710 = vadd.f32 0.0, %v1709
  %v1711 = vpop.f32.mrb[0].mxu0
  %1712 = vmatprep.mubr.bf16.mxu0 0
  %1713 = vmatmul.mubr.bf16.gmra.mrb[0].mxu0 %v1652
  %v1714 = vpop.f32.mrb[0].mxu0
  %v1715 = vadd.f32 0.0, %v1714
  %v1716 = vpop.f32.mrb[0].mxu0
  %v1717 = vpop.f32.mrb[0].mxu0
  %v1718 = vadd.f32 0.0, %v1717
  %v1719 = vpop.f32.mrb[0].mxu0
  %1720 = vmatprep.mubr.bf16.mxu0 0
  %1721 = vmatmul.mubr.bf16.gmra.mrb[0].mxu0 %v1655
  %v1722 = vpop.f32.mrb[0].mxu0
  %v1723 = vadd.f32 0.0, %v1722
  %v1724 = vpop.f32.mrb[0].mxu0
  %v1725 = vpop.f32.mrb[0].mxu0
  %v1726 = vadd.f32 0.0, %v1725
  %v1727 = vpop.f32.mrb[0].mxu0
  %1728 = vmatprep.mubr.bf16.mxu0 0
  %1729 = vmatmul.mubr.bf16.gmra.mrb[0].mxu0 %v1658
  %v1730 = vpop.f32.mrb[0].mxu0
  %v1731 = vadd.f32 0.0, %v1730
  %v1732 = vpop.f32.mrb[0].mxu0
  %v1733 = vpop.f32.mrb[0].mxu0
  %v1734 = vadd.f32 0.0, %v1733
  %v1735 = vpop.f32.mrb[0].mxu0
  %1736 = vdwg.mxu0
  %v1738 = vsel %vm1647, %v1523, 0
  %v1741 = vsel %vm1647, %v1524, 0
  %v1744 = vsel %vm1647, %v1525, 0
  %v1747 = vsel %vm1647, %v1526, 0
  %v1750 = vsel %vm1647, %v1587, 0
  %v1753 = vsel %vm1647, %v1588, 0
  %v1756 = vsel %vm1647, %v1589, 0
  %v1759 = vsel %vm1647, %v1590, 0
  %1761 = vmatprep.subr.bf16.mxu0 0
  %1762 = vmatpush1.bf16.xpose.msra.mxu0 %v1750
  %1763 = vmatprep.subr.bf16.mxu0 0
  %1764 = vmatpush1.bf16.xpose.msra.mxu0 %v1753
  %1765 = vmatprep.subr.bf16.mxu0 0
  %1766 = vmatpush1.bf16.xpose.msra.mxu0 %v1756
  %1767 = vmatprep.subr.bf16.mxu0 0
  %1768 = vmatpush1.bf16.xpose.msra.mxu0 %v1759
  %1769 = vmatprep.subr.bf16.mxu0 0
  %1770 = vmatpush1.bf16.xpose.msra.mxu0 0
  %1771 = vmatprep.subr.bf16.mxu0 0
  %1772 = vmatpush1.bf16.xpose.msra.mxu0 0
  %1773 = vmatprep.subr.bf16.mxu0 0
  %1774 = vmatpush1.bf16.xpose.msra.mxu0 0
  %1775 = vmatprep.subr.bf16.mxu0 0
  %1776 = vmatpush1.bf16.xpose.msra.mxu0 0
  %1777 = vmatprep.subr.bf16.mxu0 0
  %1778 = vmatpush1.bf16.xpose.msra.mxu0 0
  %1779 = vmatprep.subr.bf16.mxu0 0
  %1780 = vmatpush1.bf16.xpose.msra.mxu0 0
  %1781 = vmatprep.subr.bf16.mxu0 0
  %1782 = vmatpush1.bf16.xpose.msra.mxu0 0
  %1783 = vmatprep.subr.bf16.mxu0 0
  %1784 = vmatpush1.bf16.xpose.msra.mxu0 0
  %1785 = vmatprep.subr.bf16.mxu0 0
  %1786 = vmatpush1.bf16.xpose.msra.mxu0 0
  %1787 = vmatprep.subr.bf16.mxu0 0
  %1788 = vmatpush1.bf16.xpose.msra.mxu0 0
  %1789 = vmatprep.subr.bf16.mxu0 0
  %1790 = vmatpush1.bf16.xpose.msra.mxu0 0
  %1791 = vmatprep.subr.bf16.mxu0 0
  %1792 = vmatpush1.bf16.xpose.msra.mxu0 0
  %1793 = vmatprep.mubr.bf16.mxu0 0
  %1794 = vmatmul.mubr.bf16.gmra.mrb[0].mxu0 %v1738
  %v1795 = vpop.f32.mrb[0].mxu0
  %v1796 = vadd.f32 0.0, %v1795
  %v1797 = vpop.f32.mrb[0].mxu0
  %v1798 = vpop.f32.mrb[0].mxu0
  %v1799 = vadd.f32 0.0, %v1798
  %v1800 = vpop.f32.mrb[0].mxu0
  %1801 = vmatprep.mubr.bf16.mxu0 0
  %1802 = vmatmul.mubr.bf16.gmra.mrb[0].mxu0 %v1741
  %v1803 = vpop.f32.mrb[0].mxu0
  %v1804 = vadd.f32 0.0, %v1803
  %v1805 = vpop.f32.mrb[0].mxu0
  %v1806 = vpop.f32.mrb[0].mxu0
  %v1807 = vadd.f32 0.0, %v1806
  %v1808 = vpop.f32.mrb[0].mxu0
  %1809 = vmatprep.mubr.bf16.mxu0 0
  %1810 = vmatmul.mubr.bf16.gmra.mrb[0].mxu0 %v1744
  %v1811 = vpop.f32.mrb[0].mxu0
  %v1812 = vadd.f32 0.0, %v1811
  %v1813 = vpop.f32.mrb[0].mxu0
  %v1814 = vpop.f32.mrb[0].mxu0
  %v1815 = vadd.f32 0.0, %v1814
  %v1816 = vpop.f32.mrb[0].mxu0
  %1817 = vmatprep.mubr.bf16.mxu0 0
  %1818 = vmatmul.mubr.bf16.gmra.mrb[0].mxu0 %v1747
  %v1819 = vpop.f32.mrb[0].mxu0
  %v1820 = vadd.f32 0.0, %v1819
  %v1821 = vpop.f32.mrb[0].mxu0
  %v1822 = vpop.f32.mrb[0].mxu0
  %v1823 = vadd.f32 0.0, %v1822
  %v1824 = vpop.f32.mrb[0].mxu0
  %1825 = vdwg.mxu0
  %v1827 = vsel %vm1647, %v1527, 0
  %v1830 = vsel %vm1647, %v1528, 0
  %v1833 = vsel %vm1647, %v1529, 0
  %v1836 = vsel %vm1647, %v1530, 0
  %v1839 = vsel %vm1647, %v1591, 0
  %v1842 = vsel %vm1647, %v1592, 0
  %v1845 = vsel %vm1647, %v1593, 0
  %v1848 = vsel %vm1647, %v1594, 0
  %1850 = vmatprep.subr.bf16.mxu0 0
  %1851 = vmatpush1.bf16.xpose.msra.mxu0 %v1839
  %1852 = vmatprep.subr.bf16.mxu0 0
  %1853 = vmatpush1.bf16.xpose.msra.mxu0 %v1842
  %1854 = vmatprep.subr.bf16.mxu0 0
  %1855 = vmatpush1.bf16.xpose.msra.mxu0 %v1845
  %1856 = vmatprep.subr.bf16.mxu0 0
  %1857 = vmatpush1.bf16.xpose.msra.mxu0 %v1848
  %1858 = vmatprep.subr.bf16.mxu0 0
  %1859 = vmatpush1.bf16.xpose.msra.mxu0 0
  %1860 = vmatprep.subr.bf16.mxu0 0
  %1861 = vmatpush1.bf16.xpose.msra.mxu0 0
  %1862 = vmatprep.subr.bf16.mxu0 0
  %1863 = vmatpush1.bf16.xpose.msra.mxu0 0
  %1864 = vmatprep.subr.bf16.mxu0 0
  %1865 = vmatpush1.bf16.xpose.msra.mxu0 0
  %1866 = vmatprep.subr.bf16.mxu0 0
  %1867 = vmatpush1.bf16.xpose.msra.mxu0 0
  %1868 = vmatprep.subr.bf16.mxu0 0
  %1869 = vmatpush1.bf16.xpose.msra.mxu0 0
  %1870 = vmatprep.subr.bf16.mxu0 0
  %1871 = vmatpush1.bf16.xpose.msra.mxu0 0
  %1872 = vmatprep.subr.bf16.mxu0 0
  %1873 = vmatpush1.bf16.xpose.msra.mxu0 0
  %1874 = vmatprep.subr.bf16.mxu0 0
  %1875 = vmatpush1.bf16.xpose.msra.mxu0 0
  %1876 = vmatprep.subr.bf16.mxu0 0
  %1877 = vmatpush1.bf16.xpose.msra.mxu0 0
  %1878 = vmatprep.subr.bf16.mxu0 0
  %1879 = vmatpush1.bf16.xpose.msra.mxu0 0
  %1880 = vmatprep.subr.bf16.mxu0 0
  %1881 = vmatpush1.bf16.xpose.msra.mxu0 0
  %1882 = vmatprep.mubr.bf16.mxu0 0
  %1883 = vmatmul.mubr.bf16.gmra.mrb[0].mxu0 %v1827
  %v1884 = vpop.f32.mrb[0].mxu0
  %v1885 = vadd.f32 0.0, %v1884
  %v1886 = vpop.f32.mrb[0].mxu0
  %v1887 = vpop.f32.mrb[0].mxu0
  %v1888 = vadd.f32 0.0, %v1887
  %v1889 = vpop.f32.mrb[0].mxu0
  %1890 = vmatprep.mubr.bf16.mxu0 0
  %1891 = vmatmul.mubr.bf16.gmra.mrb[0].mxu0 %v1830
  %v1892 = vpop.f32.mrb[0].mxu0
  %v1893 = vadd.f32 0.0, %v1892
  %v1894 = vpop.f32.mrb[0].mxu0
  %v1895 = vpop.f32.mrb[0].mxu0
  %v1896 = vadd.f32 0.0, %v1895
  %v1897 = vpop.f32.mrb[0].mxu0
  %1898 = vmatprep.mubr.bf16.mxu0 0
  %1899 = vmatmul.mubr.bf16.gmra.mrb[0].mxu0 %v1833
  %v1900 = vpop.f32.mrb[0].mxu0
  %v1901 = vadd.f32 0.0, %v1900
  %v1902 = vpop.f32.mrb[0].mxu0
  %v1903 = vpop.f32.mrb[0].mxu0
  %v1904 = vadd.f32 0.0, %v1903
  %v1905 = vpop.f32.mrb[0].mxu0
  %1906 = vmatprep.mubr.bf16.mxu0 0
  %1907 = vmatmul.mubr.bf16.gmra.mrb[0].mxu0 %v1836
  %v1908 = vpop.f32.mrb[0].mxu0
  %v1909 = vadd.f32 0.0, %v1908
  %v1910 = vpop.f32.mrb[0].mxu0
  %v1911 = vpop.f32.mrb[0].mxu0
  %v1912 = vadd.f32 0.0, %v1911
  %v1913 = vpop.f32.mrb[0].mxu0
  %1914 = vdwg.mxu0
  %v1916 = vsel %vm1647, %v1531, 0
  %v1919 = vsel %vm1647, %v1532, 0
  %v1922 = vsel %vm1647, %v1533, 0
  %v1925 = vsel %vm1647, %v1534, 0
  %v1928 = vsel %vm1647, %v1595, 0
  %v1931 = vsel %vm1647, %v1596, 0
  %v1934 = vsel %vm1647, %v1597, 0
  %v1937 = vsel %vm1647, %v1598, 0
  %1939 = vmatprep.subr.bf16.mxu0 0
  %1940 = vmatpush1.bf16.xpose.msra.mxu0 %v1928
  %1941 = vmatprep.subr.bf16.mxu0 0
  %1942 = vmatpush1.bf16.xpose.msra.mxu0 %v1931
  %1943 = vmatprep.subr.bf16.mxu0 0
  %1944 = vmatpush1.bf16.xpose.msra.mxu0 %v1934
  %1945 = vmatprep.subr.bf16.mxu0 0
  %1946 = vmatpush1.bf16.xpose.msra.mxu0 %v1937
  %1947 = vmatprep.subr.bf16.mxu0 0
  %1948 = vmatpush1.bf16.xpose.msra.mxu0 0
  %1949 = vmatprep.subr.bf16.mxu0 0
  %1950 = vmatpush1.bf16.xpose.msra.mxu0 0
  %1951 = vmatprep.subr.bf16.mxu0 0
  %1952 = vmatpush1.bf16.xpose.msra.mxu0 0
  %1953 = vmatprep.subr.bf16.mxu0 0
  %1954 = vmatpush1.bf16.xpose.msra.mxu0 0
  %1955 = vmatprep.subr.bf16.mxu0 0
  %1956 = vmatpush1.bf16.xpose.msra.mxu0 0
  %1957 = vmatprep.subr.bf16.mxu0 0
  %1958 = vmatpush1.bf16.xpose.msra.mxu0 0
  %1959 = vmatprep.subr.bf16.mxu0 0
  %1960 = vmatpush1.bf16.xpose.msra.mxu0 0
  %1961 = vmatprep.subr.bf16.mxu0 0
  %1962 = vmatpush1.bf16.xpose.msra.mxu0 0
  %1963 = vmatprep.subr.bf16.mxu0 0
  %1964 = vmatpush1.bf16.xpose.msra.mxu0 0
  %1965 = vmatprep.subr.bf16.mxu0 0
  %1966 = vmatpush1.bf16.xpose.msra.mxu0 0
  %1967 = vmatprep.subr.bf16.mxu0 0
  %1968 = vmatpush1.bf16.xpose.msra.mxu0 0
  %1969 = vmatprep.subr.bf16.mxu0 0
  %1970 = vmatpush1.bf16.xpose.msra.mxu0 0
  %1971 = vmatprep.mubr.bf16.mxu0 0
  %1972 = vmatmul.mubr.bf16.gmra.mrb[0].mxu0 %v1916
  %v1973 = vpop.f32.mrb[0].mxu0
  %v1974 = vadd.f32 0.0, %v1973
  %v1975 = vpop.f32.mrb[0].mxu0
  %v1976 = vpop.f32.mrb[0].mxu0
  %v1977 = vadd.f32 0.0, %v1976
  %v1978 = vpop.f32.mrb[0].mxu0
  %1979 = vmatprep.mubr.bf16.mxu0 0
  %1980 = vmatmul.mubr.bf16.gmra.mrb[0].mxu0 %v1919
  %v1981 = vpop.f32.mrb[0].mxu0
  %v1982 = vadd.f32 0.0, %v1981
  %v1983 = vpop.f32.mrb[0].mxu0
  %v1984 = vpop.f32.mrb[0].mxu0
  %v1985 = vadd.f32 0.0, %v1984
  %v1986 = vpop.f32.mrb[0].mxu0
  %1987 = vmatprep.mubr.bf16.mxu0 0
  %1988 = vmatmul.mubr.bf16.gmra.mrb[0].mxu0 %v1922
  %v1989 = vpop.f32.mrb[0].mxu0
  %v1990 = vadd.f32 0.0, %v1989
  %v1991 = vpop.f32.mrb[0].mxu0
  %v1992 = vpop.f32.mrb[0].mxu0
  %v1993 = vadd.f32 0.0, %v1992
  %v1994 = vpop.f32.mrb[0].mxu0
  %1995 = vmatprep.mubr.bf16.mxu0 0
  %1996 = vmatmul.mubr.bf16.gmra.mrb[0].mxu0 %v1925
  %v1997 = vpop.f32.mrb[0].mxu0
  %v1998 = vadd.f32 0.0, %v1997
  %v1999 = vpop.f32.mrb[0].mxu0
  %v2000 = vpop.f32.mrb[0].mxu0
  %v2001 = vadd.f32 0.0, %v2000
  %v2002 = vpop.f32.mrb[0].mxu0
  %2003 = vdwg.mxu0
  %v2005 = vsel %vm1647, %v1535, 0
  %v2008 = vsel %vm1647, %v1536, 0
  %v2011 = vsel %vm1647, %v1537, 0
  %v2014 = vsel %vm1647, %v1538, 0
  %v2017 = vsel %vm1647, %v1599, 0
  %v2020 = vsel %vm1647, %v1600, 0
  %v2023 = vsel %vm1647, %v1601, 0
  %v2026 = vsel %vm1647, %v1602, 0
  %2028 = vmatprep.subr.bf16.mxu0 0
  %2029 = vmatpush1.bf16.xpose.msra.mxu0 %v2017
  %2030 = vmatprep.subr.bf16.mxu0 0
  %2031 = vmatpush1.bf16.xpose.msra.mxu0 %v2020
  %2032 = vmatprep.subr.bf16.mxu0 0
  %2033 = vmatpush1.bf16.xpose.msra.mxu0 %v2023
  %2034 = vmatprep.subr.bf16.mxu0 0
  %2035 = vmatpush1.bf16.xpose.msra.mxu0 %v2026
  %2036 = vmatprep.subr.bf16.mxu0 0
  %2037 = vmatpush1.bf16.xpose.msra.mxu0 0
  %2038 = vmatprep.subr.bf16.mxu0 0
  %2039 = vmatpush1.bf16.xpose.msra.mxu0 0
  %2040 = vmatprep.subr.bf16.mxu0 0
  %2041 = vmatpush1.bf16.xpose.msra.mxu0 0
  %2042 = vmatprep.subr.bf16.mxu0 0
  %2043 = vmatpush1.bf16.xpose.msra.mxu0 0
  %2044 = vmatprep.subr.bf16.mxu0 0
  %2045 = vmatpush1.bf16.xpose.msra.mxu0 0
  %2046 = vmatprep.subr.bf16.mxu0 0
  %2047 = vmatpush1.bf16.xpose.msra.mxu0 0
  %2048 = vmatprep.subr.bf16.mxu0 0
  %2049 = vmatpush1.bf16.xpose.msra.mxu0 0
  %2050 = vmatprep.subr.bf16.mxu0 0
  %2051 = vmatpush1.bf16.xpose.msra.mxu0 0
  %2052 = vmatprep.subr.bf16.mxu0 0
  %2053 = vmatpush1.bf16.xpose.msra.mxu0 0
  %2054 = vmatprep.subr.bf16.mxu0 0
  %2055 = vmatpush1.bf16.xpose.msra.mxu0 0
  %2056 = vmatprep.subr.bf16.mxu0 0
  %2057 = vmatpush1.bf16.xpose.msra.mxu0 0
  %2058 = vmatprep.subr.bf16.mxu0 0
  %2059 = vmatpush1.bf16.xpose.msra.mxu0 0
  %2060 = vmatprep.mubr.bf16.mxu0 0
  %2061 = vmatmul.mubr.bf16.gmra.mrb[0].mxu0 %v2005
  %v2062 = vpop.f32.mrb[0].mxu0
  %v2063 = vadd.f32 0.0, %v2062
  %v2064 = vpop.f32.mrb[0].mxu0
  %v2065 = vpop.f32.mrb[0].mxu0
  %v2066 = vadd.f32 0.0, %v2065
  %v2067 = vpop.f32.mrb[0].mxu0
  %2068 = vmatprep.mubr.bf16.mxu0 0
  %2069 = vmatmul.mubr.bf16.gmra.mrb[0].mxu0 %v2008
  %v2070 = vpop.f32.mrb[0].mxu0
  %v2071 = vadd.f32 0.0, %v2070
  %v2072 = vpop.f32.mrb[0].mxu0
  %v2073 = vpop.f32.mrb[0].mxu0
  %v2074 = vadd.f32 0.0, %v2073
  %v2075 = vpop.f32.mrb[0].mxu0
  %2076 = vmatprep.mubr.bf16.mxu0 0
  %2077 = vmatmul.mubr.bf16.gmra.mrb[0].mxu0 %v2011
  %v2078 = vpop.f32.mrb[0].mxu0
  %v2079 = vadd.f32 0.0, %v2078
  %v2080 = vpop.f32.mrb[0].mxu0
  %v2081 = vpop.f32.mrb[0].mxu0
  %v2082 = vadd.f32 0.0, %v2081
  %v2083 = vpop.f32.mrb[0].mxu0
  %2084 = vmatprep.mubr.bf16.mxu0 0
  %2085 = vmatmul.mubr.bf16.gmra.mrb[0].mxu0 %v2014
  %v2086 = vpop.f32.mrb[0].mxu0
  %v2087 = vadd.f32 0.0, %v2086
  %v2088 = vpop.f32.mrb[0].mxu0
  %v2089 = vpop.f32.mrb[0].mxu0
  %v2090 = vadd.f32 0.0, %v2089
  %v2091 = vpop.f32.mrb[0].mxu0
  %2092 = vdwg.mxu0
  %v2094 = vsel %vm1647, %v1539, 0
  %v2097 = vsel %vm1647, %v1540, 0
  %v2100 = vsel %vm1647, %v1541, 0
  %v2103 = vsel %vm1647, %v1542, 0
  %v2106 = vsel %vm1647, %v1603, 0
  %v2109 = vsel %vm1647, %v1604, 0
  %v2112 = vsel %vm1647, %v1605, 0
  %v2115 = vsel %vm1647, %v1606, 0
  %2117 = vmatprep.subr.bf16.mxu0 0
  %2118 = vmatpush1.bf16.xpose.msra.mxu0 %v2106
  %2119 = vmatprep.subr.bf16.mxu0 0
  %2120 = vmatpush1.bf16.xpose.msra.mxu0 %v2109
  %2121 = vmatprep.subr.bf16.mxu0 0
  %2122 = vmatpush1.bf16.xpose.msra.mxu0 %v2112
  %2123 = vmatprep.subr.bf16.mxu0 0
  %2124 = vmatpush1.bf16.xpose.msra.mxu0 %v2115
  %2125 = vmatprep.subr.bf16.mxu0 0
  %2126 = vmatpush1.bf16.xpose.msra.mxu0 0
  %2127 = vmatprep.subr.bf16.mxu0 0
  %2128 = vmatpush1.bf16.xpose.msra.mxu0 0
  %2129 = vmatprep.subr.bf16.mxu0 0
  %2130 = vmatpush1.bf16.xpose.msra.mxu0 0
  %2131 = vmatprep.subr.bf16.mxu0 0
  %2132 = vmatpush1.bf16.xpose.msra.mxu0 0
  %2133 = vmatprep.subr.bf16.mxu0 0
  %2134 = vmatpush1.bf16.xpose.msra.mxu0 0
  %2135 = vmatprep.subr.bf16.mxu0 0
  %2136 = vmatpush1.bf16.xpose.msra.mxu0 0
  %2137 = vmatprep.subr.bf16.mxu0 0
  %2138 = vmatpush1.bf16.xpose.msra.mxu0 0
  %2139 = vmatprep.subr.bf16.mxu0 0
  %2140 = vmatpush1.bf16.xpose.msra.mxu0 0
  %2141 = vmatprep.subr.bf16.mxu0 0
  %2142 = vmatpush1.bf16.xpose.msra.mxu0 0
  %2143 = vmatprep.subr.bf16.mxu0 0
  %2144 = vmatpush1.bf16.xpose.msra.mxu0 0
  %2145 = vmatprep.subr.bf16.mxu0 0
  %2146 = vmatpush1.bf16.xpose.msra.mxu0 0
  %2147 = vmatprep.subr.bf16.mxu0 0
  %2148 = vmatpush1.bf16.xpose.msra.mxu0 0
  %2149 = vmatprep.mubr.bf16.mxu0 0
  %2150 = vmatmul.mubr.bf16.gmra.mrb[0].mxu0 %v2094
  %v2151 = vpop.f32.mrb[0].mxu0
  %v2152 = vadd.f32 0.0, %v2151
  %v2153 = vpop.f32.mrb[0].mxu0
  %v2154 = vpop.f32.mrb[0].mxu0
  %v2155 = vadd.f32 0.0, %v2154
  %v2156 = vpop.f32.mrb[0].mxu0
  %2157 = vmatprep.mubr.bf16.mxu0 0
  %2158 = vmatmul.mubr.bf16.gmra.mrb[0].mxu0 %v2097
  %v2159 = vpop.f32.mrb[0].mxu0
  %v2160 = vadd.f32 0.0, %v2159
  %v2161 = vpop.f32.mrb[0].mxu0
  %v2162 = vpop.f32.mrb[0].mxu0
  %v2163 = vadd.f32 0.0, %v2162
  %v2164 = vpop.f32.mrb[0].mxu0
  %2165 = vmatprep.mubr.bf16.mxu0 0
  %2166 = vmatmul.mubr.bf16.gmra.mrb[0].mxu0 %v2100
  %v2167 = vpop.f32.mrb[0].mxu0
  %v2168 = vadd.f32 0.0, %v2167
  %v2169 = vpop.f32.mrb[0].mxu0
  %v2170 = vpop.f32.mrb[0].mxu0
  %v2171 = vadd.f32 0.0, %v2170
  %v2172 = vpop.f32.mrb[0].mxu0
  %2173 = vmatprep.mubr.bf16.mxu0 0
  %2174 = vmatmul.mubr.bf16.gmra.mrb[0].mxu0 %v2103
  %v2175 = vpop.f32.mrb[0].mxu0
  %v2176 = vadd.f32 0.0, %v2175
  %v2177 = vpop.f32.mrb[0].mxu0
  %v2178 = vpop.f32.mrb[0].mxu0
  %v2179 = vadd.f32 0.0, %v2178
  %v2180 = vpop.f32.mrb[0].mxu0
  %2181 = vdwg.mxu0
  %v2183 = vsel %vm1647, %v1543, 0
  %v2186 = vsel %vm1647, %v1544, 0
  %v2189 = vsel %vm1647, %v1545, 0
  %v2192 = vsel %vm1647, %v1546, 0
  %v2195 = vsel %vm1647, %v1607, 0
  %v2198 = vsel %vm1647, %v1608, 0
  %v2201 = vsel %vm1647, %v1609, 0
  %v2204 = vsel %vm1647, %v1610, 0
  %2206 = vmatprep.subr.bf16.mxu0 0
  %2207 = vmatpush1.bf16.xpose.msra.mxu0 %v2195
  %2208 = vmatprep.subr.bf16.mxu0 0
  %2209 = vmatpush1.bf16.xpose.msra.mxu0 %v2198
  %2210 = vmatprep.subr.bf16.mxu0 0
  %2211 = vmatpush1.bf16.xpose.msra.mxu0 %v2201
  %2212 = vmatprep.subr.bf16.mxu0 0
  %2213 = vmatpush1.bf16.xpose.msra.mxu0 %v2204
  %2214 = vmatprep.subr.bf16.mxu0 0
  %2215 = vmatpush1.bf16.xpose.msra.mxu0 0
  %2216 = vmatprep.subr.bf16.mxu0 0
  %2217 = vmatpush1.bf16.xpose.msra.mxu0 0
  %2218 = vmatprep.subr.bf16.mxu0 0
  %2219 = vmatpush1.bf16.xpose.msra.mxu0 0
  %2220 = vmatprep.subr.bf16.mxu0 0
  %2221 = vmatpush1.bf16.xpose.msra.mxu0 0
  %2222 = vmatprep.subr.bf16.mxu0 0
  %2223 = vmatpush1.bf16.xpose.msra.mxu0 0
  %2224 = vmatprep.subr.bf16.mxu0 0
  %2225 = vmatpush1.bf16.xpose.msra.mxu0 0
  %2226 = vmatprep.subr.bf16.mxu0 0
  %2227 = vmatpush1.bf16.xpose.msra.mxu0 0
  %2228 = vmatprep.subr.bf16.mxu0 0
  %2229 = vmatpush1.bf16.xpose.msra.mxu0 0
  %2230 = vmatprep.subr.bf16.mxu0 0
  %2231 = vmatpush1.bf16.xpose.msra.mxu0 0
  %2232 = vmatprep.subr.bf16.mxu0 0
  %2233 = vmatpush1.bf16.xpose.msra.mxu0 0
  %2234 = vmatprep.subr.bf16.mxu0 0
  %2235 = vmatpush1.bf16.xpose.msra.mxu0 0
  %2236 = vmatprep.subr.bf16.mxu0 0
  %2237 = vmatpush1.bf16.xpose.msra.mxu0 0
  %2238 = vmatprep.mubr.bf16.mxu0 0
  %2239 = vmatmul.mubr.bf16.gmra.mrb[0].mxu0 %v2183
  %v2240 = vpop.f32.mrb[0].mxu0
  %v2241 = vadd.f32 0.0, %v2240
  %v2242 = vpop.f32.mrb[0].mxu0
  %v2243 = vpop.f32.mrb[0].mxu0
  %v2244 = vadd.f32 0.0, %v2243
  %v2245 = vpop.f32.mrb[0].mxu0
  %2246 = vmatprep.mubr.bf16.mxu0 0
  %2247 = vmatmul.mubr.bf16.gmra.mrb[0].mxu0 %v2186
  %v2248 = vpop.f32.mrb[0].mxu0
  %v2249 = vadd.f32 0.0, %v2248
  %v2250 = vpop.f32.mrb[0].mxu0
  %v2251 = vpop.f32.mrb[0].mxu0
  %v2252 = vadd.f32 0.0, %v2251
  %v2253 = vpop.f32.mrb[0].mxu0
  %2254 = vmatprep.mubr.bf16.mxu0 0
  %2255 = vmatmul.mubr.bf16.gmra.mrb[0].mxu0 %v2189
  %v2256 = vpop.f32.mrb[0].mxu0
  %v2257 = vadd.f32 0.0, %v2256
  %v2258 = vpop.f32.mrb[0].mxu0
  %v2259 = vpop.f32.mrb[0].mxu0
  %v2260 = vadd.f32 0.0, %v2259
  %v2261 = vpop.f32.mrb[0].mxu0
  %2262 = vmatprep.mubr.bf16.mxu0 0
  %2263 = vmatmul.mubr.bf16.gmra.mrb[0].mxu0 %v2192
  %v2264 = vpop.f32.mrb[0].mxu0
  %v2265 = vadd.f32 0.0, %v2264
  %v2266 = vpop.f32.mrb[0].mxu0
  %v2267 = vpop.f32.mrb[0].mxu0
  %v2268 = vadd.f32 0.0, %v2267
  %v2269 = vpop.f32.mrb[0].mxu0
  %2270 = vdwg.mxu0
  %v2272 = vsel %vm1647, %v1547, 0
  %v2275 = vsel %vm1647, %v1548, 0
  %v2278 = vsel %vm1647, %v1549, 0
  %v2281 = vsel %vm1647, %v1550, 0
  %v2284 = vsel %vm1647, %v1611, 0
  %v2287 = vsel %vm1647, %v1612, 0
  %v2290 = vsel %vm1647, %v1613, 0
  %v2293 = vsel %vm1647, %v1614, 0
  %2295 = vmatprep.subr.bf16.mxu0 0
  %2296 = vmatpush1.bf16.xpose.msra.mxu0 %v2284
  %2297 = vmatprep.subr.bf16.mxu0 0
  %2298 = vmatpush1.bf16.xpose.msra.mxu0 %v2287
  %2299 = vmatprep.subr.bf16.mxu0 0
  %2300 = vmatpush1.bf16.xpose.msra.mxu0 %v2290
  %2301 = vmatprep.subr.bf16.mxu0 0
  %2302 = vmatpush1.bf16.xpose.msra.mxu0 %v2293
  %2303 = vmatprep.subr.bf16.mxu0 0
  %2304 = vmatpush1.bf16.xpose.msra.mxu0 0
  %2305 = vmatprep.subr.bf16.mxu0 0
  %2306 = vmatpush1.bf16.xpose.msra.mxu0 0
  %2307 = vmatprep.subr.bf16.mxu0 0
  %2308 = vmatpush1.bf16.xpose.msra.mxu0 0
  %2309 = vmatprep.subr.bf16.mxu0 0
  %2310 = vmatpush1.bf16.xpose.msra.mxu0 0
  %2311 = vmatprep.subr.bf16.mxu0 0
  %2312 = vmatpush1.bf16.xpose.msra.mxu0 0
  %2313 = vmatprep.subr.bf16.mxu0 0
  %2314 = vmatpush1.bf16.xpose.msra.mxu0 0
  %2315 = vmatprep.subr.bf16.mxu0 0
  %2316 = vmatpush1.bf16.xpose.msra.mxu0 0
  %2317 = vmatprep.subr.bf16.mxu0 0
  %2318 = vmatpush1.bf16.xpose.msra.mxu0 0
  %2319 = vmatprep.subr.bf16.mxu0 0
  %2320 = vmatpush1.bf16.xpose.msra.mxu0 0
  %2321 = vmatprep.subr.bf16.mxu0 0
  %2322 = vmatpush1.bf16.xpose.msra.mxu0 0
  %2323 = vmatprep.subr.bf16.mxu0 0
  %2324 = vmatpush1.bf16.xpose.msra.mxu0 0
  %2325 = vmatprep.subr.bf16.mxu0 0
  %2326 = vmatpush1.bf16.xpose.msra.mxu0 0
  %2327 = vmatprep.mubr.bf16.mxu0 0
  %2328 = vmatmul.mubr.bf16.gmra.mrb[0].mxu0 %v2272
  %v2329 = vpop.f32.mrb[0].mxu0
  %v2330 = vadd.f32 0.0, %v2329
  %v2331 = vpop.f32.mrb[0].mxu0
  %v2332 = vpop.f32.mrb[0].mxu0
  %v2333 = vadd.f32 0.0, %v2332
  %v2334 = vpop.f32.mrb[0].mxu0
  %2335 = vmatprep.mubr.bf16.mxu0 0
  %2336 = vmatmul.mubr.bf16.gmra.mrb[0].mxu0 %v2275
  %v2337 = vpop.f32.mrb[0].mxu0
  %v2338 = vadd.f32 0.0, %v2337
  %v2339 = vpop.f32.mrb[0].mxu0
  %v2340 = vpop.f32.mrb[0].mxu0
  %v2341 = vadd.f32 0.0, %v2340
  %v2342 = vpop.f32.mrb[0].mxu0
  %2343 = vmatprep.mubr.bf16.mxu0 0
  %2344 = vmatmul.mubr.bf16.gmra.mrb[0].mxu0 %v2278
  %v2345 = vpop.f32.mrb[0].mxu0
  %v2346 = vadd.f32 0.0, %v2345
  %v2347 = vpop.f32.mrb[0].mxu0
  %v2348 = vpop.f32.mrb[0].mxu0
  %v2349 = vadd.f32 0.0, %v2348
  %v2350 = vpop.f32.mrb[0].mxu0
  %2351 = vmatprep.mubr.bf16.mxu0 0
  %2352 = vmatmul.mubr.bf16.gmra.mrb[0].mxu0 %v2281
  %v2353 = vpop.f32.mrb[0].mxu0
  %v2354 = vadd.f32 0.0, %v2353
  %v2355 = vpop.f32.mrb[0].mxu0
  %v2356 = vpop.f32.mrb[0].mxu0
  %v2357 = vadd.f32 0.0, %v2356
  %v2358 = vpop.f32.mrb[0].mxu0
  %2359 = vdwg.mxu0
  %v2361 = vsel %vm1647, %v1551, 0
  %v2364 = vsel %vm1647, %v1552, 0
  %v2367 = vsel %vm1647, %v1553, 0
  %v2370 = vsel %vm1647, %v1554, 0
  %v2373 = vsel %vm1647, %v1615, 0
  %v2376 = vsel %vm1647, %v1616, 0
  %v2379 = vsel %vm1647, %v1617, 0
  %v2382 = vsel %vm1647, %v1618, 0
  %2384 = vmatprep.subr.bf16.mxu0 0
  %2385 = vmatpush1.bf16.xpose.msra.mxu0 %v2373
  %2386 = vmatprep.subr.bf16.mxu0 0
  %2387 = vmatpush1.bf16.xpose.msra.mxu0 %v2376
  %2388 = vmatprep.subr.bf16.mxu0 0
  %2389 = vmatpush1.bf16.xpose.msra.mxu0 %v2379
  %2390 = vmatprep.subr.bf16.mxu0 0
  %2391 = vmatpush1.bf16.xpose.msra.mxu0 %v2382
  %2392 = vmatprep.subr.bf16.mxu0 0
  %2393 = vmatpush1.bf16.xpose.msra.mxu0 0
  %2394 = vmatprep.subr.bf16.mxu0 0
  %2395 = vmatpush1.bf16.xpose.msra.mxu0 0
  %2396 = vmatprep.subr.bf16.mxu0 0
  %2397 = vmatpush1.bf16.xpose.msra.mxu0 0
  %2398 = vmatprep.subr.bf16.mxu0 0
  %2399 = vmatpush1.bf16.xpose.msra.mxu0 0
  %2400 = vmatprep.subr.bf16.mxu0 0
  %2401 = vmatpush1.bf16.xpose.msra.mxu0 0
  %2402 = vmatprep.subr.bf16.mxu0 0
  %2403 = vmatpush1.bf16.xpose.msra.mxu0 0
  %2404 = vmatprep.subr.bf16.mxu0 0
  %2405 = vmatpush1.bf16.xpose.msra.mxu0 0
  %2406 = vmatprep.subr.bf16.mxu0 0
  %2407 = vmatpush1.bf16.xpose.msra.mxu0 0
  %2408 = vmatprep.subr.bf16.mxu0 0
  %2409 = vmatpush1.bf16.xpose.msra.mxu0 0
  %2410 = vmatprep.subr.bf16.mxu0 0
  %2411 = vmatpush1.bf16.xpose.msra.mxu0 0
  %2412 = vmatprep.subr.bf16.mxu0 0
  %2413 = vmatpush1.bf16.xpose.msra.mxu0 0
  %2414 = vmatprep.subr.bf16.mxu0 0
  %2415 = vmatpush1.bf16.xpose.msra.mxu0 0
  %2416 = vmatprep.mubr.bf16.mxu0 0
  %2417 = vmatmul.mubr.bf16.gmra.mrb[0].mxu0 %v2361
  %v2418 = vpop.f32.mrb[0].mxu0
  %v2419 = vadd.f32 0.0, %v2418
  %v2420 = vpop.f32.mrb[0].mxu0
  %v2421 = vpop.f32.mrb[0].mxu0
  %v2422 = vadd.f32 0.0, %v2421
  %v2423 = vpop.f32.mrb[0].mxu0
  %2424 = vmatprep.mubr.bf16.mxu0 0
  %2425 = vmatmul.mubr.bf16.gmra.mrb[0].mxu0 %v2364
  %v2426 = vpop.f32.mrb[0].mxu0
  %v2427 = vadd.f32 0.0, %v2426
  %v2428 = vpop.f32.mrb[0].mxu0
  %v2429 = vpop.f32.mrb[0].mxu0
  %v2430 = vadd.f32 0.0, %v2429
  %v2431 = vpop.f32.mrb[0].mxu0
  %2432 = vmatprep.mubr.bf16.mxu0 0
  %2433 = vmatmul.mubr.bf16.gmra.mrb[0].mxu0 %v2367
  %v2434 = vpop.f32.mrb[0].mxu0
  %v2435 = vadd.f32 0.0, %v2434
  %v2436 = vpop.f32.mrb[0].mxu0
  %v2437 = vpop.f32.mrb[0].mxu0
  %v2438 = vadd.f32 0.0, %v2437
  %v2439 = vpop.f32.mrb[0].mxu0
  %2440 = vmatprep.mubr.bf16.mxu0 0
  %2441 = vmatmul.mubr.bf16.gmra.mrb[0].mxu0 %v2370
  %v2442 = vpop.f32.mrb[0].mxu0
  %v2443 = vadd.f32 0.0, %v2442
  %v2444 = vpop.f32.mrb[0].mxu0
  %v2445 = vpop.f32.mrb[0].mxu0
  %v2446 = vadd.f32 0.0, %v2445
  %v2447 = vpop.f32.mrb[0].mxu0
  %2448 = vdwg.mxu0
  %v2450 = vsel %vm1647, %v1555, 0
  %v2453 = vsel %vm1647, %v1556, 0
  %v2456 = vsel %vm1647, %v1557, 0
  %v2459 = vsel %vm1647, %v1558, 0
  %v2462 = vsel %vm1647, %v1619, 0
  %v2465 = vsel %vm1647, %v1620, 0
  %v2468 = vsel %vm1647, %v1621, 0
  %v2471 = vsel %vm1647, %v1622, 0
  %2473 = vmatprep.subr.bf16.mxu0 0
  %2474 = vmatpush1.bf16.xpose.msra.mxu0 %v2462
  %2475 = vmatprep.subr.bf16.mxu0 0
  %2476 = vmatpush1.bf16.xpose.msra.mxu0 %v2465
  %2477 = vmatprep.subr.bf16.mxu0 0
  %2478 = vmatpush1.bf16.xpose.msra.mxu0 %v2468
  %2479 = vmatprep.subr.bf16.mxu0 0
  %2480 = vmatpush1.bf16.xpose.msra.mxu0 %v2471
  %2481 = vmatprep.subr.bf16.mxu0 0
  %2482 = vmatpush1.bf16.xpose.msra.mxu0 0
  %2483 = vmatprep.subr.bf16.mxu0 0
  %2484 = vmatpush1.bf16.xpose.msra.mxu0 0
  %2485 = vmatprep.subr.bf16.mxu0 0
  %2486 = vmatpush1.bf16.xpose.msra.mxu0 0
  %2487 = vmatprep.subr.bf16.mxu0 0
  %2488 = vmatpush1.bf16.xpose.msra.mxu0 0
  %2489 = vmatprep.subr.bf16.mxu0 0
  %2490 = vmatpush1.bf16.xpose.msra.mxu0 0
  %2491 = vmatprep.subr.bf16.mxu0 0
  %2492 = vmatpush1.bf16.xpose.msra.mxu0 0
  %2493 = vmatprep.subr.bf16.mxu0 0
  %2494 = vmatpush1.bf16.xpose.msra.mxu0 0
  %2495 = vmatprep.subr.bf16.mxu0 0
  %2496 = vmatpush1.bf16.xpose.msra.mxu0 0
  %2497 = vmatprep.subr.bf16.mxu0 0
  %2498 = vmatpush1.bf16.xpose.msra.mxu0 0
  %2499 = vmatprep.subr.bf16.mxu0 0
  %2500 = vmatpush1.bf16.xpose.msra.mxu0 0
  %2501 = vmatprep.subr.bf16.mxu0 0
  %2502 = vmatpush1.bf16.xpose.msra.mxu0 0
  %2503 = vmatprep.subr.bf16.mxu0 0
  %2504 = vmatpush1.bf16.xpose.msra.mxu0 0
  %2505 = vmatprep.mubr.bf16.mxu0 0
  %2506 = vmatmul.mubr.bf16.gmra.mrb[0].mxu0 %v2450
  %v2507 = vpop.f32.mrb[0].mxu0
  %v2508 = vadd.f32 0.0, %v2507
  %v2509 = vpop.f32.mrb[0].mxu0
  %v2510 = vpop.f32.mrb[0].mxu0
  %v2511 = vadd.f32 0.0, %v2510
  %v2512 = vpop.f32.mrb[0].mxu0
  %2513 = vmatprep.mubr.bf16.mxu0 0
  %2514 = vmatmul.mubr.bf16.gmra.mrb[0].mxu0 %v2453
  %v2515 = vpop.f32.mrb[0].mxu0
  %v2516 = vadd.f32 0.0, %v2515
  %v2517 = vpop.f32.mrb[0].mxu0
  %v2518 = vpop.f32.mrb[0].mxu0
  %v2519 = vadd.f32 0.0, %v2518
  %v2520 = vpop.f32.mrb[0].mxu0
  %2521 = vmatprep.mubr.bf16.mxu0 0
  %2522 = vmatmul.mubr.bf16.gmra.mrb[0].mxu0 %v2456
  %v2523 = vpop.f32.mrb[0].mxu0
  %v2524 = vadd.f32 0.0, %v2523
  %v2525 = vpop.f32.mrb[0].mxu0
  %v2526 = vpop.f32.mrb[0].mxu0
  %v2527 = vadd.f32 0.0, %v2526
  %v2528 = vpop.f32.mrb[0].mxu0
  %2529 = vmatprep.mubr.bf16.mxu0 0
  %2530 = vmatmul.mubr.bf16.gmra.mrb[0].mxu0 %v2459
  %v2531 = vpop.f32.mrb[0].mxu0
  %v2532 = vadd.f32 0.0, %v2531
  %v2533 = vpop.f32.mrb[0].mxu0
  %v2534 = vpop.f32.mrb[0].mxu0
  %v2535 = vadd.f32 0.0, %v2534
  %v2536 = vpop.f32.mrb[0].mxu0
  %2537 = vdwg.mxu0
  %v2539 = vsel %vm1647, %v1559, 0
  %v2542 = vsel %vm1647, %v1560, 0
  %v2545 = vsel %vm1647, %v1561, 0
  %v2548 = vsel %vm1647, %v1562, 0
  %v2551 = vsel %vm1647, %v1623, 0
  %v2554 = vsel %vm1647, %v1624, 0
  %v2557 = vsel %vm1647, %v1625, 0
  %v2560 = vsel %vm1647, %v1626, 0
  %2562 = vmatprep.subr.bf16.mxu0 0
  %2563 = vmatpush1.bf16.xpose.msra.mxu0 %v2551
  %2564 = vmatprep.subr.bf16.mxu0 0
  %2565 = vmatpush1.bf16.xpose.msra.mxu0 %v2554
  %2566 = vmatprep.subr.bf16.mxu0 0
  %2567 = vmatpush1.bf16.xpose.msra.mxu0 %v2557
  %2568 = vmatprep.subr.bf16.mxu0 0
  %2569 = vmatpush1.bf16.xpose.msra.mxu0 %v2560
  %2570 = vmatprep.subr.bf16.mxu0 0
  %2571 = vmatpush1.bf16.xpose.msra.mxu0 0
  %2572 = vmatprep.subr.bf16.mxu0 0
  %2573 = vmatpush1.bf16.xpose.msra.mxu0 0
  %2574 = vmatprep.subr.bf16.mxu0 0
  %2575 = vmatpush1.bf16.xpose.msra.mxu0 0
  %2576 = vmatprep.subr.bf16.mxu0 0
  %2577 = vmatpush1.bf16.xpose.msra.mxu0 0
  %2578 = vmatprep.subr.bf16.mxu0 0
  %2579 = vmatpush1.bf16.xpose.msra.mxu0 0
  %2580 = vmatprep.subr.bf16.mxu0 0
  %2581 = vmatpush1.bf16.xpose.msra.mxu0 0
  %2582 = vmatprep.subr.bf16.mxu0 0
  %2583 = vmatpush1.bf16.xpose.msra.mxu0 0
  %2584 = vmatprep.subr.bf16.mxu0 0
  %2585 = vmatpush1.bf16.xpose.msra.mxu0 0
  %2586 = vmatprep.subr.bf16.mxu0 0
  %2587 = vmatpush1.bf16.xpose.msra.mxu0 0
  %2588 = vmatprep.subr.bf16.mxu0 0
  %2589 = vmatpush1.bf16.xpose.msra.mxu0 0
  %2590 = vmatprep.subr.bf16.mxu0 0
  %2591 = vmatpush1.bf16.xpose.msra.mxu0 0
  %2592 = vmatprep.subr.bf16.mxu0 0
  %2593 = vmatpush1.bf16.xpose.msra.mxu0 0
  %2594 = vmatprep.mubr.bf16.mxu0 0
  %2595 = vmatmul.mubr.bf16.gmra.mrb[0].mxu0 %v2539
  %v2596 = vpop.f32.mrb[0].mxu0
  %v2597 = vadd.f32 0.0, %v2596
  %v2598 = vpop.f32.mrb[0].mxu0
  %v2599 = vpop.f32.mrb[0].mxu0
  %v2600 = vadd.f32 0.0, %v2599
  %v2601 = vpop.f32.mrb[0].mxu0
  %2602 = vmatprep.mubr.bf16.mxu0 0
  %2603 = vmatmul.mubr.bf16.gmra.mrb[0].mxu0 %v2542
  %v2604 = vpop.f32.mrb[0].mxu0
  %v2605 = vadd.f32 0.0, %v2604
  %v2606 = vpop.f32.mrb[0].mxu0
  %v2607 = vpop.f32.mrb[0].mxu0
  %v2608 = vadd.f32 0.0, %v2607
  %v2609 = vpop.f32.mrb[0].mxu0
  %2610 = vmatprep.mubr.bf16.mxu0 0
  %2611 = vmatmul.mubr.bf16.gmra.mrb[0].mxu0 %v2545
  %v2612 = vpop.f32.mrb[0].mxu0
  %v2613 = vadd.f32 0.0, %v2612
  %v2614 = vpop.f32.mrb[0].mxu0
  %v2615 = vpop.f32.mrb[0].mxu0
  %v2616 = vadd.f32 0.0, %v2615
  %v2617 = vpop.f32.mrb[0].mxu0
  %2618 = vmatprep.mubr.bf16.mxu0 0
  %2619 = vmatmul.mubr.bf16.gmra.mrb[0].mxu0 %v2548
  %v2620 = vpop.f32.mrb[0].mxu0
  %v2621 = vadd.f32 0.0, %v2620
  %v2622 = vpop.f32.mrb[0].mxu0
  %v2623 = vpop.f32.mrb[0].mxu0
  %v2624 = vadd.f32 0.0, %v2623
  %v2625 = vpop.f32.mrb[0].mxu0
  %2626 = vdwg.mxu0
  %v2628 = vsel %vm1647, %v1563, 0
  %v2631 = vsel %vm1647, %v1564, 0
  %v2634 = vsel %vm1647, %v1565, 0
  %v2637 = vsel %vm1647, %v1566, 0
  %v2640 = vsel %vm1647, %v1627, 0
  %v2643 = vsel %vm1647, %v1628, 0
  %v2646 = vsel %vm1647, %v1629, 0
  %v2649 = vsel %vm1647, %v1630, 0
  %2651 = vmatprep.subr.bf16.mxu0 0
  %2652 = vmatpush1.bf16.xpose.msra.mxu0 %v2640
  %2653 = vmatprep.subr.bf16.mxu0 0
  %2654 = vmatpush1.bf16.xpose.msra.mxu0 %v2643
  %2655 = vmatprep.subr.bf16.mxu0 0
  %2656 = vmatpush1.bf16.xpose.msra.mxu0 %v2646
  %2657 = vmatprep.subr.bf16.mxu0 0
  %2658 = vmatpush1.bf16.xpose.msra.mxu0 %v2649
  %2659 = vmatprep.subr.bf16.mxu0 0
  %2660 = vmatpush1.bf16.xpose.msra.mxu0 0
  %2661 = vmatprep.subr.bf16.mxu0 0
  %2662 = vmatpush1.bf16.xpose.msra.mxu0 0
  %2663 = vmatprep.subr.bf16.mxu0 0
  %2664 = vmatpush1.bf16.xpose.msra.mxu0 0
  %2665 = vmatprep.subr.bf16.mxu0 0
  %2666 = vmatpush1.bf16.xpose.msra.mxu0 0
  %2667 = vmatprep.subr.bf16.mxu0 0
  %2668 = vmatpush1.bf16.xpose.msra.mxu0 0
  %2669 = vmatprep.subr.bf16.mxu0 0
  %2670 = vmatpush1.bf16.xpose.msra.mxu0 0
  %2671 = vmatprep.subr.bf16.mxu0 0
  %2672 = vmatpush1.bf16.xpose.msra.mxu0 0
  %2673 = vmatprep.subr.bf16.mxu0 0
  %2674 = vmatpush1.bf16.xpose.msra.mxu0 0
  %2675 = vmatprep.subr.bf16.mxu0 0
  %2676 = vmatpush1.bf16.xpose.msra.mxu0 0
  %2677 = vmatprep.subr.bf16.mxu0 0
  %2678 = vmatpush1.bf16.xpose.msra.mxu0 0
  %2679 = vmatprep.subr.bf16.mxu0 0
  %2680 = vmatpush1.bf16.xpose.msra.mxu0 0
  %2681 = vmatprep.subr.bf16.mxu0 0
  %2682 = vmatpush1.bf16.xpose.msra.mxu0 0
  %2683 = vmatprep.mubr.bf16.mxu0 0
  %2684 = vmatmul.mubr.bf16.gmra.mrb[0].mxu0 %v2628
  %v2685 = vpop.f32.mrb[0].mxu0
  %v2686 = vadd.f32 0.0, %v2685
  %v2687 = vpop.f32.mrb[0].mxu0
  %v2688 = vpop.f32.mrb[0].mxu0
  %v2689 = vadd.f32 0.0, %v2688
  %v2690 = vpop.f32.mrb[0].mxu0
  %2691 = vmatprep.mubr.bf16.mxu0 0
  %2692 = vmatmul.mubr.bf16.gmra.mrb[0].mxu0 %v2631
  %v2693 = vpop.f32.mrb[0].mxu0
  %v2694 = vadd.f32 0.0, %v2693
  %v2695 = vpop.f32.mrb[0].mxu0
  %v2696 = vpop.f32.mrb[0].mxu0
  %v2697 = vadd.f32 0.0, %v2696
  %v2698 = vpop.f32.mrb[0].mxu0
  %2699 = vmatprep.mubr.bf16.mxu0 0
  %2700 = vmatmul.mubr.bf16.gmra.mrb[0].mxu0 %v2634
  %v2701 = vpop.f32.mrb[0].mxu0
  %v2702 = vadd.f32 0.0, %v2701
  %v2703 = vpop.f32.mrb[0].mxu0
  %v2704 = vpop.f32.mrb[0].mxu0
  %v2705 = vadd.f32 0.0, %v2704
  %v2706 = vpop.f32.mrb[0].mxu0
  %2707 = vmatprep.mubr.bf16.mxu0 0
  %2708 = vmatmul.mubr.bf16.gmra.mrb[0].mxu0 %v2637
  %v2709 = vpop.f32.mrb[0].mxu0
  %v2710 = vadd.f32 0.0, %v2709
  %v2711 = vpop.f32.mrb[0].mxu0
  %v2712 = vpop.f32.mrb[0].mxu0
  %v2713 = vadd.f32 0.0, %v2712
  %v2714 = vpop.f32.mrb[0].mxu0
  %2715 = vdwg.mxu0
  %v2717 = vsel %vm1647, %v1567, 0
  %v2720 = vsel %vm1647, %v1568, 0
  %v2723 = vsel %vm1647, %v1569, 0
  %v2726 = vsel %vm1647, %v1570, 0
  %v2729 = vsel %vm1647, %v1631, 0
  %v2732 = vsel %vm1647, %v1632, 0
  %v2735 = vsel %vm1647, %v1633, 0
  %v2738 = vsel %vm1647, %v1634, 0
  %2740 = vmatprep.subr.bf16.mxu0 0
  %2741 = vmatpush1.bf16.xpose.msra.mxu0 %v2729
  %2742 = vmatprep.subr.bf16.mxu0 0
  %2743 = vmatpush1.bf16.xpose.msra.mxu0 %v2732
  %2744 = vmatprep.subr.bf16.mxu0 0
  %2745 = vmatpush1.bf16.xpose.msra.mxu0 %v2735
  %2746 = vmatprep.subr.bf16.mxu0 0
  %2747 = vmatpush1.bf16.xpose.msra.mxu0 %v2738
  %2748 = vmatprep.subr.bf16.mxu0 0
  %2749 = vmatpush1.bf16.xpose.msra.mxu0 0
  %2750 = vmatprep.subr.bf16.mxu0 0
  %2751 = vmatpush1.bf16.xpose.msra.mxu0 0
  %2752 = vmatprep.subr.bf16.mxu0 0
  %2753 = vmatpush1.bf16.xpose.msra.mxu0 0
  %2754 = vmatprep.subr.bf16.mxu0 0
  %2755 = vmatpush1.bf16.xpose.msra.mxu0 0
  %2756 = vmatprep.subr.bf16.mxu0 0
  %2757 = vmatpush1.bf16.xpose.msra.mxu0 0
  %2758 = vmatprep.subr.bf16.mxu0 0
  %2759 = vmatpush1.bf16.xpose.msra.mxu0 0
  %2760 = vmatprep.subr.bf16.mxu0 0
  %2761 = vmatpush1.bf16.xpose.msra.mxu0 0
  %2762 = vmatprep.subr.bf16.mxu0 0
  %2763 = vmatpush1.bf16.xpose.msra.mxu0 0
  %2764 = vmatprep.subr.bf16.mxu0 0
  %2765 = vmatpush1.bf16.xpose.msra.mxu0 0
  %2766 = vmatprep.subr.bf16.mxu0 0
  %2767 = vmatpush1.bf16.xpose.msra.mxu0 0
  %2768 = vmatprep.subr.bf16.mxu0 0
  %2769 = vmatpush1.bf16.xpose.msra.mxu0 0
  %2770 = vmatprep.subr.bf16.mxu0 0
  %2771 = vmatpush1.bf16.xpose.msra.mxu0 0
  %2772 = vmatprep.mubr.bf16.mxu0 0
  %2773 = vmatmul.mubr.bf16.gmra.mrb[0].mxu0 %v2717
  %v2774 = vpop.f32.mrb[0].mxu0
  %v2775 = vadd.f32 0.0, %v2774
  %v2776 = vpop.f32.mrb[0].mxu0
  %v2777 = vpop.f32.mrb[0].mxu0
  %v2778 = vadd.f32 0.0, %v2777
  %v2779 = vpop.f32.mrb[0].mxu0
  %2780 = vmatprep.mubr.bf16.mxu0 0
  %2781 = vmatmul.mubr.bf16.gmra.mrb[0].mxu0 %v2720
  %v2782 = vpop.f32.mrb[0].mxu0
  %v2783 = vadd.f32 0.0, %v2782
  %v2784 = vpop.f32.mrb[0].mxu0
  %v2785 = vpop.f32.mrb[0].mxu0
  %v2786 = vadd.f32 0.0, %v2785
  %v2787 = vpop.f32.mrb[0].mxu0
  %2788 = vmatprep.mubr.bf16.mxu0 0
  %2789 = vmatmul.mubr.bf16.gmra.mrb[0].mxu0 %v2723
  %v2790 = vpop.f32.mrb[0].mxu0
  %v2791 = vadd.f32 0.0, %v2790
  %v2792 = vpop.f32.mrb[0].mxu0
  %v2793 = vpop.f32.mrb[0].mxu0
  %v2794 = vadd.f32 0.0, %v2793
  %v2795 = vpop.f32.mrb[0].mxu0
  %2796 = vmatprep.mubr.bf16.mxu0 0
  %2797 = vmatmul.mubr.bf16.gmra.mrb[0].mxu0 %v2726
  %v2798 = vpop.f32.mrb[0].mxu0
  %v2799 = vadd.f32 0.0, %v2798
  %v2800 = vpop.f32.mrb[0].mxu0
  %v2801 = vpop.f32.mrb[0].mxu0
  %v2802 = vadd.f32 0.0, %v2801
  %v2803 = vpop.f32.mrb[0].mxu0
  %2804 = vdwg.mxu0
  %v2806 = vsel %vm1647, %v1571, 0
  %v2809 = vsel %vm1647, %v1572, 0
  %v2812 = vsel %vm1647, %v1573, 0
  %v2815 = vsel %vm1647, %v1574, 0
  %v2818 = vsel %vm1647, %v1635, 0
  %v2821 = vsel %vm1647, %v1636, 0
  %v2824 = vsel %vm1647, %v1637, 0
  %v2827 = vsel %vm1647, %v1638, 0
  %2829 = vmatprep.subr.bf16.mxu0 0
  %2830 = vmatpush1.bf16.xpose.msra.mxu0 %v2818
  %2831 = vmatprep.subr.bf16.mxu0 0
  %2832 = vmatpush1.bf16.xpose.msra.mxu0 %v2821
  %2833 = vmatprep.subr.bf16.mxu0 0
  %2834 = vmatpush1.bf16.xpose.msra.mxu0 %v2824
  %2835 = vmatprep.subr.bf16.mxu0 0
  %2836 = vmatpush1.bf16.xpose.msra.mxu0 %v2827
  %2837 = vmatprep.subr.bf16.mxu0 0
  %2838 = vmatpush1.bf16.xpose.msra.mxu0 0
  %2839 = vmatprep.subr.bf16.mxu0 0
  %2840 = vmatpush1.bf16.xpose.msra.mxu0 0
  %2841 = vmatprep.subr.bf16.mxu0 0
  %2842 = vmatpush1.bf16.xpose.msra.mxu0 0
  %2843 = vmatprep.subr.bf16.mxu0 0
  %2844 = vmatpush1.bf16.xpose.msra.mxu0 0
  %2845 = vmatprep.subr.bf16.mxu0 0
  %2846 = vmatpush1.bf16.xpose.msra.mxu0 0
  %2847 = vmatprep.subr.bf16.mxu0 0
  %2848 = vmatpush1.bf16.xpose.msra.mxu0 0
  %2849 = vmatprep.subr.bf16.mxu0 0
  %2850 = vmatpush1.bf16.xpose.msra.mxu0 0
  %2851 = vmatprep.subr.bf16.mxu0 0
  %2852 = vmatpush1.bf16.xpose.msra.mxu0 0
  %2853 = vmatprep.subr.bf16.mxu0 0
  %2854 = vmatpush1.bf16.xpose.msra.mxu0 0
  %2855 = vmatprep.subr.bf16.mxu0 0
  %2856 = vmatpush1.bf16.xpose.msra.mxu0 0
  %2857 = vmatprep.subr.bf16.mxu0 0
  %2858 = vmatpush1.bf16.xpose.msra.mxu0 0
  %2859 = vmatprep.subr.bf16.mxu0 0
  %2860 = vmatpush1.bf16.xpose.msra.mxu0 0
  %2861 = vmatprep.mubr.bf16.mxu0 0
  %2862 = vmatmul.mubr.bf16.gmra.mrb[0].mxu0 %v2806
  %v2863 = vpop.f32.mrb[0].mxu0
  %v2864 = vadd.f32 0.0, %v2863
  %v2865 = vpop.f32.mrb[0].mxu0
  %v2866 = vpop.f32.mrb[0].mxu0
  %v2867 = vadd.f32 0.0, %v2866
  %v2868 = vpop.f32.mrb[0].mxu0
  %2869 = vmatprep.mubr.bf16.mxu0 0
  %2870 = vmatmul.mubr.bf16.gmra.mrb[0].mxu0 %v2809
  %v2871 = vpop.f32.mrb[0].mxu0
  %v2872 = vadd.f32 0.0, %v2871
  %v2873 = vpop.f32.mrb[0].mxu0
  %v2874 = vpop.f32.mrb[0].mxu0
  %v2875 = vadd.f32 0.0, %v2874
  %v2876 = vpop.f32.mrb[0].mxu0
  %2877 = vmatprep.mubr.bf16.mxu0 0
  %2878 = vmatmul.mubr.bf16.gmra.mrb[0].mxu0 %v2812
  %v2879 = vpop.f32.mrb[0].mxu0
  %v2880 = vadd.f32 0.0, %v2879
  %v2881 = vpop.f32.mrb[0].mxu0
  %v2882 = vpop.f32.mrb[0].mxu0
  %v2883 = vadd.f32 0.0, %v2882
  %v2884 = vpop.f32.mrb[0].mxu0
  %2885 = vmatprep.mubr.bf16.mxu0 0
  %2886 = vmatmul.mubr.bf16.gmra.mrb[0].mxu0 %v2815
  %v2887 = vpop.f32.mrb[0].mxu0
  %v2888 = vadd.f32 0.0, %v2887
  %v2889 = vpop.f32.mrb[0].mxu0
  %v2890 = vpop.f32.mrb[0].mxu0
  %v2891 = vadd.f32 0.0, %v2890
  %v2892 = vpop.f32.mrb[0].mxu0
  %2893 = vdwg.mxu0
  %v2895 = vsel %vm1647, %v1575, 0
  %v2898 = vsel %vm1647, %v1576, 0
  %v2901 = vsel %vm1647, %v1577, 0
  %v2904 = vsel %vm1647, %v1578, 0
  %v2907 = vsel %vm1647, %v1639, 0
  %v2910 = vsel %vm1647, %v1640, 0
  %v2913 = vsel %vm1647, %v1641, 0
  %v2916 = vsel %vm1647, %v1642, 0
  %2918 = vmatprep.subr.bf16.mxu0 0
  %2919 = vmatpush1.bf16.xpose.msra.mxu0 %v2907
  %2920 = vmatprep.subr.bf16.mxu0 0
  %2921 = vmatpush1.bf16.xpose.msra.mxu0 %v2910
  %2922 = vmatprep.subr.bf16.mxu0 0
  %2923 = vmatpush1.bf16.xpose.msra.mxu0 %v2913
  %2924 = vmatprep.subr.bf16.mxu0 0
  %2925 = vmatpush1.bf16.xpose.msra.mxu0 %v2916
  %2926 = vmatprep.subr.bf16.mxu0 0
  %2927 = vmatpush1.bf16.xpose.msra.mxu0 0
  %2928 = vmatprep.subr.bf16.mxu0 0
  %2929 = vmatpush1.bf16.xpose.msra.mxu0 0
  %2930 = vmatprep.subr.bf16.mxu0 0
  %2931 = vmatpush1.bf16.xpose.msra.mxu0 0
  %2932 = vmatprep.subr.bf16.mxu0 0
  %2933 = vmatpush1.bf16.xpose.msra.mxu0 0
  %2934 = vmatprep.subr.bf16.mxu0 0
  %2935 = vmatpush1.bf16.xpose.msra.mxu0 0
  %2936 = vmatprep.subr.bf16.mxu0 0
  %2937 = vmatpush1.bf16.xpose.msra.mxu0 0
  %2938 = vmatprep.subr.bf16.mxu0 0
  %2939 = vmatpush1.bf16.xpose.msra.mxu0 0
  %2940 = vmatprep.subr.bf16.mxu0 0
  %2941 = vmatpush1.bf16.xpose.msra.mxu0 0
  %2942 = vmatprep.subr.bf16.mxu0 0
  %2943 = vmatpush1.bf16.xpose.msra.mxu0 0
  %2944 = vmatprep.subr.bf16.mxu0 0
  %2945 = vmatpush1.bf16.xpose.msra.mxu0 0
  %2946 = vmatprep.subr.bf16.mxu0 0
  %2947 = vmatpush1.bf16.xpose.msra.mxu0 0
  %2948 = vmatprep.subr.bf16.mxu0 0
  %2949 = vmatpush1.bf16.xpose.msra.mxu0 0
  %2950 = vmatprep.mubr.bf16.mxu0 0
  %2951 = vmatmul.mubr.bf16.gmra.mrb[0].mxu0 %v2895
  %v2952 = vpop.f32.mrb[0].mxu0
  %v2953 = vadd.f32 0.0, %v2952
  %v2954 = vpop.f32.mrb[0].mxu0
  %v2955 = vpop.f32.mrb[0].mxu0
  %v2956 = vadd.f32 0.0, %v2955
  %v2957 = vpop.f32.mrb[0].mxu0
  %2958 = vmatprep.mubr.bf16.mxu0 0
  %2959 = vmatmul.mubr.bf16.gmra.mrb[0].mxu0 %v2898
  %v2960 = vpop.f32.mrb[0].mxu0
  %v2961 = vadd.f32 0.0, %v2960
  %v2962 = vpop.f32.mrb[0].mxu0
  %v2963 = vpop.f32.mrb[0].mxu0
  %v2964 = vadd.f32 0.0, %v2963
  %v2965 = vpop.f32.mrb[0].mxu0
  %2966 = vmatprep.mubr.bf16.mxu0 0
  %2967 = vmatmul.mubr.bf16.gmra.mrb[0].mxu0 %v2901
  %v2968 = vpop.f32.mrb[0].mxu0
  %v2969 = vadd.f32 0.0, %v2968
  %v2970 = vpop.f32.mrb[0].mxu0
  %v2971 = vpop.f32.mrb[0].mxu0
  %v2972 = vadd.f32 0.0, %v2971
  %v2973 = vpop.f32.mrb[0].mxu0
  %2974 = vmatprep.mubr.bf16.mxu0 0
  %2975 = vmatmul.mubr.bf16.gmra.mrb[0].mxu0 %v2904
  %v2976 = vpop.f32.mrb[0].mxu0
  %v2977 = vadd.f32 0.0, %v2976
  %v2978 = vpop.f32.mrb[0].mxu0
  %v2979 = vpop.f32.mrb[0].mxu0
  %v2980 = vadd.f32 0.0, %v2979
  %v2981 = vpop.f32.mrb[0].mxu0
  %2982 = vdwg.mxu0
  %v2984 = vsel %vm1647, %v1579, 0
  %v2987 = vsel %vm1647, %v1580, 0
  %v2990 = vsel %vm1647, %v1581, 0
  %v2993 = vsel %vm1647, %v1582, 0
  %v2996 = vsel %vm1647, %v1643, 0
  %v2999 = vsel %vm1647, %v1644, 0
  %v3002 = vsel %vm1647, %v1645, 0
  %v3005 = vsel %vm1647, %v1646, 0
  %3007 = vmatprep.subr.bf16.mxu0 0
  %3008 = vmatpush1.bf16.xpose.msra.mxu0 %v2996
  %3009 = vmatprep.subr.bf16.mxu0 0
  %3010 = vmatpush1.bf16.xpose.msra.mxu0 %v2999
  %3011 = vmatprep.subr.bf16.mxu0 0
  %3012 = vmatpush1.bf16.xpose.msra.mxu0 %v3002
  %3013 = vmatprep.subr.bf16.mxu0 0
  %3014 = vmatpush1.bf16.xpose.msra.mxu0 %v3005
  %3015 = vmatprep.subr.bf16.mxu0 0
  %3016 = vmatpush1.bf16.xpose.msra.mxu0 0
  %3017 = vmatprep.subr.bf16.mxu0 0
  %3018 = vmatpush1.bf16.xpose.msra.mxu0 0
  %3019 = vmatprep.subr.bf16.mxu0 0
  %3020 = vmatpush1.bf16.xpose.msra.mxu0 0
  %3021 = vmatprep.subr.bf16.mxu0 0
  %3022 = vmatpush1.bf16.xpose.msra.mxu0 0
  %3023 = vmatprep.subr.bf16.mxu0 0
  %3024 = vmatpush1.bf16.xpose.msra.mxu0 0
  %3025 = vmatprep.subr.bf16.mxu0 0
  %3026 = vmatpush1.bf16.xpose.msra.mxu0 0
  %3027 = vmatprep.subr.bf16.mxu0 0
  %3028 = vmatpush1.bf16.xpose.msra.mxu0 0
  %3029 = vmatprep.subr.bf16.mxu0 0
  %3030 = vmatpush1.bf16.xpose.msra.mxu0 0
  %3031 = vmatprep.subr.bf16.mxu0 0
  %3032 = vmatpush1.bf16.xpose.msra.mxu0 0
  %3033 = vmatprep.subr.bf16.mxu0 0
  %3034 = vmatpush1.bf16.xpose.msra.mxu0 0
  %3035 = vmatprep.subr.bf16.mxu0 0
  %3036 = vmatpush1.bf16.xpose.msra.mxu0 0
  %3037 = vmatprep.subr.bf16.mxu0 0
  %3038 = vmatpush1.bf16.xpose.msra.mxu0 0
  %3039 = vmatprep.mubr.bf16.mxu0 0
  %3040 = vmatmul.mubr.bf16.gmra.mrb[0].mxu0 %v2984
  %v3041 = vpop.f32.mrb[0].mxu0
  %v3042 = vadd.f32 0.0, %v3041
  %v3043 = vpop.f32.mrb[0].mxu0
  %v3044 = vpop.f32.mrb[0].mxu0
  %v3045 = vadd.f32 0.0, %v3044
  %v3046 = vpop.f32.mrb[0].mxu0
  %3047 = vmatprep.mubr.bf16.mxu0 0
  %3048 = vmatmul.mubr.bf16.gmra.mrb[0].mxu0 %v2987
  %v3049 = vpop.f32.mrb[0].mxu0
  %v3050 = vadd.f32 0.0, %v3049
  %v3051 = vpop.f32.mrb[0].mxu0
  %v3052 = vpop.f32.mrb[0].mxu0
  %v3053 = vadd.f32 0.0, %v3052
  %v3054 = vpop.f32.mrb[0].mxu0
  %3055 = vmatprep.mubr.bf16.mxu0 0
  %3056 = vmatmul.mubr.bf16.gmra.mrb[0].mxu0 %v2990
  %v3057 = vpop.f32.mrb[0].mxu0
  %v3058 = vadd.f32 0.0, %v3057
  %v3059 = vpop.f32.mrb[0].mxu0
  %v3060 = vpop.f32.mrb[0].mxu0
  %v3061 = vadd.f32 0.0, %v3060
  %v3062 = vpop.f32.mrb[0].mxu0
  %3063 = vmatprep.mubr.bf16.mxu0 0
  %3064 = vmatmul.mubr.bf16.gmra.mrb[0].mxu0 %v2993
  %v3065 = vpop.f32.mrb[0].mxu0
  %v3066 = vadd.f32 0.0, %v3065
  %v3067 = vpop.f32.mrb[0].mxu0
  %v3068 = vpop.f32.mrb[0].mxu0
  %v3069 = vadd.f32 0.0, %v3068
  %v3070 = vpop.f32.mrb[0].mxu0
  %3071 = vdwg.mxu0
  %vm3072 = vcmask 523264
  %v3073 = vsel %vm3072, %v1707, -inf
  %3074 = vmax.xlane.f32.xlu0 %v3073
  %v3075 = vpop.xlane.xlu0 %3074
  %v3076 = vsel %vm3072, %v1710, -inf
  %3077 = vmax.xlane.f32.xlu0 %v3076
  %v3078 = vpop.xlane.xlu0 %3077
  %v3079 = vsel %vm3072, %v1715, -inf
  %3080 = vmax.xlane.f32.xlu0 %v3079
  %v3081 = vpop.xlane.xlu0 %3080
  %v3082 = vsel %vm3072, %v1718, -inf
  %3083 = vmax.xlane.f32.xlu0 %v3082
  %v3084 = vpop.xlane.xlu0 %3083
  %v3085 = vsel %vm3072, %v1723, -inf
  %3086 = vmax.xlane.f32.xlu0 %v3085
  %v3087 = vpop.xlane.xlu0 %3086
  %v3088 = vsel %vm3072, %v1726, -inf
  %3089 = vmax.xlane.f32.xlu0 %v3088
  %v3090 = vpop.xlane.xlu0 %3089
  %v3091 = vsel %vm3072, %v1731, -inf
  %3092 = vmax.xlane.f32.xlu0 %v3091
  %v3093 = vpop.xlane.xlu0 %3092
  %v3094 = vsel %vm3072, %v1734, -inf
  %3095 = vmax.xlane.f32.xlu0 %v3094
  %v3096 = vpop.xlane.xlu0 %3095
  %v3097 = vsel %vm3072, %v1796, -inf
  %3098 = vmax.xlane.f32.xlu0 %v3097
  %v3099 = vpop.xlane.xlu0 %3098
  %v3100 = vsel %vm3072, %v1799, -inf
  %3101 = vmax.xlane.f32.xlu0 %v3100
  %v3102 = vpop.xlane.xlu0 %3101
  %v3103 = vsel %vm3072, %v1804, -inf
  %3104 = vmax.xlane.f32.xlu0 %v3103
  %v3105 = vpop.xlane.xlu0 %3104
  %v3106 = vsel %vm3072, %v1807, -inf
  %3107 = vmax.xlane.f32.xlu0 %v3106
  %v3108 = vpop.xlane.xlu0 %3107
  %v3109 = vsel %vm3072, %v1812, -inf
  %3110 = vmax.xlane.f32.xlu0 %v3109
  %v3111 = vpop.xlane.xlu0 %3110
  %v3112 = vsel %vm3072, %v1815, -inf
  %3113 = vmax.xlane.f32.xlu0 %v3112
  %v3114 = vpop.xlane.xlu0 %3113
  %v3115 = vsel %vm3072, %v1820, -inf
  %3116 = vmax.xlane.f32.xlu0 %v3115
  %v3117 = vpop.xlane.xlu0 %3116
  %v3118 = vsel %vm3072, %v1823, -inf
  %3119 = vmax.xlane.f32.xlu0 %v3118
  %v3120 = vpop.xlane.xlu0 %3119
  %v3121 = vsel %vm3072, %v1885, -inf
  %3122 = vmax.xlane.f32.xlu0 %v3121
  %v3123 = vpop.xlane.xlu0 %3122
  %v3124 = vsel %vm3072, %v1888, -inf
  %3125 = vmax.xlane.f32.xlu0 %v3124
  %v3126 = vpop.xlane.xlu0 %3125
  %v3127 = vsel %vm3072, %v1893, -inf
  %3128 = vmax.xlane.f32.xlu0 %v3127
  %v3129 = vpop.xlane.xlu0 %3128
  %v3130 = vsel %vm3072, %v1896, -inf
  %3131 = vmax.xlane.f32.xlu0 %v3130
  %v3132 = vpop.xlane.xlu0 %3131
  %v3133 = vsel %vm3072, %v1901, -inf
  %3134 = vmax.xlane.f32.xlu0 %v3133
  %v3135 = vpop.xlane.xlu0 %3134
  %v3136 = vsel %vm3072, %v1904, -inf
  %3137 = vmax.xlane.f32.xlu0 %v3136
  %v3138 = vpop.xlane.xlu0 %3137
  %v3139 = vsel %vm3072, %v1909, -inf
  %3140 = vmax.xlane.f32.xlu0 %v3139
  %v3141 = vpop.xlane.xlu0 %3140
  %v3142 = vsel %vm3072, %v1912, -inf
  %3143 = vmax.xlane.f32.xlu0 %v3142
  %v3144 = vpop.xlane.xlu0 %3143
  %v3145 = vsel %vm3072, %v1974, -inf
  %3146 = vmax.xlane.f32.xlu0 %v3145
  %v3147 = vpop.xlane.xlu0 %3146
  %v3148 = vsel %vm3072, %v1977, -inf
  %3149 = vmax.xlane.f32.xlu0 %v3148
  %v3150 = vpop.xlane.xlu0 %3149
  %v3151 = vsel %vm3072, %v1982, -inf
  %3152 = vmax.xlane.f32.xlu0 %v3151
  %v3153 = vpop.xlane.xlu0 %3152
  %v3154 = vsel %vm3072, %v1985, -inf
  %3155 = vmax.xlane.f32.xlu0 %v3154
  %v3156 = vpop.xlane.xlu0 %3155
  %v3157 = vsel %vm3072, %v1990, -inf
  %3158 = vmax.xlane.f32.xlu0 %v3157
  %v3159 = vpop.xlane.xlu0 %3158
  %v3160 = vsel %vm3072, %v1993, -inf
  %3161 = vmax.xlane.f32.xlu0 %v3160
  %v3162 = vpop.xlane.xlu0 %3161
  %v3163 = vsel %vm3072, %v1998, -inf
  %3164 = vmax.xlane.f32.xlu0 %v3163
  %v3165 = vpop.xlane.xlu0 %3164
  %v3166 = vsel %vm3072, %v2001, -inf
  %3167 = vmax.xlane.f32.xlu0 %v3166
  %v3168 = vpop.xlane.xlu0 %3167
  %v3169 = vsel %vm3072, %v2063, -inf
  %3170 = vmax.xlane.f32.xlu0 %v3169
  %v3171 = vpop.xlane.xlu0 %3170
  %v3172 = vsel %vm3072, %v2066, -inf
  %3173 = vmax.xlane.f32.xlu0 %v3172
  %v3174 = vpop.xlane.xlu0 %3173
  %v3175 = vsel %vm3072, %v2071, -inf
  %3176 = vmax.xlane.f32.xlu0 %v3175
  %v3177 = vpop.xlane.xlu0 %3176
  %v3178 = vsel %vm3072, %v2074, -inf
  %3179 = vmax.xlane.f32.xlu0 %v3178
  %v3180 = vpop.xlane.xlu0 %3179
  %v3181 = vsel %vm3072, %v2079, -inf
  %3182 = vmax.xlane.f32.xlu0 %v3181
  %v3183 = vpop.xlane.xlu0 %3182
  %v3184 = vsel %vm3072, %v2082, -inf
  %3185 = vmax.xlane.f32.xlu0 %v3184
  %v3186 = vpop.xlane.xlu0 %3185
  %v3187 = vsel %vm3072, %v2087, -inf
  %3188 = vmax.xlane.f32.xlu0 %v3187
  %v3189 = vpop.xlane.xlu0 %3188
  %v3190 = vsel %vm3072, %v2090, -inf
  %3191 = vmax.xlane.f32.xlu0 %v3190
  %v3192 = vpop.xlane.xlu0 %3191
  %v3193 = vsel %vm3072, %v2152, -inf
  %3194 = vmax.xlane.f32.xlu0 %v3193
  %v3195 = vpop.xlane.xlu0 %3194
  %v3196 = vsel %vm3072, %v2155, -inf
  %3197 = vmax.xlane.f32.xlu0 %v3196
  %v3198 = vpop.xlane.xlu0 %3197
  %v3199 = vsel %vm3072, %v2160, -inf
  %3200 = vmax.xlane.f32.xlu0 %v3199
  %v3201 = vpop.xlane.xlu0 %3200
  %v3202 = vsel %vm3072, %v2163, -inf
  %3203 = vmax.xlane.f32.xlu0 %v3202
  %v3204 = vpop.xlane.xlu0 %3203
  %v3205 = vsel %vm3072, %v2168, -inf
  %3206 = vmax.xlane.f32.xlu0 %v3205
  %v3207 = vpop.xlane.xlu0 %3206
  %v3208 = vsel %vm3072, %v2171, -inf
  %3209 = vmax.xlane.f32.xlu0 %v3208
  %v3210 = vpop.xlane.xlu0 %3209
  %v3211 = vsel %vm3072, %v2176, -inf
  %3212 = vmax.xlane.f32.xlu0 %v3211
  %v3213 = vpop.xlane.xlu0 %3212
  %v3214 = vsel %vm3072, %v2179, -inf
  %3215 = vmax.xlane.f32.xlu0 %v3214
  %v3216 = vpop.xlane.xlu0 %3215
  %v3217 = vsel %vm3072, %v2241, -inf
  %3218 = vmax.xlane.f32.xlu0 %v3217
  %v3219 = vpop.xlane.xlu0 %3218
  %v3220 = vsel %vm3072, %v2244, -inf
  %3221 = vmax.xlane.f32.xlu0 %v3220
  %v3222 = vpop.xlane.xlu0 %3221
  %v3223 = vsel %vm3072, %v2249, -inf
  %3224 = vmax.xlane.f32.xlu0 %v3223
  %v3225 = vpop.xlane.xlu0 %3224
  %v3226 = vsel %vm3072, %v2252, -inf
  %3227 = vmax.xlane.f32.xlu0 %v3226
  %v3228 = vpop.xlane.xlu0 %3227
  %v3229 = vsel %vm3072, %v2257, -inf
  %3230 = vmax.xlane.f32.xlu0 %v3229
  %v3231 = vpop.xlane.xlu0 %3230
  %v3232 = vsel %vm3072, %v2260, -inf
  %3233 = vmax.xlane.f32.xlu0 %v3232
  %v3234 = vpop.xlane.xlu0 %3233
  %v3235 = vsel %vm3072, %v2265, -inf
  %3236 = vmax.xlane.f32.xlu0 %v3235
  %v3237 = vpop.xlane.xlu0 %3236
  %v3238 = vsel %vm3072, %v2268, -inf
  %3239 = vmax.xlane.f32.xlu0 %v3238
  %v3240 = vpop.xlane.xlu0 %3239
  %v3241 = vsel %vm3072, %v2330, -inf
  %3242 = vmax.xlane.f32.xlu0 %v3241
  %v3243 = vpop.xlane.xlu0 %3242
  %v3244 = vsel %vm3072, %v2333, -inf
  %3245 = vmax.xlane.f32.xlu0 %v3244
  %v3246 = vpop.xlane.xlu0 %3245
  %v3247 = vsel %vm3072, %v2338, -inf
  %3248 = vmax.xlane.f32.xlu0 %v3247
  %v3249 = vpop.xlane.xlu0 %3248
  %v3250 = vsel %vm3072, %v2341, -inf
  %3251 = vmax.xlane.f32.xlu0 %v3250
  %v3252 = vpop.xlane.xlu0 %3251
  %v3253 = vsel %vm3072, %v2346, -inf
  %3254 = vmax.xlane.f32.xlu0 %v3253
  %v3255 = vpop.xlane.xlu0 %3254
  %v3256 = vsel %vm3072, %v2349, -inf
  %3257 = vmax.xlane.f32.xlu0 %v3256
  %v3258 = vpop.xlane.xlu0 %3257
  %v3259 = vsel %vm3072, %v2354, -inf
  %3260 = vmax.xlane.f32.xlu0 %v3259
  %v3261 = vpop.xlane.xlu0 %3260
  %v3262 = vsel %vm3072, %v2357, -inf
  %3263 = vmax.xlane.f32.xlu0 %v3262
  %v3264 = vpop.xlane.xlu0 %3263
  %v3265 = vsel %vm3072, %v2419, -inf
  %3266 = vmax.xlane.f32.xlu0 %v3265
  %v3267 = vpop.xlane.xlu0 %3266
  %v3268 = vsel %vm3072, %v2422, -inf
  %3269 = vmax.xlane.f32.xlu0 %v3268
  %v3270 = vpop.xlane.xlu0 %3269
  %v3271 = vsel %vm3072, %v2427, -inf
  %3272 = vmax.xlane.f32.xlu0 %v3271
  %v3273 = vpop.xlane.xlu0 %3272
  %v3274 = vsel %vm3072, %v2430, -inf
  %3275 = vmax.xlane.f32.xlu0 %v3274
  %v3276 = vpop.xlane.xlu0 %3275
  %v3277 = vsel %vm3072, %v2435, -inf
  %3278 = vmax.xlane.f32.xlu0 %v3277
  %v3279 = vpop.xlane.xlu0 %3278
  %v3280 = vsel %vm3072, %v2438, -inf
  %3281 = vmax.xlane.f32.xlu0 %v3280
  %v3282 = vpop.xlane.xlu0 %3281
  %v3283 = vsel %vm3072, %v2443, -inf
  %3284 = vmax.xlane.f32.xlu0 %v3283
  %v3285 = vpop.xlane.xlu0 %3284
  %v3286 = vsel %vm3072, %v2446, -inf
  %3287 = vmax.xlane.f32.xlu0 %v3286
  %v3288 = vpop.xlane.xlu0 %3287
  %v3289 = vsel %vm3072, %v2508, -inf
  %3290 = vmax.xlane.f32.xlu0 %v3289
  %v3291 = vpop.xlane.xlu0 %3290
  %v3292 = vsel %vm3072, %v2511, -inf
  %3293 = vmax.xlane.f32.xlu0 %v3292
  %v3294 = vpop.xlane.xlu0 %3293
  %v3295 = vsel %vm3072, %v2516, -inf
  %3296 = vmax.xlane.f32.xlu0 %v3295
  %v3297 = vpop.xlane.xlu0 %3296
  %v3298 = vsel %vm3072, %v2519, -inf
  %3299 = vmax.xlane.f32.xlu0 %v3298
  %v3300 = vpop.xlane.xlu0 %3299
  %v3301 = vsel %vm3072, %v2524, -inf
  %3302 = vmax.xlane.f32.xlu0 %v3301
  %v3303 = vpop.xlane.xlu0 %3302
  %v3304 = vsel %vm3072, %v2527, -inf
  %3305 = vmax.xlane.f32.xlu0 %v3304
  %v3306 = vpop.xlane.xlu0 %3305
  %v3307 = vsel %vm3072, %v2532, -inf
  %3308 = vmax.xlane.f32.xlu0 %v3307
  %v3309 = vpop.xlane.xlu0 %3308
  %v3310 = vsel %vm3072, %v2535, -inf
  %3311 = vmax.xlane.f32.xlu0 %v3310
  %v3312 = vpop.xlane.xlu0 %3311
  %v3313 = vsel %vm3072, %v2597, -inf
  %3314 = vmax.xlane.f32.xlu0 %v3313
  %v3315 = vpop.xlane.xlu0 %3314
  %v3316 = vsel %vm3072, %v2600, -inf
  %3317 = vmax.xlane.f32.xlu0 %v3316
  %v3318 = vpop.xlane.xlu0 %3317
  %v3319 = vsel %vm3072, %v2605, -inf
  %3320 = vmax.xlane.f32.xlu0 %v3319
  %v3321 = vpop.xlane.xlu0 %3320
  %v3322 = vsel %vm3072, %v2608, -inf
  %3323 = vmax.xlane.f32.xlu0 %v3322
  %v3324 = vpop.xlane.xlu0 %3323
  %v3325 = vsel %vm3072, %v2613, -inf
  %3326 = vmax.xlane.f32.xlu0 %v3325
  %v3327 = vpop.xlane.xlu0 %3326
  %v3328 = vsel %vm3072, %v2616, -inf
  %3329 = vmax.xlane.f32.xlu0 %v3328
  %v3330 = vpop.xlane.xlu0 %3329
  %v3331 = vsel %vm3072, %v2621, -inf
  %3332 = vmax.xlane.f32.xlu0 %v3331
  %v3333 = vpop.xlane.xlu0 %3332
  %v3334 = vsel %vm3072, %v2624, -inf
  %3335 = vmax.xlane.f32.xlu0 %v3334
  %v3336 = vpop.xlane.xlu0 %3335
  %v3337 = vsel %vm3072, %v2686, -inf
  %3338 = vmax.xlane.f32.xlu0 %v3337
  %v3339 = vpop.xlane.xlu0 %3338
  %v3340 = vsel %vm3072, %v2689, -inf
  %3341 = vmax.xlane.f32.xlu0 %v3340
  %v3342 = vpop.xlane.xlu0 %3341
  %v3343 = vsel %vm3072, %v2694, -inf
  %3344 = vmax.xlane.f32.xlu0 %v3343
  %v3345 = vpop.xlane.xlu0 %3344
  %v3346 = vsel %vm3072, %v2697, -inf
  %3347 = vmax.xlane.f32.xlu0 %v3346
  %v3348 = vpop.xlane.xlu0 %3347
  %v3349 = vsel %vm3072, %v2702, -inf
  %3350 = vmax.xlane.f32.xlu0 %v3349
  %v3351 = vpop.xlane.xlu0 %3350
  %v3352 = vsel %vm3072, %v2705, -inf
  %3353 = vmax.xlane.f32.xlu0 %v3352
  %v3354 = vpop.xlane.xlu0 %3353
  %v3355 = vsel %vm3072, %v2710, -inf
  %3356 = vmax.xlane.f32.xlu0 %v3355
  %v3357 = vpop.xlane.xlu0 %3356
  %v3358 = vsel %vm3072, %v2713, -inf
  %3359 = vmax.xlane.f32.xlu0 %v3358
  %v3360 = vpop.xlane.xlu0 %3359
  %v3361 = vsel %vm3072, %v2775, -inf
  %3362 = vmax.xlane.f32.xlu0 %v3361
  %v3363 = vpop.xlane.xlu0 %3362
  %v3364 = vsel %vm3072, %v2778, -inf
  %3365 = vmax.xlane.f32.xlu0 %v3364
  %v3366 = vpop.xlane.xlu0 %3365
  %v3367 = vsel %vm3072, %v2783, -inf
  %3368 = vmax.xlane.f32.xlu0 %v3367
  %v3369 = vpop.xlane.xlu0 %3368
  %v3370 = vsel %vm3072, %v2786, -inf
  %3371 = vmax.xlane.f32.xlu0 %v3370
  %v3372 = vpop.xlane.xlu0 %3371
  %v3373 = vsel %vm3072, %v2791, -inf
  %3374 = vmax.xlane.f32.xlu0 %v3373
  %v3375 = vpop.xlane.xlu0 %3374
  %v3376 = vsel %vm3072, %v2794, -inf
  %3377 = vmax.xlane.f32.xlu0 %v3376
  %v3378 = vpop.xlane.xlu0 %3377
  %v3379 = vsel %vm3072, %v2799, -inf
  %3380 = vmax.xlane.f32.xlu0 %v3379
  %v3381 = vpop.xlane.xlu0 %3380
  %v3382 = vsel %vm3072, %v2802, -inf
  %3383 = vmax.xlane.f32.xlu0 %v3382
  %v3384 = vpop.xlane.xlu0 %3383
  %v3385 = vsel %vm3072, %v2864, -inf
  %3386 = vmax.xlane.f32.xlu0 %v3385
  %v3387 = vpop.xlane.xlu0 %3386
  %v3388 = vsel %vm3072, %v2867, -inf
  %3389 = vmax.xlane.f32.xlu0 %v3388
  %v3390 = vpop.xlane.xlu0 %3389
  %v3391 = vsel %vm3072, %v2872, -inf
  %3392 = vmax.xlane.f32.xlu0 %v3391
  %v3393 = vpop.xlane.xlu0 %3392
  %v3394 = vsel %vm3072, %v2875, -inf
  %3395 = vmax.xlane.f32.xlu0 %v3394
  %v3396 = vpop.xlane.xlu0 %3395
  %v3397 = vsel %vm3072, %v2880, -inf
  %3398 = vmax.xlane.f32.xlu0 %v3397
  %v3399 = vpop.xlane.xlu0 %3398
  %v3400 = vsel %vm3072, %v2883, -inf
  %3401 = vmax.xlane.f32.xlu0 %v3400
  %v3402 = vpop.xlane.xlu0 %3401
  %v3403 = vsel %vm3072, %v2888, -inf
  %3404 = vmax.xlane.f32.xlu0 %v3403
  %v3405 = vpop.xlane.xlu0 %3404
  %v3406 = vsel %vm3072, %v2891, -inf
  %3407 = vmax.xlane.f32.xlu0 %v3406
  %v3408 = vpop.xlane.xlu0 %3407
  %v3409 = vsel %vm3072, %v2953, -inf
  %3410 = vmax.xlane.f32.xlu0 %v3409
  %v3411 = vpop.xlane.xlu0 %3410
  %v3412 = vsel %vm3072, %v2956, -inf
  %3413 = vmax.xlane.f32.xlu0 %v3412
  %v3414 = vpop.xlane.xlu0 %3413
  %v3415 = vsel %vm3072, %v2961, -inf
  %3416 = vmax.xlane.f32.xlu0 %v3415
  %v3417 = vpop.xlane.xlu0 %3416
  %v3418 = vsel %vm3072, %v2964, -inf
  %3419 = vmax.xlane.f32.xlu0 %v3418
  %v3420 = vpop.xlane.xlu0 %3419
  %v3421 = vsel %vm3072, %v2969, -inf
  %3422 = vmax.xlane.f32.xlu0 %v3421
  %v3423 = vpop.xlane.xlu0 %3422
  %v3424 = vsel %vm3072, %v2972, -inf
  %3425 = vmax.xlane.f32.xlu0 %v3424
  %v3426 = vpop.xlane.xlu0 %3425
  %v3427 = vsel %vm3072, %v2977, -inf
  %3428 = vmax.xlane.f32.xlu0 %v3427
  %v3429 = vpop.xlane.xlu0 %3428
  %v3430 = vsel %vm3072, %v2980, -inf
  %3431 = vmax.xlane.f32.xlu0 %v3430
  %v3432 = vpop.xlane.xlu0 %3431
  %v3433 = vsel %vm3072, %v3042, -inf
  %3434 = vmax.xlane.f32.xlu0 %v3433
  %v3435 = vpop.xlane.xlu0 %3434
  %v3436 = vsel %vm3072, %v3045, -inf
  %3437 = vmax.xlane.f32.xlu0 %v3436
  %v3438 = vpop.xlane.xlu0 %3437
  %v3439 = vsel %vm3072, %v3050, -inf
  %3440 = vmax.xlane.f32.xlu0 %v3439
  %v3441 = vpop.xlane.xlu0 %3440
  %v3442 = vsel %vm3072, %v3053, -inf
  %3443 = vmax.xlane.f32.xlu0 %v3442
  %v3444 = vpop.xlane.xlu0 %3443
  %v3445 = vsel %vm3072, %v3058, -inf
  %3446 = vmax.xlane.f32.xlu0 %v3445
  %v3447 = vpop.xlane.xlu0 %3446
  %v3448 = vsel %vm3072, %v3061, -inf
  %3449 = vmax.xlane.f32.xlu0 %v3448
  %v3450 = vpop.xlane.xlu0 %3449
  %v3451 = vsel %vm3072, %v3066, -inf
  %3452 = vmax.xlane.f32.xlu0 %v3451
  %v3453 = vpop.xlane.xlu0 %3452
  %v3454 = vsel %vm3072, %v3069, -inf
  %3455 = vmax.xlane.f32.xlu0 %v3454
  %v3456 = vpop.xlane.xlu0 %3455
  %v3457 = vsub.f32 %v1707, %v3075
  %v3458 = vsub.f32 %v1710, %v3078
  %v3459 = vsub.f32 %v1715, %v3081
  %v3460 = vsub.f32 %v1718, %v3084
  %v3461 = vsub.f32 %v1723, %v3087
  %v3462 = vsub.f32 %v1726, %v3090
  %v3463 = vsub.f32 %v1731, %v3093
  %v3464 = vsub.f32 %v1734, %v3096
  %v3465 = vsub.f32 %v1796, %v3099
  %v3466 = vsub.f32 %v1799, %v3102
  %v3467 = vsub.f32 %v1804, %v3105
  %v3468 = vsub.f32 %v1807, %v3108
  %v3469 = vsub.f32 %v1812, %v3111
  %v3470 = vsub.f32 %v1815, %v3114
  %v3471 = vsub.f32 %v1820, %v3117
  %v3472 = vsub.f32 %v1823, %v3120
  %v3473 = vsub.f32 %v1885, %v3123
  %v3474 = vsub.f32 %v1888, %v3126
  %v3475 = vsub.f32 %v1893, %v3129
  %v3476 = vsub.f32 %v1896, %v3132
  %v3477 = vsub.f32 %v1901, %v3135
  %v3478 = vsub.f32 %v1904, %v3138
  %v3479 = vsub.f32 %v1909, %v3141
  %v3480 = vsub.f32 %v1912, %v3144
  %v3481 = vsub.f32 %v1974, %v3147
  %v3482 = vsub.f32 %v1977, %v3150
  %v3483 = vsub.f32 %v1982, %v3153
  %v3484 = vsub.f32 %v1985, %v3156
  %v3485 = vsub.f32 %v1990, %v3159
  %v3486 = vsub.f32 %v1993, %v3162
  %v3487 = vsub.f32 %v1998, %v3165
  %v3488 = vsub.f32 %v2001, %v3168
  %v3489 = vsub.f32 %v2063, %v3171
  %v3490 = vsub.f32 %v2066, %v3174
  %v3491 = vsub.f32 %v2071, %v3177
  %v3492 = vsub.f32 %v2074, %v3180
  %v3493 = vsub.f32 %v2079, %v3183
  %v3494 = vsub.f32 %v2082, %v3186
  %v3495 = vsub.f32 %v2087, %v3189
  %v3496 = vsub.f32 %v2090, %v3192
  %v3497 = vsub.f32 %v2152, %v3195
  %v3498 = vsub.f32 %v2155, %v3198
  %v3499 = vsub.f32 %v2160, %v3201
  %v3500 = vsub.f32 %v2163, %v3204
  %v3501 = vsub.f32 %v2168, %v3207
  %v3502 = vsub.f32 %v2171, %v3210
  %v3503 = vsub.f32 %v2176, %v3213
  %v3504 = vsub.f32 %v2179, %v3216
  %v3505 = vsub.f32 %v2241, %v3219
  %v3506 = vsub.f32 %v2244, %v3222
  %v3507 = vsub.f32 %v2249, %v3225
  %v3508 = vsub.f32 %v2252, %v3228
  %v3509 = vsub.f32 %v2257, %v3231
  %v3510 = vsub.f32 %v2260, %v3234
  %v3511 = vsub.f32 %v2265, %v3237
  %v3512 = vsub.f32 %v2268, %v3240
  %v3513 = vsub.f32 %v2330, %v3243
  %v3514 = vsub.f32 %v2333, %v3246
  %v3515 = vsub.f32 %v2338, %v3249
  %v3516 = vsub.f32 %v2341, %v3252
  %v3517 = vsub.f32 %v2346, %v3255
  %v3518 = vsub.f32 %v2349, %v3258
  %v3519 = vsub.f32 %v2354, %v3261
  %v3520 = vsub.f32 %v2357, %v3264
  %v3521 = vsub.f32 %v2419, %v3267
  %v3522 = vsub.f32 %v2422, %v3270
  %v3523 = vsub.f32 %v2427, %v3273
  %v3524 = vsub.f32 %v2430, %v3276
  %v3525 = vsub.f32 %v2435, %v3279
  %v3526 = vsub.f32 %v2438, %v3282
  %v3527 = vsub.f32 %v2443, %v3285
  %v3528 = vsub.f32 %v2446, %v3288
  %v3529 = vsub.f32 %v2508, %v3291
  %v3530 = vsub.f32 %v2511, %v3294
  %v3531 = vsub.f32 %v2516, %v3297
  %v3532 = vsub.f32 %v2519, %v3300
  %v3533 = vsub.f32 %v2524, %v3303
  %v3534 = vsub.f32 %v2527, %v3306
  %v3535 = vsub.f32 %v2532, %v3309
  %v3536 = vsub.f32 %v2535, %v3312
  %v3537 = vsub.f32 %v2597, %v3315
  %v3538 = vsub.f32 %v2600, %v3318
  %v3539 = vsub.f32 %v2605, %v3321
  %v3540 = vsub.f32 %v2608, %v3324
  %v3541 = vsub.f32 %v2613, %v3327
  %v3542 = vsub.f32 %v2616, %v3330
  %v3543 = vsub.f32 %v2621, %v3333
  %v3544 = vsub.f32 %v2624, %v3336
  %v3545 = vsub.f32 %v2686, %v3339
  %v3546 = vsub.f32 %v2689, %v3342
  %v3547 = vsub.f32 %v2694, %v3345
  %v3548 = vsub.f32 %v2697, %v3348
  %v3549 = vsub.f32 %v2702, %v3351
  %v3550 = vsub.f32 %v2705, %v3354
  %v3551 = vsub.f32 %v2710, %v3357
  %v3552 = vsub.f32 %v2713, %v3360
  %v3553 = vsub.f32 %v2775, %v3363
  %v3554 = vsub.f32 %v2778, %v3366
  %v3555 = vsub.f32 %v2783, %v3369
  %v3556 = vsub.f32 %v2786, %v3372
  %v3557 = vsub.f32 %v2791, %v3375
  %v3558 = vsub.f32 %v2794, %v3378
  %v3559 = vsub.f32 %v2799, %v3381
  %v3560 = vsub.f32 %v2802, %v3384
  %v3561 = vsub.f32 %v2864, %v3387
  %v3562 = vsub.f32 %v2867, %v3390
  %v3563 = vsub.f32 %v2872, %v3393
  %v3564 = vsub.f32 %v2875, %v3396
  %v3565 = vsub.f32 %v2880, %v3399
  %v3566 = vsub.f32 %v2883, %v3402
  %v3567 = vsub.f32 %v2888, %v3405
  %v3568 = vsub.f32 %v2891, %v3408
  %v3569 = vsub.f32 %v2953, %v3411
  %v3570 = vsub.f32 %v2956, %v3414
  %v3571 = vsub.f32 %v2961, %v3417
  %v3572 = vsub.f32 %v2964, %v3420
  %v3573 = vsub.f32 %v2969, %v3423
  %v3574 = vsub.f32 %v2972, %v3426
  %v3575 = vsub.f32 %v2977, %v3429
  %v3576 = vsub.f32 %v2980, %v3432
  %v3577 = vsub.f32 %v3042, %v3435
  %v3578 = vsub.f32 %v3045, %v3438
  %v3579 = vsub.f32 %v3050, %v3441
  %v3580 = vsub.f32 %v3053, %v3444
  %v3581 = vsub.f32 %v3058, %v3447
  %v3582 = vsub.f32 %v3061, %v3450
  %v3583 = vsub.f32 %v3066, %v3453
  %v3584 = vsub.f32 %v3069, %v3456
  %v3585 = vmul.f32 %v3457, 1.442695
  %v3586 = vpow.pop %v3585
  %v3587 = vmul.f32 %v3458, 1.442695
  %v3588 = vpow.pop %v3587
  %v3589 = vmul.f32 %v3459, 1.442695
  %v3590 = vpow.pop %v3589
  %v3591 = vmul.f32 %v3460, 1.442695
  %v3592 = vpow.pop %v3591
  %v3593 = vmul.f32 %v3461, 1.442695
  %v3594 = vpow.pop %v3593
  %v3595 = vmul.f32 %v3462, 1.442695
  %v3596 = vpow.pop %v3595
  %v3597 = vmul.f32 %v3463, 1.442695
  %v3598 = vpow.pop %v3597
  %v3599 = vmul.f32 %v3464, 1.442695
  %v3600 = vpow.pop %v3599
  %v3601 = vmul.f32 %v3465, 1.442695
  %v3602 = vpow.pop %v3601
  %v3603 = vmul.f32 %v3466, 1.442695
  %v3604 = vpow.pop %v3603
  %v3605 = vmul.f32 %v3467, 1.442695
  %v3606 = vpow.pop %v3605
  %v3607 = vmul.f32 %v3468, 1.442695
  %v3608 = vpow.pop %v3607
  %v3609 = vmul.f32 %v3469, 1.442695
  %v3610 = vpow.pop %v3609
  %v3611 = vmul.f32 %v3470, 1.442695
  %v3612 = vpow.pop %v3611
  %v3613 = vmul.f32 %v3471, 1.442695
  %v3614 = vpow.pop %v3613
  %v3615 = vmul.f32 %v3472, 1.442695
  %v3616 = vpow.pop %v3615
  %v3617 = vmul.f32 %v3473, 1.442695
  %v3618 = vpow.pop %v3617
  %v3619 = vmul.f32 %v3474, 1.442695
  %v3620 = vpow.pop %v3619
  %v3621 = vmul.f32 %v3475, 1.442695
  %v3622 = vpow.pop %v3621
  %v3623 = vmul.f32 %v3476, 1.442695
  %v3624 = vpow.pop %v3623
  %v3625 = vmul.f32 %v3477, 1.442695
  %v3626 = vpow.pop %v3625
  %v3627 = vmul.f32 %v3478, 1.442695
  %v3628 = vpow.pop %v3627
  %v3629 = vmul.f32 %v3479, 1.442695
  %v3630 = vpow.pop %v3629
  %v3631 = vmul.f32 %v3480, 1.442695
  %v3632 = vpow.pop %v3631
  %v3633 = vmul.f32 %v3481, 1.442695
  %v3634 = vpow.pop %v3633
  %v3635 = vmul.f32 %v3482, 1.442695
  %v3636 = vpow.pop %v3635
  %v3637 = vmul.f32 %v3483, 1.442695
  %v3638 = vpow.pop %v3637
  %v3639 = vmul.f32 %v3484, 1.442695
  %v3640 = vpow.pop %v3639
  %v3641 = vmul.f32 %v3485, 1.442695
  %v3642 = vpow.pop %v3641
  %v3643 = vmul.f32 %v3486, 1.442695
  %v3644 = vpow.pop %v3643
  %v3645 = vmul.f32 %v3487, 1.442695
  %v3646 = vpow.pop %v3645
  %v3647 = vmul.f32 %v3488, 1.442695
  %v3648 = vpow.pop %v3647
  %v3649 = vmul.f32 %v3489, 1.442695
  %v3650 = vpow.pop %v3649
  %v3651 = vmul.f32 %v3490, 1.442695
  %v3652 = vpow.pop %v3651
  %v3653 = vmul.f32 %v3491, 1.442695
  %v3654 = vpow.pop %v3653
  %v3655 = vmul.f32 %v3492, 1.442695
  %v3656 = vpow.pop %v3655
  %v3657 = vmul.f32 %v3493, 1.442695
  %v3658 = vpow.pop %v3657
  %v3659 = vmul.f32 %v3494, 1.442695
  %v3660 = vpow.pop %v3659
  %v3661 = vmul.f32 %v3495, 1.442695
  %v3662 = vpow.pop %v3661
  %v3663 = vmul.f32 %v3496, 1.442695
  %v3664 = vpow.pop %v3663
  %v3665 = vmul.f32 %v3497, 1.442695
  %v3666 = vpow.pop %v3665
  %v3667 = vmul.f32 %v3498, 1.442695
  %v3668 = vpow.pop %v3667
  %v3669 = vmul.f32 %v3499, 1.442695
  %v3670 = vpow.pop %v3669
  %v3671 = vmul.f32 %v3500, 1.442695
  %v3672 = vpow.pop %v3671
  %v3673 = vmul.f32 %v3501, 1.442695
  %v3674 = vpow.pop %v3673
  %v3675 = vmul.f32 %v3502, 1.442695
  %v3676 = vpow.pop %v3675
  %v3677 = vmul.f32 %v3503, 1.442695
  %v3678 = vpow.pop %v3677
  %v3679 = vmul.f32 %v3504, 1.442695
  %v3680 = vpow.pop %v3679
  %v3681 = vmul.f32 %v3505, 1.442695
  %v3682 = vpow.pop %v3681
  %v3683 = vmul.f32 %v3506, 1.442695
  %v3684 = vpow.pop %v3683
  %v3685 = vmul.f32 %v3507, 1.442695
  %v3686 = vpow.pop %v3685
  %v3687 = vmul.f32 %v3508, 1.442695
  %v3688 = vpow.pop %v3687
  %v3689 = vmul.f32 %v3509, 1.442695
  %v3690 = vpow.pop %v3689
  %v3691 = vmul.f32 %v3510, 1.442695
  %v3692 = vpow.pop %v3691
  %v3693 = vmul.f32 %v3511, 1.442695
  %v3694 = vpow.pop %v3693
  %v3695 = vmul.f32 %v3512, 1.442695
  %v3696 = vpow.pop %v3695
  %v3697 = vmul.f32 %v3513, 1.442695
  %v3698 = vpow.pop %v3697
  %v3699 = vmul.f32 %v3514, 1.442695
  %v3700 = vpow.pop %v3699
  %v3701 = vmul.f32 %v3515, 1.442695
  %v3702 = vpow.pop %v3701
  %v3703 = vmul.f32 %v3516, 1.442695
  %v3704 = vpow.pop %v3703
  %v3705 = vmul.f32 %v3517, 1.442695
  %v3706 = vpow.pop %v3705
  %v3707 = vmul.f32 %v3518, 1.442695
  %v3708 = vpow.pop %v3707
  %v3709 = vmul.f32 %v3519, 1.442695
  %v3710 = vpow.pop %v3709
  %v3711 = vmul.f32 %v3520, 1.442695
  %v3712 = vpow.pop %v3711
  %v3713 = vmul.f32 %v3521, 1.442695
  %v3714 = vpow.pop %v3713
  %v3715 = vmul.f32 %v3522, 1.442695
  %v3716 = vpow.pop %v3715
  %v3717 = vmul.f32 %v3523, 1.442695
  %v3718 = vpow.pop %v3717
  %v3719 = vmul.f32 %v3524, 1.442695
  %v3720 = vpow.pop %v3719
  %v3721 = vmul.f32 %v3525, 1.442695
  %v3722 = vpow.pop %v3721
  %v3723 = vmul.f32 %v3526, 1.442695
  %v3724 = vpow.pop %v3723
  %v3725 = vmul.f32 %v3527, 1.442695
  %v3726 = vpow.pop %v3725
  %v3727 = vmul.f32 %v3528, 1.442695
  %v3728 = vpow.pop %v3727
  %v3729 = vmul.f32 %v3529, 1.442695
  %v3730 = vpow.pop %v3729
  %v3731 = vmul.f32 %v3530, 1.442695
  %v3732 = vpow.pop %v3731
  %v3733 = vmul.f32 %v3531, 1.442695
  %v3734 = vpow.pop %v3733
  %v3735 = vmul.f32 %v3532, 1.442695
  %v3736 = vpow.pop %v3735
  %v3737 = vmul.f32 %v3533, 1.442695
  %v3738 = vpow.pop %v3737
  %v3739 = vmul.f32 %v3534, 1.442695
  %v3740 = vpow.pop %v3739
  %v3741 = vmul.f32 %v3535, 1.442695
  %v3742 = vpow.pop %v3741
  %v3743 = vmul.f32 %v3536, 1.442695
  %v3744 = vpow.pop %v3743
  %v3745 = vmul.f32 %v3537, 1.442695
  %v3746 = vpow.pop %v3745
  %v3747 = vmul.f32 %v3538, 1.442695
  %v3748 = vpow.pop %v3747
  %v3749 = vmul.f32 %v3539, 1.442695
  %v3750 = vpow.pop %v3749
  %v3751 = vmul.f32 %v3540, 1.442695
  %v3752 = vpow.pop %v3751
  %v3753 = vmul.f32 %v3541, 1.442695
  %v3754 = vpow.pop %v3753
  %v3755 = vmul.f32 %v3542, 1.442695
  %v3756 = vpow.pop %v3755
  %v3757 = vmul.f32 %v3543, 1.442695
  %v3758 = vpow.pop %v3757
  %v3759 = vmul.f32 %v3544, 1.442695
  %v3760 = vpow.pop %v3759
  %v3761 = vmul.f32 %v3545, 1.442695
  %v3762 = vpow.pop %v3761
  %v3763 = vmul.f32 %v3546, 1.442695
  %v3764 = vpow.pop %v3763
  %v3765 = vmul.f32 %v3547, 1.442695
  %v3766 = vpow.pop %v3765
  %v3767 = vmul.f32 %v3548, 1.442695
  %v3768 = vpow.pop %v3767
  %v3769 = vmul.f32 %v3549, 1.442695
  %v3770 = vpow.pop %v3769
  %v3771 = vmul.f32 %v3550, 1.442695
  %v3772 = vpow.pop %v3771
  %v3773 = vmul.f32 %v3551, 1.442695
  %v3774 = vpow.pop %v3773
  %v3775 = vmul.f32 %v3552, 1.442695
  %v3776 = vpow.pop %v3775
  %v3777 = vmul.f32 %v3553, 1.442695
  %v3778 = vpow.pop %v3777
  %v3779 = vmul.f32 %v3554, 1.442695
  %v3780 = vpow.pop %v3779
  %v3781 = vmul.f32 %v3555, 1.442695
  %v3782 = vpow.pop %v3781
  %v3783 = vmul.f32 %v3556, 1.442695
  %v3784 = vpow.pop %v3783
  %v3785 = vmul.f32 %v3557, 1.442695
  %v3786 = vpow.pop %v3785
  %v3787 = vmul.f32 %v3558, 1.442695
  %v3788 = vpow.pop %v3787
  %v3789 = vmul.f32 %v3559, 1.442695
  %v3790 = vpow.pop %v3789
  %v3791 = vmul.f32 %v3560, 1.442695
  %v3792 = vpow.pop %v3791
  %v3793 = vmul.f32 %v3561, 1.442695
  %v3794 = vpow.pop %v3793
  %v3795 = vmul.f32 %v3562, 1.442695
  %v3796 = vpow.pop %v3795
  %v3797 = vmul.f32 %v3563, 1.442695
  %v3798 = vpow.pop %v3797
  %v3799 = vmul.f32 %v3564, 1.442695
  %v3800 = vpow.pop %v3799
  %v3801 = vmul.f32 %v3565, 1.442695
  %v3802 = vpow.pop %v3801
  %v3803 = vmul.f32 %v3566, 1.442695
  %v3804 = vpow.pop %v3803
  %v3805 = vmul.f32 %v3567, 1.442695
  %v3806 = vpow.pop %v3805
  %v3807 = vmul.f32 %v3568, 1.442695
  %v3808 = vpow.pop %v3807
  %v3809 = vmul.f32 %v3569, 1.442695
  %v3810 = vpow.pop %v3809
  %v3811 = vmul.f32 %v3570, 1.442695
  %v3812 = vpow.pop %v3811
  %v3813 = vmul.f32 %v3571, 1.442695
  %v3814 = vpow.pop %v3813
  %v3815 = vmul.f32 %v3572, 1.442695
  %v3816 = vpow.pop %v3815
  %v3817 = vmul.f32 %v3573, 1.442695
  %v3818 = vpow.pop %v3817
  %v3819 = vmul.f32 %v3574, 1.442695
  %v3820 = vpow.pop %v3819
  %v3821 = vmul.f32 %v3575, 1.442695
  %v3822 = vpow.pop %v3821
  %v3823 = vmul.f32 %v3576, 1.442695
  %v3824 = vpow.pop %v3823
  %v3825 = vmul.f32 %v3577, 1.442695
  %v3826 = vpow.pop %v3825
  %v3827 = vmul.f32 %v3578, 1.442695
  %v3828 = vpow.pop %v3827
  %v3829 = vmul.f32 %v3579, 1.442695
  %v3830 = vpow.pop %v3829
  %v3831 = vmul.f32 %v3580, 1.442695
  %v3832 = vpow.pop %v3831
  %v3833 = vmul.f32 %v3581, 1.442695
  %v3834 = vpow.pop %v3833
  %v3835 = vmul.f32 %v3582, 1.442695
  %v3836 = vpow.pop %v3835
  %v3837 = vmul.f32 %v3583, 1.442695
  %v3838 = vpow.pop %v3837
  %v3839 = vmul.f32 %v3584, 1.442695
  %v3840 = vpow.pop %v3839
  %v3841 = vsel %vm3072, %v3586, 0.0
  %3842 = vadd.xlane.f32.xlu0 %v3841
  %v3843 = vpop.xlane.xlu0 %3842
  %v3844 = vsel %vm3072, %v3588, 0.0
  %3845 = vadd.xlane.f32.xlu0 %v3844
  %v3846 = vpop.xlane.xlu0 %3845
  %v3847 = vsel %vm3072, %v3590, 0.0
  %3848 = vadd.xlane.f32.xlu0 %v3847
  %v3849 = vpop.xlane.xlu0 %3848
  %v3850 = vsel %vm3072, %v3592, 0.0
  %3851 = vadd.xlane.f32.xlu0 %v3850
  %v3852 = vpop.xlane.xlu0 %3851
  %v3853 = vsel %vm3072, %v3594, 0.0
  %3854 = vadd.xlane.f32.xlu0 %v3853
  %v3855 = vpop.xlane.xlu0 %3854
  %v3856 = vsel %vm3072, %v3596, 0.0
  %3857 = vadd.xlane.f32.xlu0 %v3856
  %v3858 = vpop.xlane.xlu0 %3857
  %v3859 = vsel %vm3072, %v3598, 0.0
  %3860 = vadd.xlane.f32.xlu0 %v3859
  %v3861 = vpop.xlane.xlu0 %3860
  %v3862 = vsel %vm3072, %v3600, 0.0
  %3863 = vadd.xlane.f32.xlu0 %v3862
  %v3864 = vpop.xlane.xlu0 %3863
  %v3865 = vsel %vm3072, %v3602, 0.0
  %3866 = vadd.xlane.f32.xlu0 %v3865
  %v3867 = vpop.xlane.xlu0 %3866
  %v3868 = vsel %vm3072, %v3604, 0.0
  %3869 = vadd.xlane.f32.xlu0 %v3868
  %v3870 = vpop.xlane.xlu0 %3869
  %v3871 = vsel %vm3072, %v3606, 0.0
  %3872 = vadd.xlane.f32.xlu0 %v3871
  %v3873 = vpop.xlane.xlu0 %3872
  %v3874 = vsel %vm3072, %v3608, 0.0
  %3875 = vadd.xlane.f32.xlu0 %v3874
  %v3876 = vpop.xlane.xlu0 %3875
  %v3877 = vsel %vm3072, %v3610, 0.0
  %3878 = vadd.xlane.f32.xlu0 %v3877
  %v3879 = vpop.xlane.xlu0 %3878
  %v3880 = vsel %vm3072, %v3612, 0.0
  %3881 = vadd.xlane.f32.xlu0 %v3880
  %v3882 = vpop.xlane.xlu0 %3881
  %v3883 = vsel %vm3072, %v3614, 0.0
  %3884 = vadd.xlane.f32.xlu0 %v3883
  %v3885 = vpop.xlane.xlu0 %3884
  %v3886 = vsel %vm3072, %v3616, 0.0
  %3887 = vadd.xlane.f32.xlu0 %v3886
  %v3888 = vpop.xlane.xlu0 %3887
  %v3889 = vsel %vm3072, %v3618, 0.0
  %3890 = vadd.xlane.f32.xlu0 %v3889
  %v3891 = vpop.xlane.xlu0 %3890
  %v3892 = vsel %vm3072, %v3620, 0.0
  %3893 = vadd.xlane.f32.xlu0 %v3892
  %v3894 = vpop.xlane.xlu0 %3893
  %v3895 = vsel %vm3072, %v3622, 0.0
  %3896 = vadd.xlane.f32.xlu0 %v3895
  %v3897 = vpop.xlane.xlu0 %3896
  %v3898 = vsel %vm3072, %v3624, 0.0
  %3899 = vadd.xlane.f32.xlu0 %v3898
  %v3900 = vpop.xlane.xlu0 %3899
  %v3901 = vsel %vm3072, %v3626, 0.0
  %3902 = vadd.xlane.f32.xlu0 %v3901
  %v3903 = vpop.xlane.xlu0 %3902
  %v3904 = vsel %vm3072, %v3628, 0.0
  %3905 = vadd.xlane.f32.xlu0 %v3904
  %v3906 = vpop.xlane.xlu0 %3905
  %v3907 = vsel %vm3072, %v3630, 0.0
  %3908 = vadd.xlane.f32.xlu0 %v3907
  %v3909 = vpop.xlane.xlu0 %3908
  %v3910 = vsel %vm3072, %v3632, 0.0
  %3911 = vadd.xlane.f32.xlu0 %v3910
  %v3912 = vpop.xlane.xlu0 %3911
  %v3913 = vsel %vm3072, %v3634, 0.0
  %3914 = vadd.xlane.f32.xlu0 %v3913
  %v3915 = vpop.xlane.xlu0 %3914
  %v3916 = vsel %vm3072, %v3636, 0.0
  %3917 = vadd.xlane.f32.xlu0 %v3916
  %v3918 = vpop.xlane.xlu0 %3917
  %v3919 = vsel %vm3072, %v3638, 0.0
  %3920 = vadd.xlane.f32.xlu0 %v3919
  %v3921 = vpop.xlane.xlu0 %3920
  %v3922 = vsel %vm3072, %v3640, 0.0
  %3923 = vadd.xlane.f32.xlu0 %v3922
  %v3924 = vpop.xlane.xlu0 %3923
  %v3925 = vsel %vm3072, %v3642, 0.0
  %3926 = vadd.xlane.f32.xlu0 %v3925
  %v3927 = vpop.xlane.xlu0 %3926
  %v3928 = vsel %vm3072, %v3644, 0.0
  %3929 = vadd.xlane.f32.xlu0 %v3928
  %v3930 = vpop.xlane.xlu0 %3929
  %v3931 = vsel %vm3072, %v3646, 0.0
  %3932 = vadd.xlane.f32.xlu0 %v3931
  %v3933 = vpop.xlane.xlu0 %3932
  %v3934 = vsel %vm3072, %v3648, 0.0
  %3935 = vadd.xlane.f32.xlu0 %v3934
  %v3936 = vpop.xlane.xlu0 %3935
  %v3937 = vsel %vm3072, %v3650, 0.0
  %3938 = vadd.xlane.f32.xlu0 %v3937
  %v3939 = vpop.xlane.xlu0 %3938
  %v3940 = vsel %vm3072, %v3652, 0.0
  %3941 = vadd.xlane.f32.xlu0 %v3940
  %v3942 = vpop.xlane.xlu0 %3941
  %v3943 = vsel %vm3072, %v3654, 0.0
  %3944 = vadd.xlane.f32.xlu0 %v3943
  %v3945 = vpop.xlane.xlu0 %3944
  %v3946 = vsel %vm3072, %v3656, 0.0
  %3947 = vadd.xlane.f32.xlu0 %v3946
  %v3948 = vpop.xlane.xlu0 %3947
  %v3949 = vsel %vm3072, %v3658, 0.0
  %3950 = vadd.xlane.f32.xlu0 %v3949
  %v3951 = vpop.xlane.xlu0 %3950
  %v3952 = vsel %vm3072, %v3660, 0.0
  %3953 = vadd.xlane.f32.xlu0 %v3952
  %v3954 = vpop.xlane.xlu0 %3953
  %v3955 = vsel %vm3072, %v3662, 0.0
  %3956 = vadd.xlane.f32.xlu0 %v3955
  %v3957 = vpop.xlane.xlu0 %3956
  %v3958 = vsel %vm3072, %v3664, 0.0
  %3959 = vadd.xlane.f32.xlu0 %v3958
  %v3960 = vpop.xlane.xlu0 %3959
  %v3961 = vsel %vm3072, %v3666, 0.0
  %3962 = vadd.xlane.f32.xlu0 %v3961
  %v3963 = vpop.xlane.xlu0 %3962
  %v3964 = vsel %vm3072, %v3668, 0.0
  %3965 = vadd.xlane.f32.xlu0 %v3964
  %v3966 = vpop.xlane.xlu0 %3965
  %v3967 = vsel %vm3072, %v3670, 0.0
  %3968 = vadd.xlane.f32.xlu0 %v3967
  %v3969 = vpop.xlane.xlu0 %3968
  %v3970 = vsel %vm3072, %v3672, 0.0
  %3971 = vadd.xlane.f32.xlu0 %v3970
  %v3972 = vpop.xlane.xlu0 %3971
  %v3973 = vsel %vm3072, %v3674, 0.0
  %3974 = vadd.xlane.f32.xlu0 %v3973
  %v3975 = vpop.xlane.xlu0 %3974
  %v3976 = vsel %vm3072, %v3676, 0.0
  %3977 = vadd.xlane.f32.xlu0 %v3976
  %v3978 = vpop.xlane.xlu0 %3977
  %v3979 = vsel %vm3072, %v3678, 0.0
  %3980 = vadd.xlane.f32.xlu0 %v3979
  %v3981 = vpop.xlane.xlu0 %3980
  %v3982 = vsel %vm3072, %v3680, 0.0
  %3983 = vadd.xlane.f32.xlu0 %v3982
  %v3984 = vpop.xlane.xlu0 %3983
  %v3985 = vsel %vm3072, %v3682, 0.0
  %3986 = vadd.xlane.f32.xlu0 %v3985
  %v3987 = vpop.xlane.xlu0 %3986
  %v3988 = vsel %vm3072, %v3684, 0.0
  %3989 = vadd.xlane.f32.xlu0 %v3988
  %v3990 = vpop.xlane.xlu0 %3989
  %v3991 = vsel %vm3072, %v3686, 0.0
  %3992 = vadd.xlane.f32.xlu0 %v3991
  %v3993 = vpop.xlane.xlu0 %3992
  %v3994 = vsel %vm3072, %v3688, 0.0
  %3995 = vadd.xlane.f32.xlu0 %v3994
  %v3996 = vpop.xlane.xlu0 %3995
  %v3997 = vsel %vm3072, %v3690, 0.0
  %3998 = vadd.xlane.f32.xlu0 %v3997
  %v3999 = vpop.xlane.xlu0 %3998
  %v4000 = vsel %vm3072, %v3692, 0.0
  %4001 = vadd.xlane.f32.xlu0 %v4000
  %v4002 = vpop.xlane.xlu0 %4001
  %v4003 = vsel %vm3072, %v3694, 0.0
  %4004 = vadd.xlane.f32.xlu0 %v4003
  %v4005 = vpop.xlane.xlu0 %4004
  %v4006 = vsel %vm3072, %v3696, 0.0
  %4007 = vadd.xlane.f32.xlu0 %v4006
  %v4008 = vpop.xlane.xlu0 %4007
  %v4009 = vsel %vm3072, %v3698, 0.0
  %4010 = vadd.xlane.f32.xlu0 %v4009
  %v4011 = vpop.xlane.xlu0 %4010
  %v4012 = vsel %vm3072, %v3700, 0.0
  %4013 = vadd.xlane.f32.xlu0 %v4012
  %v4014 = vpop.xlane.xlu0 %4013
  %v4015 = vsel %vm3072, %v3702, 0.0
  %4016 = vadd.xlane.f32.xlu0 %v4015
  %v4017 = vpop.xlane.xlu0 %4016
  %v4018 = vsel %vm3072, %v3704, 0.0
  %4019 = vadd.xlane.f32.xlu0 %v4018
  %v4020 = vpop.xlane.xlu0 %4019
  %v4021 = vsel %vm3072, %v3706, 0.0
  %4022 = vadd.xlane.f32.xlu0 %v4021
  %v4023 = vpop.xlane.xlu0 %4022
  %v4024 = vsel %vm3072, %v3708, 0.0
  %4025 = vadd.xlane.f32.xlu0 %v4024
  %v4026 = vpop.xlane.xlu0 %4025
  %v4027 = vsel %vm3072, %v3710, 0.0
  %4028 = vadd.xlane.f32.xlu0 %v4027
  %v4029 = vpop.xlane.xlu0 %4028
  %v4030 = vsel %vm3072, %v3712, 0.0
  %4031 = vadd.xlane.f32.xlu0 %v4030
  %v4032 = vpop.xlane.xlu0 %4031
  %v4033 = vsel %vm3072, %v3714, 0.0
  %4034 = vadd.xlane.f32.xlu0 %v4033
  %v4035 = vpop.xlane.xlu0 %4034
  %v4036 = vsel %vm3072, %v3716, 0.0
  %4037 = vadd.xlane.f32.xlu0 %v4036
  %v4038 = vpop.xlane.xlu0 %4037
  %v4039 = vsel %vm3072, %v3718, 0.0
  %4040 = vadd.xlane.f32.xlu0 %v4039
  %v4041 = vpop.xlane.xlu0 %4040
  %v4042 = vsel %vm3072, %v3720, 0.0
  %4043 = vadd.xlane.f32.xlu0 %v4042
  %v4044 = vpop.xlane.xlu0 %4043
  %v4045 = vsel %vm3072, %v3722, 0.0
  %4046 = vadd.xlane.f32.xlu0 %v4045
  %v4047 = vpop.xlane.xlu0 %4046
  %v4048 = vsel %vm3072, %v3724, 0.0
  %4049 = vadd.xlane.f32.xlu0 %v4048
  %v4050 = vpop.xlane.xlu0 %4049
  %v4051 = vsel %vm3072, %v3726, 0.0
  %4052 = vadd.xlane.f32.xlu0 %v4051
  %v4053 = vpop.xlane.xlu0 %4052
  %v4054 = vsel %vm3072, %v3728, 0.0
  %4055 = vadd.xlane.f32.xlu0 %v4054
  %v4056 = vpop.xlane.xlu0 %4055
  %v4057 = vsel %vm3072, %v3730, 0.0
  %4058 = vadd.xlane.f32.xlu0 %v4057
  %v4059 = vpop.xlane.xlu0 %4058
  %v4060 = vsel %vm3072, %v3732, 0.0
  %4061 = vadd.xlane.f32.xlu0 %v4060
  %v4062 = vpop.xlane.xlu0 %4061
  %v4063 = vsel %vm3072, %v3734, 0.0
  %4064 = vadd.xlane.f32.xlu0 %v4063
  %v4065 = vpop.xlane.xlu0 %4064
  %v4066 = vsel %vm3072, %v3736, 0.0
  %4067 = vadd.xlane.f32.xlu0 %v4066
  %v4068 = vpop.xlane.xlu0 %4067
  %v4069 = vsel %vm3072, %v3738, 0.0
  %4070 = vadd.xlane.f32.xlu0 %v4069
  %v4071 = vpop.xlane.xlu0 %4070
  %v4072 = vsel %vm3072, %v3740, 0.0
  %4073 = vadd.xlane.f32.xlu0 %v4072
  %v4074 = vpop.xlane.xlu0 %4073
  %v4075 = vsel %vm3072, %v3742, 0.0
  %4076 = vadd.xlane.f32.xlu0 %v4075
  %v4077 = vpop.xlane.xlu0 %4076
  %v4078 = vsel %vm3072, %v3744, 0.0
  %4079 = vadd.xlane.f32.xlu0 %v4078
  %v4080 = vpop.xlane.xlu0 %4079
  %v4081 = vsel %vm3072, %v3746, 0.0
  %4082 = vadd.xlane.f32.xlu0 %v4081
  %v4083 = vpop.xlane.xlu0 %4082
  %v4084 = vsel %vm3072, %v3748, 0.0
  %4085 = vadd.xlane.f32.xlu0 %v4084
  %v4086 = vpop.xlane.xlu0 %4085
  %v4087 = vsel %vm3072, %v3750, 0.0
  %4088 = vadd.xlane.f32.xlu0 %v4087
  %v4089 = vpop.xlane.xlu0 %4088
  %v4090 = vsel %vm3072, %v3752, 0.0
  %4091 = vadd.xlane.f32.xlu0 %v4090
  %v4092 = vpop.xlane.xlu0 %4091
  %v4093 = vsel %vm3072, %v3754, 0.0
  %4094 = vadd.xlane.f32.xlu0 %v4093
  %v4095 = vpop.xlane.xlu0 %4094
  %v4096 = vsel %vm3072, %v3756, 0.0
  %4097 = vadd.xlane.f32.xlu0 %v4096
  %v4098 = vpop.xlane.xlu0 %4097
  %v4099 = vsel %vm3072, %v3758, 0.0
  %4100 = vadd.xlane.f32.xlu0 %v4099
  %v4101 = vpop.xlane.xlu0 %4100
  %v4102 = vsel %vm3072, %v3760, 0.0
  %4103 = vadd.xlane.f32.xlu0 %v4102
  %v4104 = vpop.xlane.xlu0 %4103
  %v4105 = vsel %vm3072, %v3762, 0.0
  %4106 = vadd.xlane.f32.xlu0 %v4105
  %v4107 = vpop.xlane.xlu0 %4106
  %v4108 = vsel %vm3072, %v3764, 0.0
  %4109 = vadd.xlane.f32.xlu0 %v4108
  %v4110 = vpop.xlane.xlu0 %4109
  %v4111 = vsel %vm3072, %v3766, 0.0
  %4112 = vadd.xlane.f32.xlu0 %v4111
  %v4113 = vpop.xlane.xlu0 %4112
  %v4114 = vsel %vm3072, %v3768, 0.0
  %4115 = vadd.xlane.f32.xlu0 %v4114
  %v4116 = vpop.xlane.xlu0 %4115
  %v4117 = vsel %vm3072, %v3770, 0.0
  %4118 = vadd.xlane.f32.xlu0 %v4117
  %v4119 = vpop.xlane.xlu0 %4118
  %v4120 = vsel %vm3072, %v3772, 0.0
  %4121 = vadd.xlane.f32.xlu0 %v4120
  %v4122 = vpop.xlane.xlu0 %4121
  %v4123 = vsel %vm3072, %v3774, 0.0
  %4124 = vadd.xlane.f32.xlu0 %v4123
  %v4125 = vpop.xlane.xlu0 %4124
  %v4126 = vsel %vm3072, %v3776, 0.0
  %4127 = vadd.xlane.f32.xlu0 %v4126
  %v4128 = vpop.xlane.xlu0 %4127
  %v4129 = vsel %vm3072, %v3778, 0.0
  %4130 = vadd.xlane.f32.xlu0 %v4129
  %v4131 = vpop.xlane.xlu0 %4130
  %v4132 = vsel %vm3072, %v3780, 0.0
  %4133 = vadd.xlane.f32.xlu0 %v4132
  %v4134 = vpop.xlane.xlu0 %4133
  %v4135 = vsel %vm3072, %v3782, 0.0
  %4136 = vadd.xlane.f32.xlu0 %v4135
  %v4137 = vpop.xlane.xlu0 %4136
  %v4138 = vsel %vm3072, %v3784, 0.0
  %4139 = vadd.xlane.f32.xlu0 %v4138
  %v4140 = vpop.xlane.xlu0 %4139
  %v4141 = vsel %vm3072, %v3786, 0.0
  %4142 = vadd.xlane.f32.xlu0 %v4141
  %v4143 = vpop.xlane.xlu0 %4142
  %v4144 = vsel %vm3072, %v3788, 0.0
  %4145 = vadd.xlane.f32.xlu0 %v4144
  %v4146 = vpop.xlane.xlu0 %4145
  %v4147 = vsel %vm3072, %v3790, 0.0
  %4148 = vadd.xlane.f32.xlu0 %v4147
  %v4149 = vpop.xlane.xlu0 %4148
  %v4150 = vsel %vm3072, %v3792, 0.0
  %4151 = vadd.xlane.f32.xlu0 %v4150
  %v4152 = vpop.xlane.xlu0 %4151
  %v4153 = vsel %vm3072, %v3794, 0.0
  %4154 = vadd.xlane.f32.xlu0 %v4153
  %v4155 = vpop.xlane.xlu0 %4154
  %v4156 = vsel %vm3072, %v3796, 0.0
  %4157 = vadd.xlane.f32.xlu0 %v4156
  %v4158 = vpop.xlane.xlu0 %4157
  %v4159 = vsel %vm3072, %v3798, 0.0
  %4160 = vadd.xlane.f32.xlu0 %v4159
  %v4161 = vpop.xlane.xlu0 %4160
  %v4162 = vsel %vm3072, %v3800, 0.0
  %4163 = vadd.xlane.f32.xlu0 %v4162
  %v4164 = vpop.xlane.xlu0 %4163
  %v4165 = vsel %vm3072, %v3802, 0.0
  %4166 = vadd.xlane.f32.xlu0 %v4165
  %v4167 = vpop.xlane.xlu0 %4166
  %v4168 = vsel %vm3072, %v3804, 0.0
  %4169 = vadd.xlane.f32.xlu0 %v4168
  %v4170 = vpop.xlane.xlu0 %4169
  %v4171 = vsel %vm3072, %v3806, 0.0
  %4172 = vadd.xlane.f32.xlu0 %v4171
  %v4173 = vpop.xlane.xlu0 %4172
  %v4174 = vsel %vm3072, %v3808, 0.0
  %4175 = vadd.xlane.f32.xlu0 %v4174
  %v4176 = vpop.xlane.xlu0 %4175
  %v4177 = vsel %vm3072, %v3810, 0.0
  %4178 = vadd.xlane.f32.xlu0 %v4177
  %v4179 = vpop.xlane.xlu0 %4178
  %v4180 = vsel %vm3072, %v3812, 0.0
  %4181 = vadd.xlane.f32.xlu0 %v4180
  %v4182 = vpop.xlane.xlu0 %4181
  %v4183 = vsel %vm3072, %v3814, 0.0
  %4184 = vadd.xlane.f32.xlu0 %v4183
  %v4185 = vpop.xlane.xlu0 %4184
  %v4186 = vsel %vm3072, %v3816, 0.0
  %4187 = vadd.xlane.f32.xlu0 %v4186
  %v4188 = vpop.xlane.xlu0 %4187
  %v4189 = vsel %vm3072, %v3818, 0.0
  %4190 = vadd.xlane.f32.xlu0 %v4189
  %v4191 = vpop.xlane.xlu0 %4190
  %v4192 = vsel %vm3072, %v3820, 0.0
  %4193 = vadd.xlane.f32.xlu0 %v4192
  %v4194 = vpop.xlane.xlu0 %4193
  %v4195 = vsel %vm3072, %v3822, 0.0
  %4196 = vadd.xlane.f32.xlu0 %v4195
  %v4197 = vpop.xlane.xlu0 %4196
  %v4198 = vsel %vm3072, %v3824, 0.0
  %4199 = vadd.xlane.f32.xlu0 %v4198
  %v4200 = vpop.xlane.xlu0 %4199
  %v4201 = vsel %vm3072, %v3826, 0.0
  %4202 = vadd.xlane.f32.xlu0 %v4201
  %v4203 = vpop.xlane.xlu0 %4202
  %v4204 = vsel %vm3072, %v3828, 0.0
  %4205 = vadd.xlane.f32.xlu0 %v4204
  %v4206 = vpop.xlane.xlu0 %4205
  %v4207 = vsel %vm3072, %v3830, 0.0
  %4208 = vadd.xlane.f32.xlu0 %v4207
  %v4209 = vpop.xlane.xlu0 %4208
  %v4210 = vsel %vm3072, %v3832, 0.0
  %4211 = vadd.xlane.f32.xlu0 %v4210
  %v4212 = vpop.xlane.xlu0 %4211
  %v4213 = vsel %vm3072, %v3834, 0.0
  %4214 = vadd.xlane.f32.xlu0 %v4213
  %v4215 = vpop.xlane.xlu0 %4214
  %v4216 = vsel %vm3072, %v3836, 0.0
  %4217 = vadd.xlane.f32.xlu0 %v4216
  %v4218 = vpop.xlane.xlu0 %4217
  %v4219 = vsel %vm3072, %v3838, 0.0
  %4220 = vadd.xlane.f32.xlu0 %v4219
  %v4221 = vpop.xlane.xlu0 %4220
  %v4222 = vsel %vm3072, %v3840, 0.0
  %4223 = vadd.xlane.f32.xlu0 %v4222
  %v4224 = vpop.xlane.xlu0 %4223
  %v4225 = vrcp.pop %v3843
  %v4226 = vrcp.pop %v3846
  %v4227 = vrcp.pop %v3849
  %v4228 = vrcp.pop %v3852
  %v4229 = vrcp.pop %v3855
  %v4230 = vrcp.pop %v3858
  %v4231 = vrcp.pop %v3861
  %v4232 = vrcp.pop %v3864
  %v4233 = vrcp.pop %v3867
  %v4234 = vrcp.pop %v3870
  %v4235 = vrcp.pop %v3873
  %v4236 = vrcp.pop %v3876
  %v4237 = vrcp.pop %v3879
  %v4238 = vrcp.pop %v3882
  %v4239 = vrcp.pop %v3885
  %v4240 = vrcp.pop %v3888
  %v4241 = vrcp.pop %v3891
  %v4242 = vrcp.pop %v3894
  %v4243 = vrcp.pop %v3897
  %v4244 = vrcp.pop %v3900
  %v4245 = vrcp.pop %v3903
  %v4246 = vrcp.pop %v3906
  %v4247 = vrcp.pop %v3909
  %v4248 = vrcp.pop %v3912
  %v4249 = vrcp.pop %v3915
  %v4250 = vrcp.pop %v3918
  %v4251 = vrcp.pop %v3921
  %v4252 = vrcp.pop %v3924
  %v4253 = vrcp.pop %v3927
  %v4254 = vrcp.pop %v3930
  %v4255 = vrcp.pop %v3933
  %v4256 = vrcp.pop %v3936
  %v4257 = vrcp.pop %v3939
  %v4258 = vrcp.pop %v3942
  %v4259 = vrcp.pop %v3945
  %v4260 = vrcp.pop %v3948
  %v4261 = vrcp.pop %v3951
  %v4262 = vrcp.pop %v3954
  %v4263 = vrcp.pop %v3957
  %v4264 = vrcp.pop %v3960
  %v4265 = vrcp.pop %v3963
  %v4266 = vrcp.pop %v3966
  %v4267 = vrcp.pop %v3969
  %v4268 = vrcp.pop %v3972
  %v4269 = vrcp.pop %v3975
  %v4270 = vrcp.pop %v3978
  %v4271 = vrcp.pop %v3981
  %v4272 = vrcp.pop %v3984
  %v4273 = vrcp.pop %v3987
  %v4274 = vrcp.pop %v3990
  %v4275 = vrcp.pop %v3993
  %v4276 = vrcp.pop %v3996
  %v4277 = vrcp.pop %v3999
  %v4278 = vrcp.pop %v4002
  %v4279 = vrcp.pop %v4005
  %v4280 = vrcp.pop %v4008
  %v4281 = vrcp.pop %v4011
  %v4282 = vrcp.pop %v4014
  %v4283 = vrcp.pop %v4017
  %v4284 = vrcp.pop %v4020
  %v4285 = vrcp.pop %v4023
  %v4286 = vrcp.pop %v4026
  %v4287 = vrcp.pop %v4029
  %v4288 = vrcp.pop %v4032
  %v4289 = vrcp.pop %v4035
  %v4290 = vrcp.pop %v4038
  %v4291 = vrcp.pop %v4041
  %v4292 = vrcp.pop %v4044
  %v4293 = vrcp.pop %v4047
  %v4294 = vrcp.pop %v4050
  %v4295 = vrcp.pop %v4053
  %v4296 = vrcp.pop %v4056
  %v4297 = vrcp.pop %v4059
  %v4298 = vrcp.pop %v4062
  %v4299 = vrcp.pop %v4065
  %v4300 = vrcp.pop %v4068
  %v4301 = vrcp.pop %v4071
  %v4302 = vrcp.pop %v4074
  %v4303 = vrcp.pop %v4077
  %v4304 = vrcp.pop %v4080
  %v4305 = vrcp.pop %v4083
  %v4306 = vrcp.pop %v4086
  %v4307 = vrcp.pop %v4089
  %v4308 = vrcp.pop %v4092
  %v4309 = vrcp.pop %v4095
  %v4310 = vrcp.pop %v4098
  %v4311 = vrcp.pop %v4101
  %v4312 = vrcp.pop %v4104
  %v4313 = vrcp.pop %v4107
  %v4314 = vrcp.pop %v4110
  %v4315 = vrcp.pop %v4113
  %v4316 = vrcp.pop %v4116
  %v4317 = vrcp.pop %v4119
  %v4318 = vrcp.pop %v4122
  %v4319 = vrcp.pop %v4125
  %v4320 = vrcp.pop %v4128
  %v4321 = vrcp.pop %v4131
  %v4322 = vrcp.pop %v4134
  %v4323 = vrcp.pop %v4137
  %v4324 = vrcp.pop %v4140
  %v4325 = vrcp.pop %v4143
  %v4326 = vrcp.pop %v4146
  %v4327 = vrcp.pop %v4149
  %v4328 = vrcp.pop %v4152
  %v4329 = vrcp.pop %v4155
  %v4330 = vrcp.pop %v4158
  %v4331 = vrcp.pop %v4161
  %v4332 = vrcp.pop %v4164
  %v4333 = vrcp.pop %v4167
  %v4334 = vrcp.pop %v4170
  %v4335 = vrcp.pop %v4173
  %v4336 = vrcp.pop %v4176
  %v4337 = vrcp.pop %v4179
  %v4338 = vrcp.pop %v4182
  %v4339 = vrcp.pop %v4185
  %v4340 = vrcp.pop %v4188
  %v4341 = vrcp.pop %v4191
  %v4342 = vrcp.pop %v4194
  %v4343 = vrcp.pop %v4197
  %v4344 = vrcp.pop %v4200
  %v4345 = vrcp.pop %v4203
  %v4346 = vrcp.pop %v4206
  %v4347 = vrcp.pop %v4209
  %v4348 = vrcp.pop %v4212
  %v4349 = vrcp.pop %v4215
  %v4350 = vrcp.pop %v4218
  %v4351 = vrcp.pop %v4221
  %v4352 = vrcp.pop %v4224
  %v4353 = vmul.f32 %v3586, %v4225
  %v4354 = vmul.f32 %v3588, %v4226
  %v4355 = vmul.f32 %v3590, %v4227
  %v4356 = vmul.f32 %v3592, %v4228
  %v4357 = vmul.f32 %v3594, %v4229
  %v4358 = vmul.f32 %v3596, %v4230
  %v4359 = vmul.f32 %v3598, %v4231
  %v4360 = vmul.f32 %v3600, %v4232
  %v4361 = vmul.f32 %v3602, %v4233
  %v4362 = vmul.f32 %v3604, %v4234
  %v4363 = vmul.f32 %v3606, %v4235
  %v4364 = vmul.f32 %v3608, %v4236
  %v4365 = vmul.f32 %v3610, %v4237
  %v4366 = vmul.f32 %v3612, %v4238
  %v4367 = vmul.f32 %v3614, %v4239
  %v4368 = vmul.f32 %v3616, %v4240
  %v4369 = vmul.f32 %v3618, %v4241
  %v4370 = vmul.f32 %v3620, %v4242
  %v4371 = vmul.f32 %v3622, %v4243
  %v4372 = vmul.f32 %v3624, %v4244
  %v4373 = vmul.f32 %v3626, %v4245
  %v4374 = vmul.f32 %v3628, %v4246
  %v4375 = vmul.f32 %v3630, %v4247
  %v4376 = vmul.f32 %v3632, %v4248
  %v4377 = vmul.f32 %v3634, %v4249
  %v4378 = vmul.f32 %v3636, %v4250
  %v4379 = vmul.f32 %v3638, %v4251
  %v4380 = vmul.f32 %v3640, %v4252
  %v4381 = vmul.f32 %v3642, %v4253
  %v4382 = vmul.f32 %v3644, %v4254
  %v4383 = vmul.f32 %v3646, %v4255
  %v4384 = vmul.f32 %v3648, %v4256
  %v4385 = vmul.f32 %v3650, %v4257
  %v4386 = vmul.f32 %v3652, %v4258
  %v4387 = vmul.f32 %v3654, %v4259
  %v4388 = vmul.f32 %v3656, %v4260
  %v4389 = vmul.f32 %v3658, %v4261
  %v4390 = vmul.f32 %v3660, %v4262
  %v4391 = vmul.f32 %v3662, %v4263
  %v4392 = vmul.f32 %v3664, %v4264
  %v4393 = vmul.f32 %v3666, %v4265
  %v4394 = vmul.f32 %v3668, %v4266
  %v4395 = vmul.f32 %v3670, %v4267
  %v4396 = vmul.f32 %v3672, %v4268
  %v4397 = vmul.f32 %v3674, %v4269
  %v4398 = vmul.f32 %v3676, %v4270
  %v4399 = vmul.f32 %v3678, %v4271
  %v4400 = vmul.f32 %v3680, %v4272
  %v4401 = vmul.f32 %v3682, %v4273
  %v4402 = vmul.f32 %v3684, %v4274
  %v4403 = vmul.f32 %v3686, %v4275
  %v4404 = vmul.f32 %v3688, %v4276
  %v4405 = vmul.f32 %v3690, %v4277
  %v4406 = vmul.f32 %v3692, %v4278
  %v4407 = vmul.f32 %v3694, %v4279
  %v4408 = vmul.f32 %v3696, %v4280
  %v4409 = vmul.f32 %v3698, %v4281
  %v4410 = vmul.f32 %v3700, %v4282
  %v4411 = vmul.f32 %v3702, %v4283
  %v4412 = vmul.f32 %v3704, %v4284
  %v4413 = vmul.f32 %v3706, %v4285
  %v4414 = vmul.f32 %v3708, %v4286
  %v4415 = vmul.f32 %v3710, %v4287
  %v4416 = vmul.f32 %v3712, %v4288
  %v4417 = vmul.f32 %v3714, %v4289
  %v4418 = vmul.f32 %v3716, %v4290
  %v4419 = vmul.f32 %v3718, %v4291
  %v4420 = vmul.f32 %v3720, %v4292
  %v4421 = vmul.f32 %v3722, %v4293
  %v4422 = vmul.f32 %v3724, %v4294
  %v4423 = vmul.f32 %v3726, %v4295
  %v4424 = vmul.f32 %v3728, %v4296
  %v4425 = vmul.f32 %v3730, %v4297
  %v4426 = vmul.f32 %v3732, %v4298
  %v4427 = vmul.f32 %v3734, %v4299
  %v4428 = vmul.f32 %v3736, %v4300
  %v4429 = vmul.f32 %v3738, %v4301
  %v4430 = vmul.f32 %v3740, %v4302
  %v4431 = vmul.f32 %v3742, %v4303
  %v4432 = vmul.f32 %v3744, %v4304
  %v4433 = vmul.f32 %v3746, %v4305
  %v4434 = vmul.f32 %v3748, %v4306
  %v4435 = vmul.f32 %v3750, %v4307
  %v4436 = vmul.f32 %v3752, %v4308
  %v4437 = vmul.f32 %v3754, %v4309
  %v4438 = vmul.f32 %v3756, %v4310
  %v4439 = vmul.f32 %v3758, %v4311
  %v4440 = vmul.f32 %v3760, %v4312
  %v4441 = vmul.f32 %v3762, %v4313
  %v4442 = vmul.f32 %v3764, %v4314
  %v4443 = vmul.f32 %v3766, %v4315
  %v4444 = vmul.f32 %v3768, %v4316
  %v4445 = vmul.f32 %v3770, %v4317
  %v4446 = vmul.f32 %v3772, %v4318
  %v4447 = vmul.f32 %v3774, %v4319
  %v4448 = vmul.f32 %v3776, %v4320
  %v4449 = vmul.f32 %v3778, %v4321
  %v4450 = vmul.f32 %v3780, %v4322
  %v4451 = vmul.f32 %v3782, %v4323
  %v4452 = vmul.f32 %v3784, %v4324
  %v4453 = vmul.f32 %v3786, %v4325
  %v4454 = vmul.f32 %v3788, %v4326
  %v4455 = vmul.f32 %v3790, %v4327
  %v4456 = vmul.f32 %v3792, %v4328
  %v4457 = vmul.f32 %v3794, %v4329
  %v4458 = vmul.f32 %v3796, %v4330
  %v4459 = vmul.f32 %v3798, %v4331
  %v4460 = vmul.f32 %v3800, %v4332
  %v4461 = vmul.f32 %v3802, %v4333
  %v4462 = vmul.f32 %v3804, %v4334
  %v4463 = vmul.f32 %v3806, %v4335
  %v4464 = vmul.f32 %v3808, %v4336
  %v4465 = vmul.f32 %v3810, %v4337
  %v4466 = vmul.f32 %v3812, %v4338
  %v4467 = vmul.f32 %v3814, %v4339
  %v4468 = vmul.f32 %v3816, %v4340
  %v4469 = vmul.f32 %v3818, %v4341
  %v4470 = vmul.f32 %v3820, %v4342
  %v4471 = vmul.f32 %v3822, %v4343
  %v4472 = vmul.f32 %v3824, %v4344
  %v4473 = vmul.f32 %v3826, %v4345
  %v4474 = vmul.f32 %v3828, %v4346
  %v4475 = vmul.f32 %v3830, %v4347
  %v4476 = vmul.f32 %v3832, %v4348
  %v4477 = vmul.f32 %v3834, %v4349
  %v4478 = vmul.f32 %v3836, %v4350
  %v4479 = vmul.f32 %v3838, %v4351
  %v4480 = vmul.f32 %v3840, %v4352
  %v4481 = vpack.c.bf16 %v4354, %v4353
  %v4482 = vpack.c.bf16 %v4356, %v4355
  %v4483 = vpack.c.bf16 %v4358, %v4357
  %v4484 = vpack.c.bf16 %v4360, %v4359
  %v4485 = vpack.c.bf16 %v4362, %v4361
  %v4486 = vpack.c.bf16 %v4364, %v4363
  %v4487 = vpack.c.bf16 %v4366, %v4365
  %v4488 = vpack.c.bf16 %v4368, %v4367
  %v4489 = vpack.c.bf16 %v4370, %v4369
  %v4490 = vpack.c.bf16 %v4372, %v4371
  %v4491 = vpack.c.bf16 %v4374, %v4373
  %v4492 = vpack.c.bf16 %v4376, %v4375
  %v4493 = vpack.c.bf16 %v4378, %v4377
  %v4494 = vpack.c.bf16 %v4380, %v4379
  %v4495 = vpack.c.bf16 %v4382, %v4381
  %v4496 = vpack.c.bf16 %v4384, %v4383
  %v4497 = vpack.c.bf16 %v4386, %v4385
  %v4498 = vpack.c.bf16 %v4388, %v4387
  %v4499 = vpack.c.bf16 %v4390, %v4389
  %v4500 = vpack.c.bf16 %v4392, %v4391
  %v4501 = vpack.c.bf16 %v4394, %v4393
  %v4502 = vpack.c.bf16 %v4396, %v4395
  %v4503 = vpack.c.bf16 %v4398, %v4397
  %v4504 = vpack.c.bf16 %v4400, %v4399
  %v4505 = vpack.c.bf16 %v4402, %v4401
  %v4506 = vpack.c.bf16 %v4404, %v4403
  %v4507 = vpack.c.bf16 %v4406, %v4405
  %v4508 = vpack.c.bf16 %v4408, %v4407
  %v4509 = vpack.c.bf16 %v4410, %v4409
  %v4510 = vpack.c.bf16 %v4412, %v4411
  %v4511 = vpack.c.bf16 %v4414, %v4413
  %v4512 = vpack.c.bf16 %v4416, %v4415
  %v4513 = vpack.c.bf16 %v4418, %v4417
  %v4514 = vpack.c.bf16 %v4420, %v4419
  %v4515 = vpack.c.bf16 %v4422, %v4421
  %v4516 = vpack.c.bf16 %v4424, %v4423
  %v4517 = vpack.c.bf16 %v4426, %v4425
  %v4518 = vpack.c.bf16 %v4428, %v4427
  %v4519 = vpack.c.bf16 %v4430, %v4429
  %v4520 = vpack.c.bf16 %v4432, %v4431
  %v4521 = vpack.c.bf16 %v4434, %v4433
  %v4522 = vpack.c.bf16 %v4436, %v4435
  %v4523 = vpack.c.bf16 %v4438, %v4437
  %v4524 = vpack.c.bf16 %v4440, %v4439
  %v4525 = vpack.c.bf16 %v4442, %v4441
  %v4526 = vpack.c.bf16 %v4444, %v4443
  %v4527 = vpack.c.bf16 %v4446, %v4445
  %v4528 = vpack.c.bf16 %v4448, %v4447
  %v4529 = vpack.c.bf16 %v4450, %v4449
  %v4530 = vpack.c.bf16 %v4452, %v4451
  %v4531 = vpack.c.bf16 %v4454, %v4453
  %v4532 = vpack.c.bf16 %v4456, %v4455
  %v4533 = vpack.c.bf16 %v4458, %v4457
  %v4534 = vpack.c.bf16 %v4460, %v4459
  %v4535 = vpack.c.bf16 %v4462, %v4461
  %v4536 = vpack.c.bf16 %v4464, %v4463
  %v4537 = vpack.c.bf16 %v4466, %v4465
  %v4538 = vpack.c.bf16 %v4468, %v4467
  %v4539 = vpack.c.bf16 %v4470, %v4469
  %v4540 = vpack.c.bf16 %v4472, %v4471
  %v4541 = vpack.c.bf16 %v4474, %v4473
  %v4542 = vpack.c.bf16 %v4476, %v4475
  %v4543 = vpack.c.bf16 %v4478, %v4477
  %v4544 = vpack.c.bf16 %v4480, %v4479
  %v4545 = vpack.c.bf16 %v404, %v401
  %v4546 = vpack.c.bf16 %v412, %v409
  %v4547 = vpack.c.bf16 %v420, %v417
  %v4548 = vpack.c.bf16 %v428, %v425
  %v4549 = vpack.c.bf16 %v436, %v433
  %v4550 = vpack.c.bf16 %v444, %v441
  %v4551 = vpack.c.bf16 %v452, %v449
  %v4552 = vpack.c.bf16 %v460, %v457
  %v4553 = vpack.c.bf16 %v1186, %v1184
  %v4554 = vpack.c.bf16 %v1190, %v1188
  %v4555 = vpack.c.bf16 %v1194, %v1192
  %v4556 = vpack.c.bf16 %v1198, %v1196
  %v4557 = vpack.c.bf16 %v1202, %v1200
  %v4558 = vpack.c.bf16 %v1206, %v1204
  %v4559 = vpack.c.bf16 %v1210, %v1208
  %v4560 = vpack.c.bf16 %v1214, %v1212
  %v4561 = vpack.c.bf16 %v1234, %v1232
  %v4562 = vpack.c.bf16 %v1238, %v1236
  %v4563 = vpack.c.bf16 %v1242, %v1240
  %v4564 = vpack.c.bf16 %v1246, %v1244
  %v4565 = vpack.c.bf16 %v1250, %v1248
  %v4566 = vpack.c.bf16 %v1254, %v1252
  %v4567 = vpack.c.bf16 %v1258, %v1256
  %v4568 = vpack.c.bf16 %v1262, %v1260
  %v4569 = vpack.c.bf16 %v1282, %v1280
  %v4570 = vpack.c.bf16 %v1286, %v1284
  %v4571 = vpack.c.bf16 %v1290, %v1288
  %v4572 = vpack.c.bf16 %v1294, %v1292
  %v4573 = vpack.c.bf16 %v1298, %v1296
  %v4574 = vpack.c.bf16 %v1302, %v1300
  %v4575 = vpack.c.bf16 %v1306, %v1304
  %v4576 = vpack.c.bf16 %v1310, %v1308
  %v4577 = vpack.c.bf16 %v1330, %v1328
  %v4578 = vpack.c.bf16 %v1334, %v1332
  %v4579 = vpack.c.bf16 %v1338, %v1336
  %v4580 = vpack.c.bf16 %v1342, %v1340
  %v4581 = vpack.c.bf16 %v1346, %v1344
  %v4582 = vpack.c.bf16 %v1350, %v1348
  %v4583 = vpack.c.bf16 %v1354, %v1352
  %v4584 = vpack.c.bf16 %v1358, %v1356
  %v4585 = vpack.c.bf16 %v1378, %v1376
  %v4586 = vpack.c.bf16 %v1382, %v1380
  %v4587 = vpack.c.bf16 %v1386, %v1384
  %v4588 = vpack.c.bf16 %v1390, %v1388
  %v4589 = vpack.c.bf16 %v1394, %v1392
  %v4590 = vpack.c.bf16 %v1398, %v1396
  %v4591 = vpack.c.bf16 %v1402, %v1400
  %v4592 = vpack.c.bf16 %v1406, %v1404
  %v4593 = vpack.c.bf16 %v1426, %v1424
  %v4594 = vpack.c.bf16 %v1430, %v1428
  %v4595 = vpack.c.bf16 %v1434, %v1432
  %v4596 = vpack.c.bf16 %v1438, %v1436
  %v4597 = vpack.c.bf16 %v1442, %v1440
  %v4598 = vpack.c.bf16 %v1446, %v1444
  %v4599 = vpack.c.bf16 %v1450, %v1448
  %v4600 = vpack.c.bf16 %v1454, %v1452
  %v4601 = vpack.c.bf16 %v1474, %v1472
  %v4602 = vpack.c.bf16 %v1478, %v1476
  %v4603 = vpack.c.bf16 %v1482, %v1480
  %v4604 = vpack.c.bf16 %v1486, %v1484
  %v4605 = vpack.c.bf16 %v1490, %v1488
  %v4606 = vpack.c.bf16 %v1494, %v1492
  %v4607 = vpack.c.bf16 %v1498, %v1496
  %v4608 = vpack.c.bf16 %v1502, %v1500
  %v4610 = vsel %vm3072, %v4481, 0
  %v4613 = vsel %vm3072, %v4482, 0
  %v4616 = vsel %vm3072, %v4483, 0
  %v4619 = vsel %vm3072, %v4484, 0
  %4621 = vmatprep.subr.bf16.mxu0 0
  %4622 = vmatpush1.bf16.msra.mxu0 %v4545
  %4623 = vmatprep.subr.bf16.mxu0 0
  %4624 = vmatpush1.bf16.msra.mxu0 %v4546
  %4625 = vmatprep.subr.bf16.mxu0 0
  %4626 = vmatpush1.bf16.msra.mxu0 %v4547
  %4627 = vmatprep.subr.bf16.mxu0 0
  %4628 = vmatpush1.bf16.msra.mxu0 %v4548
  %4629 = vmatprep.subr.bf16.mxu0 0
  %4630 = vmatpush1.bf16.msra.mxu0 0
  %4631 = vmatprep.subr.bf16.mxu0 0
  %4632 = vmatpush1.bf16.msra.mxu0 0
  %4633 = vmatprep.subr.bf16.mxu0 0
  %4634 = vmatpush1.bf16.msra.mxu0 0
  %4635 = vmatprep.subr.bf16.mxu0 0
  %4636 = vmatpush1.bf16.msra.mxu0 0
  %4637 = vmatprep.subr.bf16.mxu0 0
  %4638 = vmatpush1.bf16.msra.mxu0 0
  %4639 = vmatprep.subr.bf16.mxu0 0
  %4640 = vmatpush1.bf16.msra.mxu0 0
  %4641 = vmatprep.subr.bf16.mxu0 0
  %4642 = vmatpush1.bf16.msra.mxu0 0
  %4643 = vmatprep.subr.bf16.mxu0 0
  %4644 = vmatpush1.bf16.msra.mxu0 0
  %4645 = vmatprep.subr.bf16.mxu0 0
  %4646 = vmatpush1.bf16.msra.mxu0 0
  %4647 = vmatprep.subr.bf16.mxu0 0
  %4648 = vmatpush1.bf16.msra.mxu0 0
  %4649 = vmatprep.subr.bf16.mxu0 0
  %4650 = vmatpush1.bf16.msra.mxu0 0
  %4651 = vmatprep.subr.bf16.mxu0 0
  %4652 = vmatpush1.bf16.msra.mxu0 0
  %4653 = vmatprep.mubr.bf16.mxu0 0
  %4654 = vmatmul.mubr.bf16.gmra.mrb[0].mxu0 %v4610
  %v4655 = vpop.f32.mrb[0].mxu0
  %v4656 = vadd.f32 0.0, %v4655
  %v4657 = vpop.f32.mrb[0].mxu0
  %v4658 = vpop.f32.mrb[0].mxu0
  %v4659 = vadd.f32 0.0, %v4658
  %v4660 = vpop.f32.mrb[0].mxu0
  %4661 = vmatprep.mubr.bf16.mxu0 0
  %4662 = vmatmul.mubr.bf16.gmra.mrb[0].mxu0 %v4613
  %v4663 = vpop.f32.mrb[0].mxu0
  %v4664 = vadd.f32 0.0, %v4663
  %v4665 = vpop.f32.mrb[0].mxu0
  %v4666 = vpop.f32.mrb[0].mxu0
  %v4667 = vadd.f32 0.0, %v4666
  %v4668 = vpop.f32.mrb[0].mxu0
  %4669 = vmatprep.mubr.bf16.mxu0 0
  %4670 = vmatmul.mubr.bf16.gmra.mrb[0].mxu0 %v4616
  %v4671 = vpop.f32.mrb[0].mxu0
  %v4672 = vadd.f32 0.0, %v4671
  %v4673 = vpop.f32.mrb[0].mxu0
  %v4674 = vpop.f32.mrb[0].mxu0
  %v4675 = vadd.f32 0.0, %v4674
  %v4676 = vpop.f32.mrb[0].mxu0
  %4677 = vmatprep.mubr.bf16.mxu0 0
  %4678 = vmatmul.mubr.bf16.gmra.mrb[0].mxu0 %v4619
  %v4679 = vpop.f32.mrb[0].mxu0
  %v4680 = vadd.f32 0.0, %v4679
  %v4681 = vpop.f32.mrb[0].mxu0
  %v4682 = vpop.f32.mrb[0].mxu0
  %v4683 = vadd.f32 0.0, %v4682
  %v4684 = vpop.f32.mrb[0].mxu0
  %4685 = vdwg.mxu0
  %v4687 = vsel %vm3072, %v4485, 0
  %v4690 = vsel %vm3072, %v4486, 0
  %v4693 = vsel %vm3072, %v4487, 0
  %v4696 = vsel %vm3072, %v4488, 0
  %4698 = vmatprep.subr.bf16.mxu0 0
  %4699 = vmatpush1.bf16.msra.mxu0 %v4549
  %4700 = vmatprep.subr.bf16.mxu0 0
  %4701 = vmatpush1.bf16.msra.mxu0 %v4550
  %4702 = vmatprep.subr.bf16.mxu0 0
  %4703 = vmatpush1.bf16.msra.mxu0 %v4551
  %4704 = vmatprep.subr.bf16.mxu0 0
  %4705 = vmatpush1.bf16.msra.mxu0 %v4552
  %4706 = vmatprep.subr.bf16.mxu0 0
  %4707 = vmatpush1.bf16.msra.mxu0 0
  %4708 = vmatprep.subr.bf16.mxu0 0
  %4709 = vmatpush1.bf16.msra.mxu0 0
  %4710 = vmatprep.subr.bf16.mxu0 0
  %4711 = vmatpush1.bf16.msra.mxu0 0
  %4712 = vmatprep.subr.bf16.mxu0 0
  %4713 = vmatpush1.bf16.msra.mxu0 0
  %4714 = vmatprep.subr.bf16.mxu0 0
  %4715 = vmatpush1.bf16.msra.mxu0 0
  %4716 = vmatprep.subr.bf16.mxu0 0
  %4717 = vmatpush1.bf16.msra.mxu0 0
  %4718 = vmatprep.subr.bf16.mxu0 0
  %4719 = vmatpush1.bf16.msra.mxu0 0
  %4720 = vmatprep.subr.bf16.mxu0 0
  %4721 = vmatpush1.bf16.msra.mxu0 0
  %4722 = vmatprep.subr.bf16.mxu0 0
  %4723 = vmatpush1.bf16.msra.mxu0 0
  %4724 = vmatprep.subr.bf16.mxu0 0
  %4725 = vmatpush1.bf16.msra.mxu0 0
  %4726 = vmatprep.subr.bf16.mxu0 0
  %4727 = vmatpush1.bf16.msra.mxu0 0
  %4728 = vmatprep.subr.bf16.mxu0 0
  %4729 = vmatpush1.bf16.msra.mxu0 0
  %4730 = vmatprep.mubr.bf16.mxu0 0
  %4731 = vmatmul.mubr.bf16.gmra.mrb[0].mxu0 %v4687
  %v4732 = vpop.f32.mrb[0].mxu0
  %v4733 = vadd.f32 0.0, %v4732
  %v4734 = vpop.f32.mrb[0].mxu0
  %v4735 = vpop.f32.mrb[0].mxu0
  %v4736 = vadd.f32 0.0, %v4735
  %v4737 = vpop.f32.mrb[0].mxu0
  %4738 = vmatprep.mubr.bf16.mxu0 0
  %4739 = vmatmul.mubr.bf16.gmra.mrb[0].mxu0 %v4690
  %v4740 = vpop.f32.mrb[0].mxu0
  %v4741 = vadd.f32 0.0, %v4740
  %v4742 = vpop.f32.mrb[0].mxu0
  %v4743 = vpop.f32.mrb[0].mxu0
  %v4744 = vadd.f32 0.0, %v4743
  %v4745 = vpop.f32.mrb[0].mxu0
  %4746 = vmatprep.mubr.bf16.mxu0 0
  %4747 = vmatmul.mubr.bf16.gmra.mrb[0].mxu0 %v4693
  %v4748 = vpop.f32.mrb[0].mxu0
  %v4749 = vadd.f32 0.0, %v4748
  %v4750 = vpop.f32.mrb[0].mxu0
  %v4751 = vpop.f32.mrb[0].mxu0
  %v4752 = vadd.f32 0.0, %v4751
  %v4753 = vpop.f32.mrb[0].mxu0
  %4754 = vmatprep.mubr.bf16.mxu0 0
  %4755 = vmatmul.mubr.bf16.gmra.mrb[0].mxu0 %v4696
  %v4756 = vpop.f32.mrb[0].mxu0
  %v4757 = vadd.f32 0.0, %v4756
  %v4758 = vpop.f32.mrb[0].mxu0
  %v4759 = vpop.f32.mrb[0].mxu0
  %v4760 = vadd.f32 0.0, %v4759
  %v4761 = vpop.f32.mrb[0].mxu0
  %4762 = vdwg.mxu0
  %v4764 = vsel %vm3072, %v4489, 0
  %v4767 = vsel %vm3072, %v4490, 0
  %v4770 = vsel %vm3072, %v4491, 0
  %v4773 = vsel %vm3072, %v4492, 0
  %4775 = vmatprep.subr.bf16.mxu0 0
  %4776 = vmatpush1.bf16.msra.mxu0 %v4553
  %4777 = vmatprep.subr.bf16.mxu0 0
  %4778 = vmatpush1.bf16.msra.mxu0 %v4554
  %4779 = vmatprep.subr.bf16.mxu0 0
  %4780 = vmatpush1.bf16.msra.mxu0 %v4555
  %4781 = vmatprep.subr.bf16.mxu0 0
  %4782 = vmatpush1.bf16.msra.mxu0 %v4556
  %4783 = vmatprep.subr.bf16.mxu0 0
  %4784 = vmatpush1.bf16.msra.mxu0 0
  %4785 = vmatprep.subr.bf16.mxu0 0
  %4786 = vmatpush1.bf16.msra.mxu0 0
  %4787 = vmatprep.subr.bf16.mxu0 0
  %4788 = vmatpush1.bf16.msra.mxu0 0
  %4789 = vmatprep.subr.bf16.mxu0 0
  %4790 = vmatpush1.bf16.msra.mxu0 0
  %4791 = vmatprep.subr.bf16.mxu0 0
  %4792 = vmatpush1.bf16.msra.mxu0 0
  %4793 = vmatprep.subr.bf16.mxu0 0
  %4794 = vmatpush1.bf16.msra.mxu0 0
  %4795 = vmatprep.subr.bf16.mxu0 0
  %4796 = vmatpush1.bf16.msra.mxu0 0
  %4797 = vmatprep.subr.bf16.mxu0 0
  %4798 = vmatpush1.bf16.msra.mxu0 0
  %4799 = vmatprep.subr.bf16.mxu0 0
  %4800 = vmatpush1.bf16.msra.mxu0 0
  %4801 = vmatprep.subr.bf16.mxu0 0
  %4802 = vmatpush1.bf16.msra.mxu0 0
  %4803 = vmatprep.subr.bf16.mxu0 0
  %4804 = vmatpush1.bf16.msra.mxu0 0
  %4805 = vmatprep.subr.bf16.mxu0 0
  %4806 = vmatpush1.bf16.msra.mxu0 0
  %4807 = vmatprep.mubr.bf16.mxu0 0
  %4808 = vmatmul.mubr.bf16.gmra.mrb[0].mxu0 %v4764
  %v4809 = vpop.f32.mrb[0].mxu0
  %v4810 = vadd.f32 0.0, %v4809
  %v4811 = vpop.f32.mrb[0].mxu0
  %v4812 = vpop.f32.mrb[0].mxu0
  %v4813 = vadd.f32 0.0, %v4812
  %v4814 = vpop.f32.mrb[0].mxu0
  %4815 = vmatprep.mubr.bf16.mxu0 0
  %4816 = vmatmul.mubr.bf16.gmra.mrb[0].mxu0 %v4767
  %v4817 = vpop.f32.mrb[0].mxu0
  %v4818 = vadd.f32 0.0, %v4817
  %v4819 = vpop.f32.mrb[0].mxu0
  %v4820 = vpop.f32.mrb[0].mxu0
  %v4821 = vadd.f32 0.0, %v4820
  %v4822 = vpop.f32.mrb[0].mxu0
  %4823 = vmatprep.mubr.bf16.mxu0 0
  %4824 = vmatmul.mubr.bf16.gmra.mrb[0].mxu0 %v4770
  %v4825 = vpop.f32.mrb[0].mxu0
  %v4826 = vadd.f32 0.0, %v4825
  %v4827 = vpop.f32.mrb[0].mxu0
  %v4828 = vpop.f32.mrb[0].mxu0
  %v4829 = vadd.f32 0.0, %v4828
  %v4830 = vpop.f32.mrb[0].mxu0
  %4831 = vmatprep.mubr.bf16.mxu0 0
  %4832 = vmatmul.mubr.bf16.gmra.mrb[0].mxu0 %v4773
  %v4833 = vpop.f32.mrb[0].mxu0
  %v4834 = vadd.f32 0.0, %v4833
  %v4835 = vpop.f32.mrb[0].mxu0
  %v4836 = vpop.f32.mrb[0].mxu0
  %v4837 = vadd.f32 0.0, %v4836
  %v4838 = vpop.f32.mrb[0].mxu0
  %4839 = vdwg.mxu0
  %v4841 = vsel %vm3072, %v4493, 0
  %v4844 = vsel %vm3072, %v4494, 0
  %v4847 = vsel %vm3072, %v4495, 0
  %v4850 = vsel %vm3072, %v4496, 0
  %4852 = vmatprep.subr.bf16.mxu0 0
  %4853 = vmatpush1.bf16.msra.mxu0 %v4557
  %4854 = vmatprep.subr.bf16.mxu0 0
  %4855 = vmatpush1.bf16.msra.mxu0 %v4558
  %4856 = vmatprep.subr.bf16.mxu0 0
  %4857 = vmatpush1.bf16.msra.mxu0 %v4559
  %4858 = vmatprep.subr.bf16.mxu0 0
  %4859 = vmatpush1.bf16.msra.mxu0 %v4560
  %4860 = vmatprep.subr.bf16.mxu0 0
  %4861 = vmatpush1.bf16.msra.mxu0 0
  %4862 = vmatprep.subr.bf16.mxu0 0
  %4863 = vmatpush1.bf16.msra.mxu0 0
  %4864 = vmatprep.subr.bf16.mxu0 0
  %4865 = vmatpush1.bf16.msra.mxu0 0
  %4866 = vmatprep.subr.bf16.mxu0 0
  %4867 = vmatpush1.bf16.msra.mxu0 0
  %4868 = vmatprep.subr.bf16.mxu0 0
  %4869 = vmatpush1.bf16.msra.mxu0 0
  %4870 = vmatprep.subr.bf16.mxu0 0
  %4871 = vmatpush1.bf16.msra.mxu0 0
  %4872 = vmatprep.subr.bf16.mxu0 0
  %4873 = vmatpush1.bf16.msra.mxu0 0
  %4874 = vmatprep.subr.bf16.mxu0 0
  %4875 = vmatpush1.bf16.msra.mxu0 0
  %4876 = vmatprep.subr.bf16.mxu0 0
  %4877 = vmatpush1.bf16.msra.mxu0 0
  %4878 = vmatprep.subr.bf16.mxu0 0
  %4879 = vmatpush1.bf16.msra.mxu0 0
  %4880 = vmatprep.subr.bf16.mxu0 0
  %4881 = vmatpush1.bf16.msra.mxu0 0
  %4882 = vmatprep.subr.bf16.mxu0 0
  %4883 = vmatpush1.bf16.msra.mxu0 0
  %4884 = vmatprep.mubr.bf16.mxu0 0
  %4885 = vmatmul.mubr.bf16.gmra.mrb[0].mxu0 %v4841
  %v4886 = vpop.f32.mrb[0].mxu0
  %v4887 = vadd.f32 0.0, %v4886
  %v4888 = vpop.f32.mrb[0].mxu0
  %v4889 = vpop.f32.mrb[0].mxu0
  %v4890 = vadd.f32 0.0, %v4889
  %v4891 = vpop.f32.mrb[0].mxu0
  %4892 = vmatprep.mubr.bf16.mxu0 0
  %4893 = vmatmul.mubr.bf16.gmra.mrb[0].mxu0 %v4844
  %v4894 = vpop.f32.mrb[0].mxu0
  %v4895 = vadd.f32 0.0, %v4894
  %v4896 = vpop.f32.mrb[0].mxu0
  %v4897 = vpop.f32.mrb[0].mxu0
  %v4898 = vadd.f32 0.0, %v4897
  %v4899 = vpop.f32.mrb[0].mxu0
  %4900 = vmatprep.mubr.bf16.mxu0 0
  %4901 = vmatmul.mubr.bf16.gmra.mrb[0].mxu0 %v4847
  %v4902 = vpop.f32.mrb[0].mxu0
  %v4903 = vadd.f32 0.0, %v4902
  %v4904 = vpop.f32.mrb[0].mxu0
  %v4905 = vpop.f32.mrb[0].mxu0
  %v4906 = vadd.f32 0.0, %v4905
  %v4907 = vpop.f32.mrb[0].mxu0
  %4908 = vmatprep.mubr.bf16.mxu0 0
  %4909 = vmatmul.mubr.bf16.gmra.mrb[0].mxu0 %v4850
  %v4910 = vpop.f32.mrb[0].mxu0
  %v4911 = vadd.f32 0.0, %v4910
  %v4912 = vpop.f32.mrb[0].mxu0
  %v4913 = vpop.f32.mrb[0].mxu0
  %v4914 = vadd.f32 0.0, %v4913
  %v4915 = vpop.f32.mrb[0].mxu0
  %4916 = vdwg.mxu0
  %v4918 = vsel %vm3072, %v4497, 0
  %v4921 = vsel %vm3072, %v4498, 0
  %v4924 = vsel %vm3072, %v4499, 0
  %v4927 = vsel %vm3072, %v4500, 0
  %4929 = vmatprep.subr.bf16.mxu0 0
  %4930 = vmatpush1.bf16.msra.mxu0 %v4561
  %4931 = vmatprep.subr.bf16.mxu0 0
  %4932 = vmatpush1.bf16.msra.mxu0 %v4562
  %4933 = vmatprep.subr.bf16.mxu0 0
  %4934 = vmatpush1.bf16.msra.mxu0 %v4563
  %4935 = vmatprep.subr.bf16.mxu0 0
  %4936 = vmatpush1.bf16.msra.mxu0 %v4564
  %4937 = vmatprep.subr.bf16.mxu0 0
  %4938 = vmatpush1.bf16.msra.mxu0 0
  %4939 = vmatprep.subr.bf16.mxu0 0
  %4940 = vmatpush1.bf16.msra.mxu0 0
  %4941 = vmatprep.subr.bf16.mxu0 0
  %4942 = vmatpush1.bf16.msra.mxu0 0
  %4943 = vmatprep.subr.bf16.mxu0 0
  %4944 = vmatpush1.bf16.msra.mxu0 0
  %4945 = vmatprep.subr.bf16.mxu0 0
  %4946 = vmatpush1.bf16.msra.mxu0 0
  %4947 = vmatprep.subr.bf16.mxu0 0
  %4948 = vmatpush1.bf16.msra.mxu0 0
  %4949 = vmatprep.subr.bf16.mxu0 0
  %4950 = vmatpush1.bf16.msra.mxu0 0
  %4951 = vmatprep.subr.bf16.mxu0 0
  %4952 = vmatpush1.bf16.msra.mxu0 0
  %4953 = vmatprep.subr.bf16.mxu0 0
  %4954 = vmatpush1.bf16.msra.mxu0 0
  %4955 = vmatprep.subr.bf16.mxu0 0
  %4956 = vmatpush1.bf16.msra.mxu0 0
  %4957 = vmatprep.subr.bf16.mxu0 0
  %4958 = vmatpush1.bf16.msra.mxu0 0
  %4959 = vmatprep.subr.bf16.mxu0 0
  %4960 = vmatpush1.bf16.msra.mxu0 0
  %4961 = vmatprep.mubr.bf16.mxu0 0
  %4962 = vmatmul.mubr.bf16.gmra.mrb[0].mxu0 %v4918
  %v4963 = vpop.f32.mrb[0].mxu0
  %v4964 = vadd.f32 0.0, %v4963
  %v4965 = vpop.f32.mrb[0].mxu0
  %v4966 = vpop.f32.mrb[0].mxu0
  %v4967 = vadd.f32 0.0, %v4966
  %v4968 = vpop.f32.mrb[0].mxu0
  %4969 = vmatprep.mubr.bf16.mxu0 0
  %4970 = vmatmul.mubr.bf16.gmra.mrb[0].mxu0 %v4921
  %v4971 = vpop.f32.mrb[0].mxu0
  %v4972 = vadd.f32 0.0, %v4971
  %v4973 = vpop.f32.mrb[0].mxu0
  %v4974 = vpop.f32.mrb[0].mxu0
  %v4975 = vadd.f32 0.0, %v4974
  %v4976 = vpop.f32.mrb[0].mxu0
  %4977 = vmatprep.mubr.bf16.mxu0 0
  %4978 = vmatmul.mubr.bf16.gmra.mrb[0].mxu0 %v4924
  %v4979 = vpop.f32.mrb[0].mxu0
  %v4980 = vadd.f32 0.0, %v4979
  %v4981 = vpop.f32.mrb[0].mxu0
  %v4982 = vpop.f32.mrb[0].mxu0
  %v4983 = vadd.f32 0.0, %v4982
  %v4984 = vpop.f32.mrb[0].mxu0
  %4985 = vmatprep.mubr.bf16.mxu0 0
  %4986 = vmatmul.mubr.bf16.gmra.mrb[0].mxu0 %v4927
  %v4987 = vpop.f32.mrb[0].mxu0
  %v4988 = vadd.f32 0.0, %v4987
  %v4989 = vpop.f32.mrb[0].mxu0
  %v4990 = vpop.f32.mrb[0].mxu0
  %v4991 = vadd.f32 0.0, %v4990
  %v4992 = vpop.f32.mrb[0].mxu0
  %4993 = vdwg.mxu0
  %v4995 = vsel %vm3072, %v4501, 0
  %v4998 = vsel %vm3072, %v4502, 0
  %v5001 = vsel %vm3072, %v4503, 0
  %v5004 = vsel %vm3072, %v4504, 0
  %5006 = vmatprep.subr.bf16.mxu0 0
  %5007 = vmatpush1.bf16.msra.mxu0 %v4565
  %5008 = vmatprep.subr.bf16.mxu0 0
  %5009 = vmatpush1.bf16.msra.mxu0 %v4566
  %5010 = vmatprep.subr.bf16.mxu0 0
  %5011 = vmatpush1.bf16.msra.mxu0 %v4567
  %5012 = vmatprep.subr.bf16.mxu0 0
  %5013 = vmatpush1.bf16.msra.mxu0 %v4568
  %5014 = vmatprep.subr.bf16.mxu0 0
  %5015 = vmatpush1.bf16.msra.mxu0 0
  %5016 = vmatprep.subr.bf16.mxu0 0
  %5017 = vmatpush1.bf16.msra.mxu0 0
  %5018 = vmatprep.subr.bf16.mxu0 0
  %5019 = vmatpush1.bf16.msra.mxu0 0
  %5020 = vmatprep.subr.bf16.mxu0 0
  %5021 = vmatpush1.bf16.msra.mxu0 0
  %5022 = vmatprep.subr.bf16.mxu0 0
  %5023 = vmatpush1.bf16.msra.mxu0 0
  %5024 = vmatprep.subr.bf16.mxu0 0
  %5025 = vmatpush1.bf16.msra.mxu0 0
  %5026 = vmatprep.subr.bf16.mxu0 0
  %5027 = vmatpush1.bf16.msra.mxu0 0
  %5028 = vmatprep.subr.bf16.mxu0 0
  %5029 = vmatpush1.bf16.msra.mxu0 0
  %5030 = vmatprep.subr.bf16.mxu0 0
  %5031 = vmatpush1.bf16.msra.mxu0 0
  %5032 = vmatprep.subr.bf16.mxu0 0
  %5033 = vmatpush1.bf16.msra.mxu0 0
  %5034 = vmatprep.subr.bf16.mxu0 0
  %5035 = vmatpush1.bf16.msra.mxu0 0
  %5036 = vmatprep.subr.bf16.mxu0 0
  %5037 = vmatpush1.bf16.msra.mxu0 0
  %5038 = vmatprep.mubr.bf16.mxu0 0
  %5039 = vmatmul.mubr.bf16.gmra.mrb[0].mxu0 %v4995
  %v5040 = vpop.f32.mrb[0].mxu0
  %v5041 = vadd.f32 0.0, %v5040
  %v5042 = vpop.f32.mrb[0].mxu0
  %v5043 = vpop.f32.mrb[0].mxu0
  %v5044 = vadd.f32 0.0, %v5043
  %v5045 = vpop.f32.mrb[0].mxu0
  %5046 = vmatprep.mubr.bf16.mxu0 0
  %5047 = vmatmul.mubr.bf16.gmra.mrb[0].mxu0 %v4998
  %v5048 = vpop.f32.mrb[0].mxu0
  %v5049 = vadd.f32 0.0, %v5048
  %v5050 = vpop.f32.mrb[0].mxu0
  %v5051 = vpop.f32.mrb[0].mxu0
  %v5052 = vadd.f32 0.0, %v5051
  %v5053 = vpop.f32.mrb[0].mxu0
  %5054 = vmatprep.mubr.bf16.mxu0 0
  %5055 = vmatmul.mubr.bf16.gmra.mrb[0].mxu0 %v5001
  %v5056 = vpop.f32.mrb[0].mxu0
  %v5057 = vadd.f32 0.0, %v5056
  %v5058 = vpop.f32.mrb[0].mxu0
  %v5059 = vpop.f32.mrb[0].mxu0
  %v5060 = vadd.f32 0.0, %v5059
  %v5061 = vpop.f32.mrb[0].mxu0
  %5062 = vmatprep.mubr.bf16.mxu0 0
  %5063 = vmatmul.mubr.bf16.gmra.mrb[0].mxu0 %v5004
  %v5064 = vpop.f32.mrb[0].mxu0
  %v5065 = vadd.f32 0.0, %v5064
  %v5066 = vpop.f32.mrb[0].mxu0
  %v5067 = vpop.f32.mrb[0].mxu0
  %v5068 = vadd.f32 0.0, %v5067
  %v5069 = vpop.f32.mrb[0].mxu0
  %5070 = vdwg.mxu0
  %v5072 = vsel %vm3072, %v4505, 0
  %v5075 = vsel %vm3072, %v4506, 0
  %v5078 = vsel %vm3072, %v4507, 0
  %v5081 = vsel %vm3072, %v4508, 0
  %5083 = vmatprep.subr.bf16.mxu0 0
  %5084 = vmatpush1.bf16.msra.mxu0 %v4569
  %5085 = vmatprep.subr.bf16.mxu0 0
  %5086 = vmatpush1.bf16.msra.mxu0 %v4570
  %5087 = vmatprep.subr.bf16.mxu0 0
  %5088 = vmatpush1.bf16.msra.mxu0 %v4571
  %5089 = vmatprep.subr.bf16.mxu0 0
  %5090 = vmatpush1.bf16.msra.mxu0 %v4572
  %5091 = vmatprep.subr.bf16.mxu0 0
  %5092 = vmatpush1.bf16.msra.mxu0 0
  %5093 = vmatprep.subr.bf16.mxu0 0
  %5094 = vmatpush1.bf16.msra.mxu0 0
  %5095 = vmatprep.subr.bf16.mxu0 0
  %5096 = vmatpush1.bf16.msra.mxu0 0
  %5097 = vmatprep.subr.bf16.mxu0 0
  %5098 = vmatpush1.bf16.msra.mxu0 0
  %5099 = vmatprep.subr.bf16.mxu0 0
  %5100 = vmatpush1.bf16.msra.mxu0 0
  %5101 = vmatprep.subr.bf16.mxu0 0
  %5102 = vmatpush1.bf16.msra.mxu0 0
  %5103 = vmatprep.subr.bf16.mxu0 0
  %5104 = vmatpush1.bf16.msra.mxu0 0
  %5105 = vmatprep.subr.bf16.mxu0 0
  %5106 = vmatpush1.bf16.msra.mxu0 0
  %5107 = vmatprep.subr.bf16.mxu0 0
  %5108 = vmatpush1.bf16.msra.mxu0 0
  %5109 = vmatprep.subr.bf16.mxu0 0
  %5110 = vmatpush1.bf16.msra.mxu0 0
  %5111 = vmatprep.subr.bf16.mxu0 0
  %5112 = vmatpush1.bf16.msra.mxu0 0
  %5113 = vmatprep.subr.bf16.mxu0 0
  %5114 = vmatpush1.bf16.msra.mxu0 0
  %5115 = vmatprep.mubr.bf16.mxu0 0
  %5116 = vmatmul.mubr.bf16.gmra.mrb[0].mxu0 %v5072
  %v5117 = vpop.f32.mrb[0].mxu0
  %v5118 = vadd.f32 0.0, %v5117
  %v5119 = vpop.f32.mrb[0].mxu0
  %v5120 = vpop.f32.mrb[0].mxu0
  %v5121 = vadd.f32 0.0, %v5120
  %v5122 = vpop.f32.mrb[0].mxu0
  %5123 = vmatprep.mubr.bf16.mxu0 0
  %5124 = vmatmul.mubr.bf16.gmra.mrb[0].mxu0 %v5075
  %v5125 = vpop.f32.mrb[0].mxu0
  %v5126 = vadd.f32 0.0, %v5125
  %v5127 = vpop.f32.mrb[0].mxu0
  %v5128 = vpop.f32.mrb[0].mxu0
  %v5129 = vadd.f32 0.0, %v5128
  %v5130 = vpop.f32.mrb[0].mxu0
  %5131 = vmatprep.mubr.bf16.mxu0 0
  %5132 = vmatmul.mubr.bf16.gmra.mrb[0].mxu0 %v5078
  %v5133 = vpop.f32.mrb[0].mxu0
  %v5134 = vadd.f32 0.0, %v5133
  %v5135 = vpop.f32.mrb[0].mxu0
  %v5136 = vpop.f32.mrb[0].mxu0
  %v5137 = vadd.f32 0.0, %v5136
  %v5138 = vpop.f32.mrb[0].mxu0
  %5139 = vmatprep.mubr.bf16.mxu0 0
  %5140 = vmatmul.mubr.bf16.gmra.mrb[0].mxu0 %v5081
  %v5141 = vpop.f32.mrb[0].mxu0
  %v5142 = vadd.f32 0.0, %v5141
  %v5143 = vpop.f32.mrb[0].mxu0
  %v5144 = vpop.f32.mrb[0].mxu0
  %v5145 = vadd.f32 0.0, %v5144
  %v5146 = vpop.f32.mrb[0].mxu0
  %5147 = vdwg.mxu0
  %v5149 = vsel %vm3072, %v4509, 0
  %v5152 = vsel %vm3072, %v4510, 0
  %v5155 = vsel %vm3072, %v4511, 0
  %v5158 = vsel %vm3072, %v4512, 0
  %5160 = vmatprep.subr.bf16.mxu0 0
  %5161 = vmatpush1.bf16.msra.mxu0 %v4573
  %5162 = vmatprep.subr.bf16.mxu0 0
  %5163 = vmatpush1.bf16.msra.mxu0 %v4574
  %5164 = vmatprep.subr.bf16.mxu0 0
  %5165 = vmatpush1.bf16.msra.mxu0 %v4575
  %5166 = vmatprep.subr.bf16.mxu0 0
  %5167 = vmatpush1.bf16.msra.mxu0 %v4576
  %5168 = vmatprep.subr.bf16.mxu0 0
  %5169 = vmatpush1.bf16.msra.mxu0 0
  %5170 = vmatprep.subr.bf16.mxu0 0
  %5171 = vmatpush1.bf16.msra.mxu0 0
  %5172 = vmatprep.subr.bf16.mxu0 0
  %5173 = vmatpush1.bf16.msra.mxu0 0
  %5174 = vmatprep.subr.bf16.mxu0 0
  %5175 = vmatpush1.bf16.msra.mxu0 0
  %5176 = vmatprep.subr.bf16.mxu0 0
  %5177 = vmatpush1.bf16.msra.mxu0 0
  %5178 = vmatprep.subr.bf16.mxu0 0
  %5179 = vmatpush1.bf16.msra.mxu0 0
  %5180 = vmatprep.subr.bf16.mxu0 0
  %5181 = vmatpush1.bf16.msra.mxu0 0
  %5182 = vmatprep.subr.bf16.mxu0 0
  %5183 = vmatpush1.bf16.msra.mxu0 0
  %5184 = vmatprep.subr.bf16.mxu0 0
  %5185 = vmatpush1.bf16.msra.mxu0 0
  %5186 = vmatprep.subr.bf16.mxu0 0
  %5187 = vmatpush1.bf16.msra.mxu0 0
  %5188 = vmatprep.subr.bf16.mxu0 0
  %5189 = vmatpush1.bf16.msra.mxu0 0
  %5190 = vmatprep.subr.bf16.mxu0 0
  %5191 = vmatpush1.bf16.msra.mxu0 0
  %5192 = vmatprep.mubr.bf16.mxu0 0
  %5193 = vmatmul.mubr.bf16.gmra.mrb[0].mxu0 %v5149
  %v5194 = vpop.f32.mrb[0].mxu0
  %v5195 = vadd.f32 0.0, %v5194
  %v5196 = vpop.f32.mrb[0].mxu0
  %v5197 = vpop.f32.mrb[0].mxu0
  %v5198 = vadd.f32 0.0, %v5197
  %v5199 = vpop.f32.mrb[0].mxu0
  %5200 = vmatprep.mubr.bf16.mxu0 0
  %5201 = vmatmul.mubr.bf16.gmra.mrb[0].mxu0 %v5152
  %v5202 = vpop.f32.mrb[0].mxu0
  %v5203 = vadd.f32 0.0, %v5202
  %v5204 = vpop.f32.mrb[0].mxu0
  %v5205 = vpop.f32.mrb[0].mxu0
  %v5206 = vadd.f32 0.0, %v5205
  %v5207 = vpop.f32.mrb[0].mxu0
  %5208 = vmatprep.mubr.bf16.mxu0 0
  %5209 = vmatmul.mubr.bf16.gmra.mrb[0].mxu0 %v5155
  %v5210 = vpop.f32.mrb[0].mxu0
  %v5211 = vadd.f32 0.0, %v5210
  %v5212 = vpop.f32.mrb[0].mxu0
  %v5213 = vpop.f32.mrb[0].mxu0
  %v5214 = vadd.f32 0.0, %v5213
  %v5215 = vpop.f32.mrb[0].mxu0
  %5216 = vmatprep.mubr.bf16.mxu0 0
  %5217 = vmatmul.mubr.bf16.gmra.mrb[0].mxu0 %v5158
  %v5218 = vpop.f32.mrb[0].mxu0
  %v5219 = vadd.f32 0.0, %v5218
  %v5220 = vpop.f32.mrb[0].mxu0
  %v5221 = vpop.f32.mrb[0].mxu0
  %v5222 = vadd.f32 0.0, %v5221
  %v5223 = vpop.f32.mrb[0].mxu0
  %5224 = vdwg.mxu0
  %v5226 = vsel %vm3072, %v4513, 0
  %v5229 = vsel %vm3072, %v4514, 0
  %v5232 = vsel %vm3072, %v4515, 0
  %v5235 = vsel %vm3072, %v4516, 0
  %5237 = vmatprep.subr.bf16.mxu0 0
  %5238 = vmatpush1.bf16.msra.mxu0 %v4577
  %5239 = vmatprep.subr.bf16.mxu0 0
  %5240 = vmatpush1.bf16.msra.mxu0 %v4578
  %5241 = vmatprep.subr.bf16.mxu0 0
  %5242 = vmatpush1.bf16.msra.mxu0 %v4579
  %5243 = vmatprep.subr.bf16.mxu0 0
  %5244 = vmatpush1.bf16.msra.mxu0 %v4580
  %5245 = vmatprep.subr.bf16.mxu0 0
  %5246 = vmatpush1.bf16.msra.mxu0 0
  %5247 = vmatprep.subr.bf16.mxu0 0
  %5248 = vmatpush1.bf16.msra.mxu0 0
  %5249 = vmatprep.subr.bf16.mxu0 0
  %5250 = vmatpush1.bf16.msra.mxu0 0
  %5251 = vmatprep.subr.bf16.mxu0 0
  %5252 = vmatpush1.bf16.msra.mxu0 0
  %5253 = vmatprep.subr.bf16.mxu0 0
  %5254 = vmatpush1.bf16.msra.mxu0 0
  %5255 = vmatprep.subr.bf16.mxu0 0
  %5256 = vmatpush1.bf16.msra.mxu0 0
  %5257 = vmatprep.subr.bf16.mxu0 0
  %5258 = vmatpush1.bf16.msra.mxu0 0
  %5259 = vmatprep.subr.bf16.mxu0 0
  %5260 = vmatpush1.bf16.msra.mxu0 0
  %5261 = vmatprep.subr.bf16.mxu0 0
  %5262 = vmatpush1.bf16.msra.mxu0 0
  %5263 = vmatprep.subr.bf16.mxu0 0
  %5264 = vmatpush1.bf16.msra.mxu0 0
  %5265 = vmatprep.subr.bf16.mxu0 0
  %5266 = vmatpush1.bf16.msra.mxu0 0
  %5267 = vmatprep.subr.bf16.mxu0 0
  %5268 = vmatpush1.bf16.msra.mxu0 0
  %5269 = vmatprep.mubr.bf16.mxu0 0
  %5270 = vmatmul.mubr.bf16.gmra.mrb[0].mxu0 %v5226
  %v5271 = vpop.f32.mrb[0].mxu0
  %v5272 = vadd.f32 0.0, %v5271
  %v5273 = vpop.f32.mrb[0].mxu0
  %v5274 = vpop.f32.mrb[0].mxu0
  %v5275 = vadd.f32 0.0, %v5274
  %v5276 = vpop.f32.mrb[0].mxu0
  %5277 = vmatprep.mubr.bf16.mxu0 0
  %5278 = vmatmul.mubr.bf16.gmra.mrb[0].mxu0 %v5229
  %v5279 = vpop.f32.mrb[0].mxu0
  %v5280 = vadd.f32 0.0, %v5279
  %v5281 = vpop.f32.mrb[0].mxu0
  %v5282 = vpop.f32.mrb[0].mxu0
  %v5283 = vadd.f32 0.0, %v5282
  %v5284 = vpop.f32.mrb[0].mxu0
  %5285 = vmatprep.mubr.bf16.mxu0 0
  %5286 = vmatmul.mubr.bf16.gmra.mrb[0].mxu0 %v5232
  %v5287 = vpop.f32.mrb[0].mxu0
  %v5288 = vadd.f32 0.0, %v5287
  %v5289 = vpop.f32.mrb[0].mxu0
  %v5290 = vpop.f32.mrb[0].mxu0
  %v5291 = vadd.f32 0.0, %v5290
  %v5292 = vpop.f32.mrb[0].mxu0
  %5293 = vmatprep.mubr.bf16.mxu0 0
  %5294 = vmatmul.mubr.bf16.gmra.mrb[0].mxu0 %v5235
  %v5295 = vpop.f32.mrb[0].mxu0
  %v5296 = vadd.f32 0.0, %v5295
  %v5297 = vpop.f32.mrb[0].mxu0
  %v5298 = vpop.f32.mrb[0].mxu0
  %v5299 = vadd.f32 0.0, %v5298
  %v5300 = vpop.f32.mrb[0].mxu0
  %5301 = vdwg.mxu0
  %v5303 = vsel %vm3072, %v4517, 0
  %v5306 = vsel %vm3072, %v4518, 0
  %v5309 = vsel %vm3072, %v4519, 0
  %v5312 = vsel %vm3072, %v4520, 0
  %5314 = vmatprep.subr.bf16.mxu0 0
  %5315 = vmatpush1.bf16.msra.mxu0 %v4581
  %5316 = vmatprep.subr.bf16.mxu0 0
  %5317 = vmatpush1.bf16.msra.mxu0 %v4582
  %5318 = vmatprep.subr.bf16.mxu0 0
  %5319 = vmatpush1.bf16.msra.mxu0 %v4583
  %5320 = vmatprep.subr.bf16.mxu0 0
  %5321 = vmatpush1.bf16.msra.mxu0 %v4584
  %5322 = vmatprep.subr.bf16.mxu0 0
  %5323 = vmatpush1.bf16.msra.mxu0 0
  %5324 = vmatprep.subr.bf16.mxu0 0
  %5325 = vmatpush1.bf16.msra.mxu0 0
  %5326 = vmatprep.subr.bf16.mxu0 0
  %5327 = vmatpush1.bf16.msra.mxu0 0
  %5328 = vmatprep.subr.bf16.mxu0 0
  %5329 = vmatpush1.bf16.msra.mxu0 0
  %5330 = vmatprep.subr.bf16.mxu0 0
  %5331 = vmatpush1.bf16.msra.mxu0 0
  %5332 = vmatprep.subr.bf16.mxu0 0
  %5333 = vmatpush1.bf16.msra.mxu0 0
  %5334 = vmatprep.subr.bf16.mxu0 0
  %5335 = vmatpush1.bf16.msra.mxu0 0
  %5336 = vmatprep.subr.bf16.mxu0 0
  %5337 = vmatpush1.bf16.msra.mxu0 0
  %5338 = vmatprep.subr.bf16.mxu0 0
  %5339 = vmatpush1.bf16.msra.mxu0 0
  %5340 = vmatprep.subr.bf16.mxu0 0
  %5341 = vmatpush1.bf16.msra.mxu0 0
  %5342 = vmatprep.subr.bf16.mxu0 0
  %5343 = vmatpush1.bf16.msra.mxu0 0
  %5344 = vmatprep.subr.bf16.mxu0 0
  %5345 = vmatpush1.bf16.msra.mxu0 0
  %5346 = vmatprep.mubr.bf16.mxu0 0
  %5347 = vmatmul.mubr.bf16.gmra.mrb[0].mxu0 %v5303
  %v5348 = vpop.f32.mrb[0].mxu0
  %v5349 = vadd.f32 0.0, %v5348
  %v5350 = vpop.f32.mrb[0].mxu0
  %v5351 = vpop.f32.mrb[0].mxu0
  %v5352 = vadd.f32 0.0, %v5351
  %v5353 = vpop.f32.mrb[0].mxu0
  %5354 = vmatprep.mubr.bf16.mxu0 0
  %5355 = vmatmul.mubr.bf16.gmra.mrb[0].mxu0 %v5306
  %v5356 = vpop.f32.mrb[0].mxu0
  %v5357 = vadd.f32 0.0, %v5356
  %v5358 = vpop.f32.mrb[0].mxu0
  %v5359 = vpop.f32.mrb[0].mxu0
  %v5360 = vadd.f32 0.0, %v5359
  %v5361 = vpop.f32.mrb[0].mxu0
  %5362 = vmatprep.mubr.bf16.mxu0 0
  %5363 = vmatmul.mubr.bf16.gmra.mrb[0].mxu0 %v5309
  %v5364 = vpop.f32.mrb[0].mxu0
  %v5365 = vadd.f32 0.0, %v5364
  %v5366 = vpop.f32.mrb[0].mxu0
  %v5367 = vpop.f32.mrb[0].mxu0
  %v5368 = vadd.f32 0.0, %v5367
  %v5369 = vpop.f32.mrb[0].mxu0
  %5370 = vmatprep.mubr.bf16.mxu0 0
  %5371 = vmatmul.mubr.bf16.gmra.mrb[0].mxu0 %v5312
  %v5372 = vpop.f32.mrb[0].mxu0
  %v5373 = vadd.f32 0.0, %v5372
  %v5374 = vpop.f32.mrb[0].mxu0
  %v5375 = vpop.f32.mrb[0].mxu0
  %v5376 = vadd.f32 0.0, %v5375
  %v5377 = vpop.f32.mrb[0].mxu0
  %5378 = vdwg.mxu0
  %v5380 = vsel %vm3072, %v4521, 0
  %v5383 = vsel %vm3072, %v4522, 0
  %v5386 = vsel %vm3072, %v4523, 0
  %v5389 = vsel %vm3072, %v4524, 0
  %5391 = vmatprep.subr.bf16.mxu0 0
  %5392 = vmatpush1.bf16.msra.mxu0 %v4585
  %5393 = vmatprep.subr.bf16.mxu0 0
  %5394 = vmatpush1.bf16.msra.mxu0 %v4586
  %5395 = vmatprep.subr.bf16.mxu0 0
  %5396 = vmatpush1.bf16.msra.mxu0 %v4587
  %5397 = vmatprep.subr.bf16.mxu0 0
  %5398 = vmatpush1.bf16.msra.mxu0 %v4588
  %5399 = vmatprep.subr.bf16.mxu0 0
  %5400 = vmatpush1.bf16.msra.mxu0 0
  %5401 = vmatprep.subr.bf16.mxu0 0
  %5402 = vmatpush1.bf16.msra.mxu0 0
  %5403 = vmatprep.subr.bf16.mxu0 0
  %5404 = vmatpush1.bf16.msra.mxu0 0
  %5405 = vmatprep.subr.bf16.mxu0 0
  %5406 = vmatpush1.bf16.msra.mxu0 0
  %5407 = vmatprep.subr.bf16.mxu0 0
  %5408 = vmatpush1.bf16.msra.mxu0 0
  %5409 = vmatprep.subr.bf16.mxu0 0
  %5410 = vmatpush1.bf16.msra.mxu0 0
  %5411 = vmatprep.subr.bf16.mxu0 0
  %5412 = vmatpush1.bf16.msra.mxu0 0
  %5413 = vmatprep.subr.bf16.mxu0 0
  %5414 = vmatpush1.bf16.msra.mxu0 0
  %5415 = vmatprep.subr.bf16.mxu0 0
  %5416 = vmatpush1.bf16.msra.mxu0 0
  %5417 = vmatprep.subr.bf16.mxu0 0
  %5418 = vmatpush1.bf16.msra.mxu0 0
  %5419 = vmatprep.subr.bf16.mxu0 0
  %5420 = vmatpush1.bf16.msra.mxu0 0
  %5421 = vmatprep.subr.bf16.mxu0 0
  %5422 = vmatpush1.bf16.msra.mxu0 0
  %5423 = vmatprep.mubr.bf16.mxu0 0
  %5424 = vmatmul.mubr.bf16.gmra.mrb[0].mxu0 %v5380
  %v5425 = vpop.f32.mrb[0].mxu0
  %v5426 = vadd.f32 0.0, %v5425
  %v5427 = vpop.f32.mrb[0].mxu0
  %v5428 = vpop.f32.mrb[0].mxu0
  %v5429 = vadd.f32 0.0, %v5428
  %v5430 = vpop.f32.mrb[0].mxu0
  %5431 = vmatprep.mubr.bf16.mxu0 0
  %5432 = vmatmul.mubr.bf16.gmra.mrb[0].mxu0 %v5383
  %v5433 = vpop.f32.mrb[0].mxu0
  %v5434 = vadd.f32 0.0, %v5433
  %v5435 = vpop.f32.mrb[0].mxu0
  %v5436 = vpop.f32.mrb[0].mxu0
  %v5437 = vadd.f32 0.0, %v5436
  %v5438 = vpop.f32.mrb[0].mxu0
  %5439 = vmatprep.mubr.bf16.mxu0 0
  %5440 = vmatmul.mubr.bf16.gmra.mrb[0].mxu0 %v5386
  %v5441 = vpop.f32.mrb[0].mxu0
  %v5442 = vadd.f32 0.0, %v5441
  %v5443 = vpop.f32.mrb[0].mxu0
  %v5444 = vpop.f32.mrb[0].mxu0
  %v5445 = vadd.f32 0.0, %v5444
  %v5446 = vpop.f32.mrb[0].mxu0
  %5447 = vmatprep.mubr.bf16.mxu0 0
  %5448 = vmatmul.mubr.bf16.gmra.mrb[0].mxu0 %v5389
  %v5449 = vpop.f32.mrb[0].mxu0
  %v5450 = vadd.f32 0.0, %v5449
  %v5451 = vpop.f32.mrb[0].mxu0
  %v5452 = vpop.f32.mrb[0].mxu0
  %v5453 = vadd.f32 0.0, %v5452
  %v5454 = vpop.f32.mrb[0].mxu0
  %5455 = vdwg.mxu0
  %v5457 = vsel %vm3072, %v4525, 0
  %v5460 = vsel %vm3072, %v4526, 0
  %v5463 = vsel %vm3072, %v4527, 0
  %v5466 = vsel %vm3072, %v4528, 0
  %5468 = vmatprep.subr.bf16.mxu0 0
  %5469 = vmatpush1.bf16.msra.mxu0 %v4589
  %5470 = vmatprep.subr.bf16.mxu0 0
  %5471 = vmatpush1.bf16.msra.mxu0 %v4590
  %5472 = vmatprep.subr.bf16.mxu0 0
  %5473 = vmatpush1.bf16.msra.mxu0 %v4591
  %5474 = vmatprep.subr.bf16.mxu0 0
  %5475 = vmatpush1.bf16.msra.mxu0 %v4592
  %5476 = vmatprep.subr.bf16.mxu0 0
  %5477 = vmatpush1.bf16.msra.mxu0 0
  %5478 = vmatprep.subr.bf16.mxu0 0
  %5479 = vmatpush1.bf16.msra.mxu0 0
  %5480 = vmatprep.subr.bf16.mxu0 0
  %5481 = vmatpush1.bf16.msra.mxu0 0
  %5482 = vmatprep.subr.bf16.mxu0 0
  %5483 = vmatpush1.bf16.msra.mxu0 0
  %5484 = vmatprep.subr.bf16.mxu0 0
  %5485 = vmatpush1.bf16.msra.mxu0 0
  %5486 = vmatprep.subr.bf16.mxu0 0
  %5487 = vmatpush1.bf16.msra.mxu0 0
  %5488 = vmatprep.subr.bf16.mxu0 0
  %5489 = vmatpush1.bf16.msra.mxu0 0
  %5490 = vmatprep.subr.bf16.mxu0 0
  %5491 = vmatpush1.bf16.msra.mxu0 0
  %5492 = vmatprep.subr.bf16.mxu0 0
  %5493 = vmatpush1.bf16.msra.mxu0 0
  %5494 = vmatprep.subr.bf16.mxu0 0
  %5495 = vmatpush1.bf16.msra.mxu0 0
  %5496 = vmatprep.subr.bf16.mxu0 0
  %5497 = vmatpush1.bf16.msra.mxu0 0
  %5498 = vmatprep.subr.bf16.mxu0 0
  %5499 = vmatpush1.bf16.msra.mxu0 0
  %5500 = vmatprep.mubr.bf16.mxu0 0
  %5501 = vmatmul.mubr.bf16.gmra.mrb[0].mxu0 %v5457
  %v5502 = vpop.f32.mrb[0].mxu0
  %v5503 = vadd.f32 0.0, %v5502
  %v5504 = vpop.f32.mrb[0].mxu0
  %v5505 = vpop.f32.mrb[0].mxu0
  %v5506 = vadd.f32 0.0, %v5505
  %v5507 = vpop.f32.mrb[0].mxu0
  %5508 = vmatprep.mubr.bf16.mxu0 0
  %5509 = vmatmul.mubr.bf16.gmra.mrb[0].mxu0 %v5460
  %v5510 = vpop.f32.mrb[0].mxu0
  %v5511 = vadd.f32 0.0, %v5510
  %v5512 = vpop.f32.mrb[0].mxu0
  %v5513 = vpop.f32.mrb[0].mxu0
  %v5514 = vadd.f32 0.0, %v5513
  %v5515 = vpop.f32.mrb[0].mxu0
  %5516 = vmatprep.mubr.bf16.mxu0 0
  %5517 = vmatmul.mubr.bf16.gmra.mrb[0].mxu0 %v5463
  %v5518 = vpop.f32.mrb[0].mxu0
  %v5519 = vadd.f32 0.0, %v5518
  %v5520 = vpop.f32.mrb[0].mxu0
  %v5521 = vpop.f32.mrb[0].mxu0
  %v5522 = vadd.f32 0.0, %v5521
  %v5523 = vpop.f32.mrb[0].mxu0
  %5524 = vmatprep.mubr.bf16.mxu0 0
  %5525 = vmatmul.mubr.bf16.gmra.mrb[0].mxu0 %v5466
  %v5526 = vpop.f32.mrb[0].mxu0
  %v5527 = vadd.f32 0.0, %v5526
  %v5528 = vpop.f32.mrb[0].mxu0
  %v5529 = vpop.f32.mrb[0].mxu0
  %v5530 = vadd.f32 0.0, %v5529
  %v5531 = vpop.f32.mrb[0].mxu0
  %5532 = vdwg.mxu0
  %v5534 = vsel %vm3072, %v4529, 0
  %v5537 = vsel %vm3072, %v4530, 0
  %v5540 = vsel %vm3072, %v4531, 0
  %v5543 = vsel %vm3072, %v4532, 0
  %5545 = vmatprep.subr.bf16.mxu0 0
  %5546 = vmatpush1.bf16.msra.mxu0 %v4593
  %5547 = vmatprep.subr.bf16.mxu0 0
  %5548 = vmatpush1.bf16.msra.mxu0 %v4594
  %5549 = vmatprep.subr.bf16.mxu0 0
  %5550 = vmatpush1.bf16.msra.mxu0 %v4595
  %5551 = vmatprep.subr.bf16.mxu0 0
  %5552 = vmatpush1.bf16.msra.mxu0 %v4596
  %5553 = vmatprep.subr.bf16.mxu0 0
  %5554 = vmatpush1.bf16.msra.mxu0 0
  %5555 = vmatprep.subr.bf16.mxu0 0
  %5556 = vmatpush1.bf16.msra.mxu0 0
  %5557 = vmatprep.subr.bf16.mxu0 0
  %5558 = vmatpush1.bf16.msra.mxu0 0
  %5559 = vmatprep.subr.bf16.mxu0 0
  %5560 = vmatpush1.bf16.msra.mxu0 0
  %5561 = vmatprep.subr.bf16.mxu0 0
  %5562 = vmatpush1.bf16.msra.mxu0 0
  %5563 = vmatprep.subr.bf16.mxu0 0
  %5564 = vmatpush1.bf16.msra.mxu0 0
  %5565 = vmatprep.subr.bf16.mxu0 0
  %5566 = vmatpush1.bf16.msra.mxu0 0
  %5567 = vmatprep.subr.bf16.mxu0 0
  %5568 = vmatpush1.bf16.msra.mxu0 0
  %5569 = vmatprep.subr.bf16.mxu0 0
  %5570 = vmatpush1.bf16.msra.mxu0 0
  %5571 = vmatprep.subr.bf16.mxu0 0
  %5572 = vmatpush1.bf16.msra.mxu0 0
  %5573 = vmatprep.subr.bf16.mxu0 0
  %5574 = vmatpush1.bf16.msra.mxu0 0
  %5575 = vmatprep.subr.bf16.mxu0 0
  %5576 = vmatpush1.bf16.msra.mxu0 0
  %5577 = vmatprep.mubr.bf16.mxu0 0
  %5578 = vmatmul.mubr.bf16.gmra.mrb[0].mxu0 %v5534
  %v5579 = vpop.f32.mrb[0].mxu0
  %v5580 = vadd.f32 0.0, %v5579
  %v5581 = vpop.f32.mrb[0].mxu0
  %v5582 = vpop.f32.mrb[0].mxu0
  %v5583 = vadd.f32 0.0, %v5582
  %v5584 = vpop.f32.mrb[0].mxu0
  %5585 = vmatprep.mubr.bf16.mxu0 0
  %5586 = vmatmul.mubr.bf16.gmra.mrb[0].mxu0 %v5537
  %v5587 = vpop.f32.mrb[0].mxu0
  %v5588 = vadd.f32 0.0, %v5587
  %v5589 = vpop.f32.mrb[0].mxu0
  %v5590 = vpop.f32.mrb[0].mxu0
  %v5591 = vadd.f32 0.0, %v5590
  %v5592 = vpop.f32.mrb[0].mxu0
  %5593 = vmatprep.mubr.bf16.mxu0 0
  %5594 = vmatmul.mubr.bf16.gmra.mrb[0].mxu0 %v5540
  %v5595 = vpop.f32.mrb[0].mxu0
  %v5596 = vadd.f32 0.0, %v5595
  %v5597 = vpop.f32.mrb[0].mxu0
  %v5598 = vpop.f32.mrb[0].mxu0
  %v5599 = vadd.f32 0.0, %v5598
  %v5600 = vpop.f32.mrb[0].mxu0
  %5601 = vmatprep.mubr.bf16.mxu0 0
  %5602 = vmatmul.mubr.bf16.gmra.mrb[0].mxu0 %v5543
  %v5603 = vpop.f32.mrb[0].mxu0
  %v5604 = vadd.f32 0.0, %v5603
  %v5605 = vpop.f32.mrb[0].mxu0
  %v5606 = vpop.f32.mrb[0].mxu0
  %v5607 = vadd.f32 0.0, %v5606
  %v5608 = vpop.f32.mrb[0].mxu0
  %5609 = vdwg.mxu0
  %v5611 = vsel %vm3072, %v4533, 0
  %v5614 = vsel %vm3072, %v4534, 0
  %v5617 = vsel %vm3072, %v4535, 0
  %v5620 = vsel %vm3072, %v4536, 0
  %5622 = vmatprep.subr.bf16.mxu0 0
  %5623 = vmatpush1.bf16.msra.mxu0 %v4597
  %5624 = vmatprep.subr.bf16.mxu0 0
  %5625 = vmatpush1.bf16.msra.mxu0 %v4598
  %5626 = vmatprep.subr.bf16.mxu0 0
  %5627 = vmatpush1.bf16.msra.mxu0 %v4599
  %5628 = vmatprep.subr.bf16.mxu0 0
  %5629 = vmatpush1.bf16.msra.mxu0 %v4600
  %5630 = vmatprep.subr.bf16.mxu0 0
  %5631 = vmatpush1.bf16.msra.mxu0 0
  %5632 = vmatprep.subr.bf16.mxu0 0
  %5633 = vmatpush1.bf16.msra.mxu0 0
  %5634 = vmatprep.subr.bf16.mxu0 0
  %5635 = vmatpush1.bf16.msra.mxu0 0
  %5636 = vmatprep.subr.bf16.mxu0 0
  %5637 = vmatpush1.bf16.msra.mxu0 0
  %5638 = vmatprep.subr.bf16.mxu0 0
  %5639 = vmatpush1.bf16.msra.mxu0 0
  %5640 = vmatprep.subr.bf16.mxu0 0
  %5641 = vmatpush1.bf16.msra.mxu0 0
  %5642 = vmatprep.subr.bf16.mxu0 0
  %5643 = vmatpush1.bf16.msra.mxu0 0
  %5644 = vmatprep.subr.bf16.mxu0 0
  %5645 = vmatpush1.bf16.msra.mxu0 0
  %5646 = vmatprep.subr.bf16.mxu0 0
  %5647 = vmatpush1.bf16.msra.mxu0 0
  %5648 = vmatprep.subr.bf16.mxu0 0
  %5649 = vmatpush1.bf16.msra.mxu0 0
  %5650 = vmatprep.subr.bf16.mxu0 0
  %5651 = vmatpush1.bf16.msra.mxu0 0
  %5652 = vmatprep.subr.bf16.mxu0 0
  %5653 = vmatpush1.bf16.msra.mxu0 0
  %5654 = vmatprep.mubr.bf16.mxu0 0
  %5655 = vmatmul.mubr.bf16.gmra.mrb[0].mxu0 %v5611
  %v5656 = vpop.f32.mrb[0].mxu0
  %v5657 = vadd.f32 0.0, %v5656
  %v5658 = vpop.f32.mrb[0].mxu0
  %v5659 = vpop.f32.mrb[0].mxu0
  %v5660 = vadd.f32 0.0, %v5659
  %v5661 = vpop.f32.mrb[0].mxu0
  %5662 = vmatprep.mubr.bf16.mxu0 0
  %5663 = vmatmul.mubr.bf16.gmra.mrb[0].mxu0 %v5614
  %v5664 = vpop.f32.mrb[0].mxu0
  %v5665 = vadd.f32 0.0, %v5664
  %v5666 = vpop.f32.mrb[0].mxu0
  %v5667 = vpop.f32.mrb[0].mxu0
  %v5668 = vadd.f32 0.0, %v5667
  %v5669 = vpop.f32.mrb[0].mxu0
  %5670 = vmatprep.mubr.bf16.mxu0 0
  %5671 = vmatmul.mubr.bf16.gmra.mrb[0].mxu0 %v5617
  %v5672 = vpop.f32.mrb[0].mxu0
  %v5673 = vadd.f32 0.0, %v5672
  %v5674 = vpop.f32.mrb[0].mxu0
  %v5675 = vpop.f32.mrb[0].mxu0
  %v5676 = vadd.f32 0.0, %v5675
  %v5677 = vpop.f32.mrb[0].mxu0
  %5678 = vmatprep.mubr.bf16.mxu0 0
  %5679 = vmatmul.mubr.bf16.gmra.mrb[0].mxu0 %v5620
  %v5680 = vpop.f32.mrb[0].mxu0
  %v5681 = vadd.f32 0.0, %v5680
  %v5682 = vpop.f32.mrb[0].mxu0
  %v5683 = vpop.f32.mrb[0].mxu0
  %v5684 = vadd.f32 0.0, %v5683
  %v5685 = vpop.f32.mrb[0].mxu0
  %5686 = vdwg.mxu0
  %v5688 = vsel %vm3072, %v4537, 0
  %v5691 = vsel %vm3072, %v4538, 0
  %v5694 = vsel %vm3072, %v4539, 0
  %v5697 = vsel %vm3072, %v4540, 0
  %5699 = vmatprep.subr.bf16.mxu0 0
  %5700 = vmatpush1.bf16.msra.mxu0 %v4601
  %5701 = vmatprep.subr.bf16.mxu0 0
  %5702 = vmatpush1.bf16.msra.mxu0 %v4602
  %5703 = vmatprep.subr.bf16.mxu0 0
  %5704 = vmatpush1.bf16.msra.mxu0 %v4603
  %5705 = vmatprep.subr.bf16.mxu0 0
  %5706 = vmatpush1.bf16.msra.mxu0 %v4604
  %5707 = vmatprep.subr.bf16.mxu0 0
  %5708 = vmatpush1.bf16.msra.mxu0 0
  %5709 = vmatprep.subr.bf16.mxu0 0
  %5710 = vmatpush1.bf16.msra.mxu0 0
  %5711 = vmatprep.subr.bf16.mxu0 0
  %5712 = vmatpush1.bf16.msra.mxu0 0
  %5713 = vmatprep.subr.bf16.mxu0 0
  %5714 = vmatpush1.bf16.msra.mxu0 0
  %5715 = vmatprep.subr.bf16.mxu0 0
  %5716 = vmatpush1.bf16.msra.mxu0 0
  %5717 = vmatprep.subr.bf16.mxu0 0
  %5718 = vmatpush1.bf16.msra.mxu0 0
  %5719 = vmatprep.subr.bf16.mxu0 0
  %5720 = vmatpush1.bf16.msra.mxu0 0
  %5721 = vmatprep.subr.bf16.mxu0 0
  %5722 = vmatpush1.bf16.msra.mxu0 0
  %5723 = vmatprep.subr.bf16.mxu0 0
  %5724 = vmatpush1.bf16.msra.mxu0 0
  %5725 = vmatprep.subr.bf16.mxu0 0
  %5726 = vmatpush1.bf16.msra.mxu0 0
  %5727 = vmatprep.subr.bf16.mxu0 0
  %5728 = vmatpush1.bf16.msra.mxu0 0
  %5729 = vmatprep.subr.bf16.mxu0 0
  %5730 = vmatpush1.bf16.msra.mxu0 0
  %5731 = vmatprep.mubr.bf16.mxu0 0
  %5732 = vmatmul.mubr.bf16.gmra.mrb[0].mxu0 %v5688
  %v5733 = vpop.f32.mrb[0].mxu0
  %v5734 = vadd.f32 0.0, %v5733
  %v5735 = vpop.f32.mrb[0].mxu0
  %v5736 = vpop.f32.mrb[0].mxu0
  %v5737 = vadd.f32 0.0, %v5736
  %v5738 = vpop.f32.mrb[0].mxu0
  %5739 = vmatprep.mubr.bf16.mxu0 0
  %5740 = vmatmul.mubr.bf16.gmra.mrb[0].mxu0 %v5691
  %v5741 = vpop.f32.mrb[0].mxu0
  %v5742 = vadd.f32 0.0, %v5741
  %v5743 = vpop.f32.mrb[0].mxu0
  %v5744 = vpop.f32.mrb[0].mxu0
  %v5745 = vadd.f32 0.0, %v5744
  %v5746 = vpop.f32.mrb[0].mxu0
  %5747 = vmatprep.mubr.bf16.mxu0 0
  %5748 = vmatmul.mubr.bf16.gmra.mrb[0].mxu0 %v5694
  %v5749 = vpop.f32.mrb[0].mxu0
  %v5750 = vadd.f32 0.0, %v5749
  %v5751 = vpop.f32.mrb[0].mxu0
  %v5752 = vpop.f32.mrb[0].mxu0
  %v5753 = vadd.f32 0.0, %v5752
  %v5754 = vpop.f32.mrb[0].mxu0
  %5755 = vmatprep.mubr.bf16.mxu0 0
  %5756 = vmatmul.mubr.bf16.gmra.mrb[0].mxu0 %v5697
  %v5757 = vpop.f32.mrb[0].mxu0
  %v5758 = vadd.f32 0.0, %v5757
  %v5759 = vpop.f32.mrb[0].mxu0
  %v5760 = vpop.f32.mrb[0].mxu0
  %v5761 = vadd.f32 0.0, %v5760
  %v5762 = vpop.f32.mrb[0].mxu0
  %5763 = vdwg.mxu0
  %v5765 = vsel %vm3072, %v4541, 0
  %v5768 = vsel %vm3072, %v4542, 0
  %v5771 = vsel %vm3072, %v4543, 0
  %v5774 = vsel %vm3072, %v4544, 0
  %5776 = vmatprep.subr.bf16.mxu0 0
  %5777 = vmatpush1.bf16.msra.mxu0 %v4605
  %5778 = vmatprep.subr.bf16.mxu0 0
  %5779 = vmatpush1.bf16.msra.mxu0 %v4606
  %5780 = vmatprep.subr.bf16.mxu0 0
  %5781 = vmatpush1.bf16.msra.mxu0 %v4607
  %5782 = vmatprep.subr.bf16.mxu0 0
  %5783 = vmatpush1.bf16.msra.mxu0 %v4608
  %5784 = vmatprep.subr.bf16.mxu0 0
  %5785 = vmatpush1.bf16.msra.mxu0 0
  %5786 = vmatprep.subr.bf16.mxu0 0
  %5787 = vmatpush1.bf16.msra.mxu0 0
  %5788 = vmatprep.subr.bf16.mxu0 0
  %5789 = vmatpush1.bf16.msra.mxu0 0
  %5790 = vmatprep.subr.bf16.mxu0 0
  %5791 = vmatpush1.bf16.msra.mxu0 0
  %5792 = vmatprep.subr.bf16.mxu0 0
  %5793 = vmatpush1.bf16.msra.mxu0 0
  %5794 = vmatprep.subr.bf16.mxu0 0
  %5795 = vmatpush1.bf16.msra.mxu0 0
  %5796 = vmatprep.subr.bf16.mxu0 0
  %5797 = vmatpush1.bf16.msra.mxu0 0
  %5798 = vmatprep.subr.bf16.mxu0 0
  %5799 = vmatpush1.bf16.msra.mxu0 0
  %5800 = vmatprep.subr.bf16.mxu0 0
  %5801 = vmatpush1.bf16.msra.mxu0 0
  %5802 = vmatprep.subr.bf16.mxu0 0
  %5803 = vmatpush1.bf16.msra.mxu0 0
  %5804 = vmatprep.subr.bf16.mxu0 0
  %5805 = vmatpush1.bf16.msra.mxu0 0
  %5806 = vmatprep.subr.bf16.mxu0 0
  %5807 = vmatpush1.bf16.msra.mxu0 0
  %5808 = vmatprep.mubr.bf16.mxu0 0
  %5809 = vmatmul.mubr.bf16.gmra.mrb[0].mxu0 %v5765
  %v5810 = vpop.f32.mrb[0].mxu0
  %v5811 = vadd.f32 0.0, %v5810
  %v5812 = vpop.f32.mrb[0].mxu0
  %v5813 = vpop.f32.mrb[0].mxu0
  %v5814 = vadd.f32 0.0, %v5813
  %v5815 = vpop.f32.mrb[0].mxu0
  %5816 = vmatprep.mubr.bf16.mxu0 0
  %5817 = vmatmul.mubr.bf16.gmra.mrb[0].mxu0 %v5768
  %v5818 = vpop.f32.mrb[0].mxu0
  %v5819 = vadd.f32 0.0, %v5818
  %v5820 = vpop.f32.mrb[0].mxu0
  %v5821 = vpop.f32.mrb[0].mxu0
  %v5822 = vadd.f32 0.0, %v5821
  %v5823 = vpop.f32.mrb[0].mxu0
  %5824 = vmatprep.mubr.bf16.mxu0 0
  %5825 = vmatmul.mubr.bf16.gmra.mrb[0].mxu0 %v5771
  %v5826 = vpop.f32.mrb[0].mxu0
  %v5827 = vadd.f32 0.0, %v5826
  %v5828 = vpop.f32.mrb[0].mxu0
  %v5829 = vpop.f32.mrb[0].mxu0
  %v5830 = vadd.f32 0.0, %v5829
  %v5831 = vpop.f32.mrb[0].mxu0
  %5832 = vmatprep.mubr.bf16.mxu0 0
  %5833 = vmatmul.mubr.bf16.gmra.mrb[0].mxu0 %v5774
  %v5834 = vpop.f32.mrb[0].mxu0
  %v5835 = vadd.f32 0.0, %v5834
  %v5836 = vpop.f32.mrb[0].mxu0
  %v5837 = vpop.f32.mrb[0].mxu0
  %v5838 = vadd.f32 0.0, %v5837
  %v5839 = vpop.f32.mrb[0].mxu0
  %5840 = vdwg.mxu0
  %5857 = vrot.lane.b32.xlu0 %v4810, 4
  %v5858 = vpop.permute.xlu0 %5857
  %5859 = vrot.lane.b32.xlu0 %v4813, 4
  %v5860 = vpop.permute.xlu0 %5859
  %5861 = vrot.lane.b32.xlu0 %v4818, 4
  %v5862 = vpop.permute.xlu0 %5861
  %5863 = vrot.lane.b32.xlu0 %v4821, 4
  %v5864 = vpop.permute.xlu0 %5863
  %5865 = vrot.lane.b32.xlu0 %v4826, 4
  %v5866 = vpop.permute.xlu0 %5865
  %5867 = vrot.lane.b32.xlu0 %v4829, 4
  %v5868 = vpop.permute.xlu0 %5867
  %5869 = vrot.lane.b32.xlu0 %v4834, 4
  %v5870 = vpop.permute.xlu0 %5869
  %5871 = vrot.lane.b32.xlu0 %v4837, 4
  %v5872 = vpop.permute.xlu0 %5871
  %5873 = vrot.lane.b32.xlu0 %v4887, 4
  %v5874 = vpop.permute.xlu0 %5873
  %5875 = vrot.lane.b32.xlu0 %v4890, 4
  %v5876 = vpop.permute.xlu0 %5875
  %5877 = vrot.lane.b32.xlu0 %v4895, 4
  %v5878 = vpop.permute.xlu0 %5877
  %5879 = vrot.lane.b32.xlu0 %v4898, 4
  %v5880 = vpop.permute.xlu0 %5879
  %5881 = vrot.lane.b32.xlu0 %v4903, 4
  %v5882 = vpop.permute.xlu0 %5881
  %5883 = vrot.lane.b32.xlu0 %v4906, 4
  %v5884 = vpop.permute.xlu0 %5883
  %5885 = vrot.lane.b32.xlu0 %v4911, 4
  %v5886 = vpop.permute.xlu0 %5885
  %5887 = vrot.lane.b32.xlu0 %v4914, 4
  %v5888 = vpop.permute.xlu0 %5887
  %5921 = vrot.lane.b32.xlu0 %v4964, 8
  %v5922 = vpop.permute.xlu0 %5921
  %5923 = vrot.lane.b32.xlu0 %v4967, 8
  %v5924 = vpop.permute.xlu0 %5923
  %5925 = vrot.lane.b32.xlu0 %v4972, 8
  %v5926 = vpop.permute.xlu0 %5925
  %5927 = vrot.lane.b32.xlu0 %v4975, 8
  %v5928 = vpop.permute.xlu0 %5927
  %5929 = vrot.lane.b32.xlu0 %v4980, 8
  %v5930 = vpop.permute.xlu0 %5929
  %5931 = vrot.lane.b32.xlu0 %v4983, 8
  %v5932 = vpop.permute.xlu0 %5931
  %5933 = vrot.lane.b32.xlu0 %v4988, 8
  %v5934 = vpop.permute.xlu0 %5933
  %5935 = vrot.lane.b32.xlu0 %v4991, 8
  %v5936 = vpop.permute.xlu0 %5935
  %5937 = vrot.lane.b32.xlu0 %v5041, 8
  %v5938 = vpop.permute.xlu0 %5937
  %5939 = vrot.lane.b32.xlu0 %v5044, 8
  %v5940 = vpop.permute.xlu0 %5939
  %5941 = vrot.lane.b32.xlu0 %v5049, 8
  %v5942 = vpop.permute.xlu0 %5941
  %5943 = vrot.lane.b32.xlu0 %v5052, 8
  %v5944 = vpop.permute.xlu0 %5943
  %5945 = vrot.lane.b32.xlu0 %v5057, 8
  %v5946 = vpop.permute.xlu0 %5945
  %5947 = vrot.lane.b32.xlu0 %v5060, 8
  %v5948 = vpop.permute.xlu0 %5947
  %5949 = vrot.lane.b32.xlu0 %v5065, 8
  %v5950 = vpop.permute.xlu0 %5949
  %5951 = vrot.lane.b32.xlu0 %v5068, 8
  %v5952 = vpop.permute.xlu0 %5951
  %5985 = vrot.lane.b32.xlu0 %v5118, 12
  %v5986 = vpop.permute.xlu0 %5985
  %5987 = vrot.lane.b32.xlu0 %v5121, 12
  %v5988 = vpop.permute.xlu0 %5987
  %5989 = vrot.lane.b32.xlu0 %v5126, 12
  %v5990 = vpop.permute.xlu0 %5989
  %5991 = vrot.lane.b32.xlu0 %v5129, 12
  %v5992 = vpop.permute.xlu0 %5991
  %5993 = vrot.lane.b32.xlu0 %v5134, 12
  %v5994 = vpop.permute.xlu0 %5993
  %5995 = vrot.lane.b32.xlu0 %v5137, 12
  %v5996 = vpop.permute.xlu0 %5995
  %5997 = vrot.lane.b32.xlu0 %v5142, 12
  %v5998 = vpop.permute.xlu0 %5997
  %5999 = vrot.lane.b32.xlu0 %v5145, 12
  %v6000 = vpop.permute.xlu0 %5999
  %6001 = vrot.lane.b32.xlu0 %v5195, 12
  %v6002 = vpop.permute.xlu0 %6001
  %6003 = vrot.lane.b32.xlu0 %v5198, 12
  %v6004 = vpop.permute.xlu0 %6003
  %6005 = vrot.lane.b32.xlu0 %v5203, 12
  %v6006 = vpop.permute.xlu0 %6005
  %6007 = vrot.lane.b32.xlu0 %v5206, 12
  %v6008 = vpop.permute.xlu0 %6007
  %6009 = vrot.lane.b32.xlu0 %v5211, 12
  %v6010 = vpop.permute.xlu0 %6009
  %6011 = vrot.lane.b32.xlu0 %v5214, 12
  %v6012 = vpop.permute.xlu0 %6011
  %6013 = vrot.lane.b32.xlu0 %v5219, 12
  %v6014 = vpop.permute.xlu0 %6013
  %6015 = vrot.lane.b32.xlu0 %v5222, 12
  %v6016 = vpop.permute.xlu0 %6015
  %6049 = vrot.lane.b32.xlu0 %v5272, 16
  %v6050 = vpop.permute.xlu0 %6049
  %6051 = vrot.lane.b32.xlu0 %v5275, 16
  %v6052 = vpop.permute.xlu0 %6051
  %6053 = vrot.lane.b32.xlu0 %v5280, 16
  %v6054 = vpop.permute.xlu0 %6053
  %6055 = vrot.lane.b32.xlu0 %v5283, 16
  %v6056 = vpop.permute.xlu0 %6055
  %6057 = vrot.lane.b32.xlu0 %v5288, 16
  %v6058 = vpop.permute.xlu0 %6057
  %6059 = vrot.lane.b32.xlu0 %v5291, 16
  %v6060 = vpop.permute.xlu0 %6059
  %6061 = vrot.lane.b32.xlu0 %v5296, 16
  %v6062 = vpop.permute.xlu0 %6061
  %6063 = vrot.lane.b32.xlu0 %v5299, 16
  %v6064 = vpop.permute.xlu0 %6063
  %6065 = vrot.lane.b32.xlu0 %v5349, 16
  %v6066 = vpop.permute.xlu0 %6065
  %6067 = vrot.lane.b32.xlu0 %v5352, 16
  %v6068 = vpop.permute.xlu0 %6067
  %6069 = vrot.lane.b32.xlu0 %v5357, 16
  %v6070 = vpop.permute.xlu0 %6069
  %6071 = vrot.lane.b32.xlu0 %v5360, 16
  %v6072 = vpop.permute.xlu0 %6071
  %6073 = vrot.lane.b32.xlu0 %v5365, 16
  %v6074 = vpop.permute.xlu0 %6073
  %6075 = vrot.lane.b32.xlu0 %v5368, 16
  %v6076 = vpop.permute.xlu0 %6075
  %6077 = vrot.lane.b32.xlu0 %v5373, 16
  %v6078 = vpop.permute.xlu0 %6077
  %6079 = vrot.lane.b32.xlu0 %v5376, 16
  %v6080 = vpop.permute.xlu0 %6079
  %6113 = vrot.lane.b32.xlu0 %v5426, 20
  %v6114 = vpop.permute.xlu0 %6113
  %6115 = vrot.lane.b32.xlu0 %v5429, 20
  %v6116 = vpop.permute.xlu0 %6115
  %6117 = vrot.lane.b32.xlu0 %v5434, 20
  %v6118 = vpop.permute.xlu0 %6117
  %6119 = vrot.lane.b32.xlu0 %v5437, 20
  %v6120 = vpop.permute.xlu0 %6119
  %6121 = vrot.lane.b32.xlu0 %v5442, 20
  %v6122 = vpop.permute.xlu0 %6121
  %6123 = vrot.lane.b32.xlu0 %v5445, 20
  %v6124 = vpop.permute.xlu0 %6123
  %6125 = vrot.lane.b32.xlu0 %v5450, 20
  %v6126 = vpop.permute.xlu0 %6125
  %6127 = vrot.lane.b32.xlu0 %v5453, 20
  %v6128 = vpop.permute.xlu0 %6127
  %6129 = vrot.lane.b32.xlu0 %v5503, 20
  %v6130 = vpop.permute.xlu0 %6129
  %6131 = vrot.lane.b32.xlu0 %v5506, 20
  %v6132 = vpop.permute.xlu0 %6131
  %6133 = vrot.lane.b32.xlu0 %v5511, 20
  %v6134 = vpop.permute.xlu0 %6133
  %6135 = vrot.lane.b32.xlu0 %v5514, 20
  %v6136 = vpop.permute.xlu0 %6135
  %6137 = vrot.lane.b32.xlu0 %v5519, 20
  %v6138 = vpop.permute.xlu0 %6137
  %6139 = vrot.lane.b32.xlu0 %v5522, 20
  %v6140 = vpop.permute.xlu0 %6139
  %6141 = vrot.lane.b32.xlu0 %v5527, 20
  %v6142 = vpop.permute.xlu0 %6141
  %6143 = vrot.lane.b32.xlu0 %v5530, 20
  %v6144 = vpop.permute.xlu0 %6143
  %6177 = vrot.lane.b32.xlu0 %v5580, 24
  %v6178 = vpop.permute.xlu0 %6177
  %6179 = vrot.lane.b32.xlu0 %v5583, 24
  %v6180 = vpop.permute.xlu0 %6179
  %6181 = vrot.lane.b32.xlu0 %v5588, 24
  %v6182 = vpop.permute.xlu0 %6181
  %6183 = vrot.lane.b32.xlu0 %v5591, 24
  %v6184 = vpop.permute.xlu0 %6183
  %6185 = vrot.lane.b32.xlu0 %v5596, 24
  %v6186 = vpop.permute.xlu0 %6185
  %6187 = vrot.lane.b32.xlu0 %v5599, 24
  %v6188 = vpop.permute.xlu0 %6187
  %6189 = vrot.lane.b32.xlu0 %v5604, 24
  %v6190 = vpop.permute.xlu0 %6189
  %6191 = vrot.lane.b32.xlu0 %v5607, 24
  %v6192 = vpop.permute.xlu0 %6191
  %6193 = vrot.lane.b32.xlu0 %v5657, 24
  %v6194 = vpop.permute.xlu0 %6193
  %6195 = vrot.lane.b32.xlu0 %v5660, 24
  %v6196 = vpop.permute.xlu0 %6195
  %6197 = vrot.lane.b32.xlu0 %v5665, 24
  %v6198 = vpop.permute.xlu0 %6197
  %6199 = vrot.lane.b32.xlu0 %v5668, 24
  %v6200 = vpop.permute.xlu0 %6199
  %6201 = vrot.lane.b32.xlu0 %v5673, 24
  %v6202 = vpop.permute.xlu0 %6201
  %6203 = vrot.lane.b32.xlu0 %v5676, 24
  %v6204 = vpop.permute.xlu0 %6203
  %6205 = vrot.lane.b32.xlu0 %v5681, 24
  %v6206 = vpop.permute.xlu0 %6205
  %6207 = vrot.lane.b32.xlu0 %v5684, 24
  %v6208 = vpop.permute.xlu0 %6207
  %6241 = vrot.lane.b32.xlu0 %v5734, 28
  %v6242 = vpop.permute.xlu0 %6241
  %6243 = vrot.lane.b32.xlu0 %v5737, 28
  %v6244 = vpop.permute.xlu0 %6243
  %6245 = vrot.lane.b32.xlu0 %v5742, 28
  %v6246 = vpop.permute.xlu0 %6245
  %6247 = vrot.lane.b32.xlu0 %v5745, 28
  %v6248 = vpop.permute.xlu0 %6247
  %6249 = vrot.lane.b32.xlu0 %v5750, 28
  %v6250 = vpop.permute.xlu0 %6249
  %6251 = vrot.lane.b32.xlu0 %v5753, 28
  %v6252 = vpop.permute.xlu0 %6251
  %6253 = vrot.lane.b32.xlu0 %v5758, 28
  %v6254 = vpop.permute.xlu0 %6253
  %6255 = vrot.lane.b32.xlu0 %v5761, 28
  %v6256 = vpop.permute.xlu0 %6255
  %6257 = vrot.lane.b32.xlu0 %v5811, 28
  %v6258 = vpop.permute.xlu0 %6257
  %6259 = vrot.lane.b32.xlu0 %v5814, 28
  %v6260 = vpop.permute.xlu0 %6259
  %6261 = vrot.lane.b32.xlu0 %v5819, 28
  %v6262 = vpop.permute.xlu0 %6261
  %6263 = vrot.lane.b32.xlu0 %v5822, 28
  %v6264 = vpop.permute.xlu0 %6263
  %6265 = vrot.lane.b32.xlu0 %v5827, 28
  %v6266 = vpop.permute.xlu0 %6265
  %6267 = vrot.lane.b32.xlu0 %v5830, 28
  %v6268 = vpop.permute.xlu0 %6267
  %6269 = vrot.lane.b32.xlu0 %v5835, 28
  %v6270 = vpop.permute.xlu0 %6269
  %6271 = vrot.lane.b32.xlu0 %v5838, 28
  %v6272 = vpop.permute.xlu0 %6271
  %v6289 = vsel %vm1647, %v4656, %v5858
  %v6290 = vsel %vm1647, %v4659, %v5860
  %v6291 = vsel %vm1647, %v4664, %v5862
  %v6292 = vsel %vm1647, %v4667, %v5864
  %v6293 = vsel %vm1647, %v4672, %v5866
  %v6294 = vsel %vm1647, %v4675, %v5868
  %v6295 = vsel %vm1647, %v4680, %v5870
  %v6296 = vsel %vm1647, %v4683, %v5872
  %v6297 = vsel %vm1647, %v4733, %v5874
  %v6298 = vsel %vm1647, %v4736, %v5876
  %v6299 = vsel %vm1647, %v4741, %v5878
  %v6300 = vsel %vm1647, %v4744, %v5880
  %v6301 = vsel %vm1647, %v4749, %v5882
  %v6302 = vsel %vm1647, %v4752, %v5884
  %v6303 = vsel %vm1647, %v4757, %v5886
  %v6304 = vsel %vm1647, %v4760, %v5888
  %vm6305 = vcmask 64512
  %v6306 = vsel %vm6305, %v6289, %v5922
  %v6307 = vsel %vm6305, %v6290, %v5924
  %v6308 = vsel %vm6305, %v6291, %v5926
  %v6309 = vsel %vm6305, %v6292, %v5928
  %v6310 = vsel %vm6305, %v6293, %v5930
  %v6311 = vsel %vm6305, %v6294, %v5932
  %v6312 = vsel %vm6305, %v6295, %v5934
  %v6313 = vsel %vm6305, %v6296, %v5936
  %v6314 = vsel %vm6305, %v6297, %v5938
  %v6315 = vsel %vm6305, %v6298, %v5940
  %v6316 = vsel %vm6305, %v6299, %v5942
  %v6317 = vsel %vm6305, %v6300, %v5944
  %v6318 = vsel %vm6305, %v6301, %v5946
  %v6319 = vsel %vm6305, %v6302, %v5948
  %v6320 = vsel %vm6305, %v6303, %v5950
  %v6321 = vsel %vm6305, %v6304, %v5952
  %vm6322 = vcmask 97280
  %v6323 = vsel %vm6322, %v6306, %v5986
  %v6324 = vsel %vm6322, %v6307, %v5988
  %v6325 = vsel %vm6322, %v6308, %v5990
  %v6326 = vsel %vm6322, %v6309, %v5992
  %v6327 = vsel %vm6322, %v6310, %v5994
  %v6328 = vsel %vm6322, %v6311, %v5996
  %v6329 = vsel %vm6322, %v6312, %v5998
  %v6330 = vsel %vm6322, %v6313, %v6000
  %v6331 = vsel %vm6322, %v6314, %v6002
  %v6332 = vsel %vm6322, %v6315, %v6004
  %v6333 = vsel %vm6322, %v6316, %v6006
  %v6334 = vsel %vm6322, %v6317, %v6008
  %v6335 = vsel %vm6322, %v6318, %v6010
  %v6336 = vsel %vm6322, %v6319, %v6012
  %v6337 = vsel %vm6322, %v6320, %v6014
  %v6338 = vsel %vm6322, %v6321, %v6016
  %vm6339 = vcmask 130048
  %v6340 = vsel %vm6339, %v6323, %v6050
  %v6341 = vsel %vm6339, %v6324, %v6052
  %v6342 = vsel %vm6339, %v6325, %v6054
  %v6343 = vsel %vm6339, %v6326, %v6056
  %v6344 = vsel %vm6339, %v6327, %v6058
  %v6345 = vsel %vm6339, %v6328, %v6060
  %v6346 = vsel %vm6339, %v6329, %v6062
  %v6347 = vsel %vm6339, %v6330, %v6064
  %v6348 = vsel %vm6339, %v6331, %v6066
  %v6349 = vsel %vm6339, %v6332, %v6068
  %v6350 = vsel %vm6339, %v6333, %v6070
  %v6351 = vsel %vm6339, %v6334, %v6072
  %v6352 = vsel %vm6339, %v6335, %v6074
  %v6353 = vsel %vm6339, %v6336, %v6076
  %v6354 = vsel %vm6339, %v6337, %v6078
  %v6355 = vsel %vm6339, %v6338, %v6080
  %vm6356 = vcmask 162816
  %v6357 = vsel %vm6356, %v6340, %v6114
  %v6358 = vsel %vm6356, %v6341, %v6116
  %v6359 = vsel %vm6356, %v6342, %v6118
  %v6360 = vsel %vm6356, %v6343, %v6120
  %v6361 = vsel %vm6356, %v6344, %v6122
  %v6362 = vsel %vm6356, %v6345, %v6124
  %v6363 = vsel %vm6356, %v6346, %v6126
  %v6364 = vsel %vm6356, %v6347, %v6128
  %v6365 = vsel %vm6356, %v6348, %v6130
  %v6366 = vsel %vm6356, %v6349, %v6132
  %v6367 = vsel %vm6356, %v6350, %v6134
  %v6368 = vsel %vm6356, %v6351, %v6136
  %v6369 = vsel %vm6356, %v6352, %v6138
  %v6370 = vsel %vm6356, %v6353, %v6140
  %v6371 = vsel %vm6356, %v6354, %v6142
  %v6372 = vsel %vm6356, %v6355, %v6144
  %vm6373 = vcmask 195584
  %v6374 = vsel %vm6373, %v6357, %v6178
  %v6375 = vsel %vm6373, %v6358, %v6180
  %v6376 = vsel %vm6373, %v6359, %v6182
  %v6377 = vsel %vm6373, %v6360, %v6184
  %v6378 = vsel %vm6373, %v6361, %v6186
  %v6379 = vsel %vm6373, %v6362, %v6188
  %v6380 = vsel %vm6373, %v6363, %v6190
  %v6381 = vsel %vm6373, %v6364, %v6192
  %v6382 = vsel %vm6373, %v6365, %v6194
  %v6383 = vsel %vm6373, %v6366, %v6196
  %v6384 = vsel %vm6373, %v6367, %v6198
  %v6385 = vsel %vm6373, %v6368, %v6200
  %v6386 = vsel %vm6373, %v6369, %v6202
  %v6387 = vsel %vm6373, %v6370, %v6204
  %v6388 = vsel %vm6373, %v6371, %v6206
  %v6389 = vsel %vm6373, %v6372, %v6208
  %vm6390 = vcmask 228352
  %v6391 = vsel %vm6390, %v6374, %v6242
  %v6392 = vsel %vm6390, %v6375, %v6244
  %v6393 = vsel %vm6390, %v6376, %v6246
  %v6394 = vsel %vm6390, %v6377, %v6248
  %v6395 = vsel %vm6390, %v6378, %v6250
  %v6396 = vsel %vm6390, %v6379, %v6252
  %v6397 = vsel %vm6390, %v6380, %v6254
  %v6398 = vsel %vm6390, %v6381, %v6256
  %v6399 = vsel %vm6390, %v6382, %v6258
  %v6400 = vsel %vm6390, %v6383, %v6260
  %v6401 = vsel %vm6390, %v6384, %v6262
  %v6402 = vsel %vm6390, %v6385, %v6264
  %v6403 = vsel %vm6390, %v6386, %v6266
  %v6404 = vsel %vm6390, %v6387, %v6268
  %v6405 = vsel %vm6390, %v6388, %v6270
  %v6406 = vsel %vm6390, %v6389, %v6272
  %v6407 = vpack.c.bf16 %v6392, %v6391
  %v6408 = vpack.c.bf16 %v6394, %v6393
  %v6409 = vpack.c.bf16 %v6396, %v6395
  %v6410 = vpack.c.bf16 %v6398, %v6397
  %v6411 = vpack.c.bf16 %v6400, %v6399
  %v6412 = vpack.c.bf16 %v6402, %v6401
  %v6413 = vpack.c.bf16 %v6404, %v6403
  %v6414 = vpack.c.bf16 %v6406, %v6405
  %v6415 = vld [vmem:[%s5] sm:$0xf]
  %v6416 = vld [vmem:[%s5 + $0x4] sm:$0xf]
  %v6417 = vld [vmem:[%s5 + $0x8] sm:$0xf]
  %v6418 = vld [vmem:[%s5 + $0xc] sm:$0xf]
  %v6419 = vld [vmem:[%s6] sm:$0x1]
  %v6421 = vlaneseq
  %v6422 = vshrl.u32 %v6421, 7
  %v6423 = vsub.s32 0, %v6422
  %v6424 = vrot.slane %v6419, %v6423
  %v6430 = vunpack.c.l.b16 %v6415
  %v6431 = vunpack.c.l.b16 %v6416
  %v6432 = vunpack.c.l.b16 %v6417
  %v6433 = vunpack.c.l.b16 %v6418
  %v6434 = vpack.c.b16 %v6431, %v6430
  %v6435 = vpack.c.b16 %v6433, %v6432
  %v6439 = vsel %vm91, %v6407, 0
  %v6442 = vsel %vm91, %v6408, 0
  %v6445 = vsel %vm91, %v6409, 0
  %v6448 = vsel %vm91, %v6410, 0
  %v6451 = vsel %vm91, %v6411, 0
  %v6454 = vsel %vm91, %v6412, 0
  %v6457 = vsel %vm91, %v6413, 0
  %v6460 = vsel %vm91, %v6414, 0
  %6462 = vmatprep.subr.bf16.mxu0 0
  %6463 = vmatpush1.bf16.msra.mxu0 %v6434
  %6464 = vmatprep.subr.bf16.mxu0 0
  %6465 = vmatpush1.bf16.msra.mxu0 %v6435
  %6466 = vmatprep.subr.bf16.mxu0 0
  %6467 = vmatpush1.bf16.msra.mxu0 0
  %6468 = vmatprep.subr.bf16.mxu0 0
  %6469 = vmatpush1.bf16.msra.mxu0 0
  %6470 = vmatprep.subr.bf16.mxu0 0
  %6471 = vmatpush1.bf16.msra.mxu0 0
  %6472 = vmatprep.subr.bf16.mxu0 0
  %6473 = vmatpush1.bf16.msra.mxu0 0
  %6474 = vmatprep.subr.bf16.mxu0 0
  %6475 = vmatpush1.bf16.msra.mxu0 0
  %6476 = vmatprep.subr.bf16.mxu0 0
  %6477 = vmatpush1.bf16.msra.mxu0 0
  %6478 = vmatprep.subr.bf16.mxu0 0
  %6479 = vmatpush1.bf16.msra.mxu0 0
  %6480 = vmatprep.subr.bf16.mxu0 0
  %6481 = vmatpush1.bf16.msra.mxu0 0
  %6482 = vmatprep.subr.bf16.mxu0 0
  %6483 = vmatpush1.bf16.msra.mxu0 0
  %6484 = vmatprep.subr.bf16.mxu0 0
  %6485 = vmatpush1.bf16.msra.mxu0 0
  %6486 = vmatprep.subr.bf16.mxu0 0
  %6487 = vmatpush1.bf16.msra.mxu0 0
  %6488 = vmatprep.subr.bf16.mxu0 0
  %6489 = vmatpush1.bf16.msra.mxu0 0
  %6490 = vmatprep.subr.bf16.mxu0 0
  %6491 = vmatpush1.bf16.msra.mxu0 0
  %6492 = vmatprep.subr.bf16.mxu0 0
  %6493 = vmatpush1.bf16.msra.mxu0 0
  %6494 = vmatprep.mubr.bf16.mxu0 0
  %6495 = vmatmul.mubr.bf16.gmra.mrb[0].mxu0 %v6439
  %v6496 = vpop.f32.mrb[0].mxu0
  %v6497 = vadd.f32 %v6424, %v6496
  %v6498 = vpop.f32.mrb[0].mxu0
  %v6499 = vpop.f32.mrb[0].mxu0
  %v6500 = vadd.f32 %v6424, %v6499
  %v6501 = vpop.f32.mrb[0].mxu0
  %6502 = vmatprep.mubr.bf16.mxu0 0
  %6503 = vmatmul.mubr.bf16.gmra.mrb[0].mxu0 %v6442
  %v6504 = vpop.f32.mrb[0].mxu0
  %v6505 = vadd.f32 %v6424, %v6504
  %v6506 = vpop.f32.mrb[0].mxu0
  %v6507 = vpop.f32.mrb[0].mxu0
  %v6508 = vadd.f32 %v6424, %v6507
  %v6509 = vpop.f32.mrb[0].mxu0
  %6510 = vmatprep.mubr.bf16.mxu0 0
  %6511 = vmatmul.mubr.bf16.gmra.mrb[0].mxu0 %v6445
  %v6512 = vpop.f32.mrb[0].mxu0
  %v6513 = vadd.f32 %v6424, %v6512
  %v6514 = vpop.f32.mrb[0].mxu0
  %v6515 = vpop.f32.mrb[0].mxu0
  %v6516 = vadd.f32 %v6424, %v6515
  %v6517 = vpop.f32.mrb[0].mxu0
  %6518 = vmatprep.mubr.bf16.mxu0 0
  %6519 = vmatmul.mubr.bf16.gmra.mrb[0].mxu0 %v6448
  %v6520 = vpop.f32.mrb[0].mxu0
  %v6521 = vadd.f32 %v6424, %v6520
  %v6522 = vpop.f32.mrb[0].mxu0
  %v6523 = vpop.f32.mrb[0].mxu0
  %v6524 = vadd.f32 %v6424, %v6523
  %v6525 = vpop.f32.mrb[0].mxu0
  %6526 = vmatprep.mubr.bf16.mxu0 0
  %6527 = vmatmul.mubr.bf16.gmra.mrb[0].mxu0 %v6451
  %v6528 = vpop.f32.mrb[0].mxu0
  %v6529 = vadd.f32 %v6424, %v6528
  %v6530 = vpop.f32.mrb[0].mxu0
  %v6531 = vpop.f32.mrb[0].mxu0
  %v6532 = vadd.f32 %v6424, %v6531
  %v6533 = vpop.f32.mrb[0].mxu0
  %6534 = vmatprep.mubr.bf16.mxu0 0
  %6535 = vmatmul.mubr.bf16.gmra.mrb[0].mxu0 %v6454
  %v6536 = vpop.f32.mrb[0].mxu0
  %v6537 = vadd.f32 %v6424, %v6536
  %v6538 = vpop.f32.mrb[0].mxu0
  %v6539 = vpop.f32.mrb[0].mxu0
  %v6540 = vadd.f32 %v6424, %v6539
  %v6541 = vpop.f32.mrb[0].mxu0
  %6542 = vmatprep.mubr.bf16.mxu0 0
  %6543 = vmatmul.mubr.bf16.gmra.mrb[0].mxu0 %v6457
  %v6544 = vpop.f32.mrb[0].mxu0
  %v6545 = vadd.f32 %v6424, %v6544
  %v6546 = vpop.f32.mrb[0].mxu0
  %v6547 = vpop.f32.mrb[0].mxu0
  %v6548 = vadd.f32 %v6424, %v6547
  %v6549 = vpop.f32.mrb[0].mxu0
  %6550 = vmatprep.mubr.bf16.mxu0 0
  %6551 = vmatmul.mubr.bf16.gmra.mrb[0].mxu0 %v6460
  %v6552 = vpop.f32.mrb[0].mxu0
  %v6553 = vadd.f32 %v6424, %v6552
  %v6554 = vpop.f32.mrb[0].mxu0
  %v6555 = vpop.f32.mrb[0].mxu0
  %v6556 = vadd.f32 %v6424, %v6555
  %v6557 = vpop.f32.mrb[0].mxu0
  %6558 = vdwg.mxu0
  %6559 = vst.msk [vmem:[%s7] sm:$0xff] %vm91, %v6497
  %6560 = vst.msk [vmem:[%s7 + $0x8] sm:$0xff] %vm91, %v6500
  %6561 = vst.msk [vmem:[%s7 + $0x10] sm:$0xff] %vm91, %v6505
  %6562 = vst.msk [vmem:[%s7 + $0x18] sm:$0xff] %vm91, %v6508
  %6563 = vst.msk [vmem:[%s7 + $0x20] sm:$0xff] %vm91, %v6513
  %6564 = vst.msk [vmem:[%s7 + $0x28] sm:$0xff] %vm91, %v6516
  %6565 = vst.msk [vmem:[%s7 + $0x30] sm:$0xff] %vm91, %v6521
  %6566 = vst.msk [vmem:[%s7 + $0x38] sm:$0xff] %vm91, %v6524
  %6567 = vst.msk [vmem:[%s7 + $0x40] sm:$0xff] %vm91, %v6529
  %6568 = vst.msk [vmem:[%s7 + $0x48] sm:$0xff] %vm91, %v6532
  %6569 = vst.msk [vmem:[%s7 + $0x50] sm:$0xff] %vm91, %v6537
  %6570 = vst.msk [vmem:[%s7 + $0x58] sm:$0xff] %vm91, %v6540
  %6571 = vst.msk [vmem:[%s7 + $0x60] sm:$0xff] %vm91, %v6545
  %6572 = vst.msk [vmem:[%s7 + $0x68] sm:$0xff] %vm91, %v6548
  %6573 = vst.msk [vmem:[%s7 + $0x70] sm:$0xff] %vm91, %v6553
  %6574 = vst.msk [vmem:[%s7 + $0x78] sm:$0xff] %vm91, %v6556
  // Predicated region
  $region30: #{tpu_custom_call.1} parent=0 // pred_check
    _
  $region31: #{tpu_custom_call.1} parent=0 // pred_check_branch
    %6576 = sbr.rel (0) target = $region33
  $region32: #{tpu_custom_call.1} parent=0 // pred_region
    _
  $region33: #{tpu_custom_call.1} parent=0 // pred_fallthru
    _
  // Predicated region
  $region34: #{tpu_custom_call.1} parent=0 // pred_check
    _
  $region35: #{tpu_custom_call.1} parent=0 // pred_check_branch
    %6578 = sbr.rel (0) target = $region37
  $region36: #{tpu_custom_call.1} parent=0 // pred_region
    _
  $region37: #{tpu_custom_call.1} parent=0 // pred_fallthru
    _

</llo_original>
